<compile_context>
chip_gen: v6e
topology: v6e:2x2x1
jax: 0.10.0
libtpu: 0.0.40
codegen_flags: <defaults>
</compile_context>

<pallas_src>
import functools

import jax
import jax.numpy as jnp
from jax.experimental import pallas as pl
from jax.experimental.pallas import tpu as pltpu


_VMEM_LIMIT = 48 << 20          # scoped VMEM limit handed to Mosaic (fits v7x's 64 MiB physical)
_RESIDENT_H_BUDGET = 36 << 20   # max VMEM the resident-H SpMM layout may request (v7x-safe)
_FUSED_PATH_BUDGET = 24 << 20   # max footprint for the single-call small-graph fast path


def _round_up(x, m):
    return ((x + m - 1) // m) * m


# ----------------------------- kernels -----------------------------

def _xw_kernel(x_ref, w_ref, o_ref):
    """Row-tiled dense GEMM: o[i] = x[i] @ W (f32 MXU accumulate, bf16 store)."""
    o_ref[...] = jnp.dot(
        x_ref[...], w_ref[...], preferred_element_type=jnp.float32
    ).astype(o_ref.dtype)


def _spmm_kernel(a_ref, dr_ref, dc_ref, h_ref, *rest,
                 tk, resident_h, fuse_w2, apply_relu):
    """Tiled A_hat @ H with f32 accumulation over the k (column-of-A) grid axis.

    A_hat is applied as  dr * ((A_raw * dc) @ H):
      * column scaling (dc) folded into the bf16 A tile before the MXU,
      * row scaling (dr) applied to the f32 accumulator at finalize.
    When fuse_w2 is set, the finalize step also multiplies by the VMEM-resident W2,
    so layer 2's X@W GEMM never round-trips through HBM.
    """
    if fuse_w2:
        w2_ref, o_ref, acc_ref = rest
    else:
        o_ref, acc_ref = rest

    k = pl.program_id(1)

    @pl.when(k == 0)
    def _():
        acc_ref[...] = jnp.zeros_like(acc_ref)

    # Column-scaled A tile (bf16 for the MXU). VPU work is free in the mem-bound regime.
    a_blk = (a_ref[...].astype(jnp.float32) * dc_ref[...]).astype(jnp.bfloat16)

    if resident_h:
        # The XW operand is fully VMEM-resident (DMA'd once): slice the k-th block
        # in-kernel instead of re-streaming it from HBM for every row tile.
        start = pl.multiple_of(k * tk, tk)
        h_blk = h_ref[pl.ds(start, tk), :]
    else:
        h_blk = h_ref[...]

    acc_ref[...] += jnp.dot(a_blk, h_blk, preferred_element_type=jnp.float32)

    @pl.when(k == pl.num_programs(1) - 1)
    def _():
        out = dr_ref[...] * acc_ref[...]          # row normalization in f32
        if apply_relu:
            out = jnp.maximum(out, 0.0)
        if fuse_w2:
            out = jnp.dot(out.astype(jnp.bfloat16), w2_ref[...],
                          preferred_element_type=jnp.float32)
        o_ref[...] = out.astype(o_ref.dtype)


def _fused_small_kernel(a_ref, dr_ref, dc_ref, x_ref, w1_ref, w2_ref, o_ref):
    """Whole 2-layer forward in one call (small graphs: everything VMEM-resident)."""
    a_blk = (a_ref[...].astype(jnp.float32) * dc_ref[...]).astype(jnp.bfloat16)
    dr = dr_ref[...]
    xw1 = jnp.dot(x_ref[...], w1_ref[...],
                  preferred_element_type=jnp.float32).astype(jnp.bfloat16)
    h1 = jnp.maximum(dr * jnp.dot(a_blk, xw1, preferred_element_type=jnp.float32), 0.0)
    # dropout: identity in eval mode.
    xw2 = jnp.dot(h1.astype(jnp.bfloat16), w2_ref[...],
                  preferred_element_type=jnp.float32).astype(jnp.bfloat16)
    o_ref[...] = (dr * jnp.dot(a_blk, xw2,
                               preferred_element_type=jnp.float32)).astype(o_ref.dtype)


# ----------------------------- pallas_call wrappers -----------------------------

def _tiled_xw(x, w, tm, out_dtype=jnp.bfloat16):
    n, d_in = x.shape
    d_out = w.shape[1]
    return pl.pallas_call(
        _xw_kernel,
        out_shape=jax.ShapeDtypeStruct((n, d_out), out_dtype),
        grid_spec=pltpu.PrefetchScalarGridSpec(
            num_scalar_prefetch=0,
            grid=(n // tm,),
            in_specs=[
                pl.BlockSpec((tm, d_in), lambda i: (i, 0)),
                pl.BlockSpec((d_in, d_out), lambda i: (0, 0)),   # W resident (constant block)
            ],
            out_specs=pl.BlockSpec((tm, d_out), lambda i: (i, 0)),
        ),
        compiler_params=pltpu.CompilerParams(
            dimension_semantics=("parallel",),
            vmem_limit_bytes=_VMEM_LIMIT,
        ),
    )(x, w)


def _spmm_resident_h_fits(n_p, d_p, tm, tk):
    a_buf = 3 * tm * tk * 2            # up to triple-buffered bf16 A tiles
    h_buf = 2 * n_p * d_p * 2          # resident H (conservatively assume 2 buffers)
    w2_buf = 2 * d_p * d_p * 2
    acc_buf = tm * d_p * 4
    out_buf = 2 * tm * d_p * 4
    return a_buf + h_buf + w2_buf + acc_buf + out_buf <= _RESIDENT_H_BUDGET


def _tiled_spmm(a_raw, dr, dc, h, tm, tk, *, w2, apply_relu, resident_h, out_dtype):
    n_p = a_raw.shape[0]
    d_p = h.shape[1]
    n_i, n_k = n_p // tm, n_p // tk

    kernel = functools.partial(
        _spmm_kernel, tk=tk, resident_h=resident_h,
        fuse_w2=w2 is not None, apply_relu=apply_relu)

    # Deeper prefetch on the A_hat stream only when the contraction axis is long
    # enough for a third buffer to hide DMA latency across init/finalize steps.
    a_kwargs = {}
    if n_k >= 4:
        a_kwargs["pipeline_mode"] = pl.Buffered(3)
    a_spec = pl.BlockSpec((tm, tk), lambda i, k: (i, k), **a_kwargs)

    if resident_h:
        h_spec = pl.BlockSpec((n_p, d_p), lambda i, k: (0, 0))   # DMA'd once, stays in VMEM
    else:
        h_spec = pl.BlockSpec((tk, d_p), lambda i, k: (k, 0))    # streamed fallback (huge N / v7x)

    in_specs = [
        a_spec,
        pl.BlockSpec((tm, 1), lambda i, k: (i, 0)),   # dinv rows (f32)
        pl.BlockSpec((1, tk), lambda i, k: (0, k)),   # dinv cols (f32)
        h_spec,
    ]
    operands = [a_raw, dr, dc, h]
    if w2 is not None:
        in_specs.append(pl.BlockSpec((d_p, d_p), lambda i, k: (0, 0)))   # W2 resident
        operands.append(w2)

    return pl.pallas_call(
        kernel,
        out_shape=jax.ShapeDtypeStruct((n_p, d_p), out_dtype),
        grid_spec=pltpu.PrefetchScalarGridSpec(
            num_scalar_prefetch=0,
            grid=(n_i, n_k),
            in_specs=in_specs,
            out_specs=pl.BlockSpec((tm, d_p), lambda i, k: (i, 0)),
            scratch_shapes=[pltpu.VMEM((tm, d_p), jnp.float32)],
        ),
        compiler_params=pltpu.CompilerParams(
            dimension_semantics=("parallel", "arbitrary"),
            vmem_limit_bytes=_VMEM_LIMIT,
        ),
    )(*operands)


def _fused_small_call(a_raw, dr, dc, x_p, w1_p, w2_p):
    n_p, d_p = x_p.shape
    return pl.pallas_call(
        _fused_small_kernel,
        out_shape=jax.ShapeDtypeStruct((n_p, d_p), jnp.float32),
        compiler_params=pltpu.CompilerParams(vmem_limit_bytes=_VMEM_LIMIT),
    )(a_raw, dr, dc, x_p, w1_p, w2_p)


# ----------------------------- graph preprocessing -----------------------------

def _build_raw_adjacency(edge_index, num_nodes, n_pad):
    """Padded bf16 0/1 adjacency (A[dst, src]) with unit diagonal.

    Scatters straight into the padded bf16 buffer (one N_p x N_p HBM array; no
    intermediate f32 A, no separate normalized copy).  The diagonal is *set* to 1
    (not incremented), matching PyG add_remaining_self_loops: graphs that already
    contain self-loops keep weight 1 instead of getting 2.
    """
    src, dst = edge_index[0], edge_index[1]
    w = jnp.where(src != dst, 1.0, 0.0).astype(jnp.bfloat16)
    a = jnp.zeros((n_pad, n_pad), jnp.bfloat16)
    a = a.at[dst, src].add(w)
    diag = jnp.arange(num_nodes)
    a = a.at[diag, diag].set(1.0)
    return a


def _degree_inv_sqrt(a_raw):
    deg = jnp.sum(a_raw, axis=1, dtype=jnp.float32)     # exact (small-int entries)
    return jnp.where(deg > 0.0, jax.lax.rsqrt(deg), 0.0)


def _pick_row_tile(n_p):
    # Prefer >=256-row tiles (fills the 2x256x256 MXU on v6e/v7x) AND an even,
    # >=2 row-tile count (v7x megacore balance).  n_p is a multiple of 512, so
    # one of these always succeeds for n_p >= 512.
    for tm in (512, 256, 128):
        if n_p % tm == 0 and (n_p // tm) >= 2 and (n_p // tm) % 2 == 0:
            return tm
    for tm in (512, 256, 128):
        if n_p % tm == 0 and (n_p // tm) >= 2:
            return tm
    return n_p


def _pick_k_tile(n_p):
    for tk in (512, 256, 128):
        if n_p % tk == 0:
            return tk
    return n_p


def _fused_path_fits(n_p, d_p):
    needed = (
        2 * n_p * n_p * 2       # raw A + column-scaled bf16 copy
        + 4 * n_p * d_p * 4     # f32 temporaries / output
        + 3 * n_p * d_p * 2     # bf16 temporaries (xw1 / h1 / xw2)
        + 2 * d_p * d_p * 2     # W1 / W2
    )
    return needed <= _FUSED_PATH_BUDGET


# ----------------------------- public forward -----------------------------

@functools.partial(jax.jit, static_argnames=("force_tiled",))
def gcn_encoder(x, edge_index, w1, w2, *, force_tiled=False):
    n, d = x.shape
    n_p = _round_up(n, 512)       # multiple of 512 -> lane-dense tiles, even row-tile count
    d_p = _round_up(d, 128)

    a_raw = _build_raw_adjacency(edge_index, n, n_p)     # (n_p, n_p) bf16
    dinv = _degree_inv_sqrt(a_raw)                       # (n_p,) f32
    dr = dinv[:, None]                                   # row scaling, stays f32
    dc = dinv[None, :]                                   # column scaling, folded into bf16 A

    x_p = jnp.zeros((n_p, d_p), jnp.bfloat16).at[:n, :d].set(x.astype(jnp.bfloat16))
    w1_p = jnp.zeros((d_p, d_p), jnp.bfloat16).at[:d, :d].set(w1.astype(jnp.bfloat16))
    w2_p = jnp.zeros((d_p, d_p), jnp.bfloat16).at[:d, :d].set(w2.astype(jnp.bfloat16))

    if _fused_path_fits(n_p, d_p) and not force_tiled:
        # Small-graph fast path: one pallas_call, zero intermediate HBM round trips.
        out_p = _fused_small_call(a_raw, dr, dc, x_p, w1_p, w2_p)
    else:
        tm = _pick_row_tile(n_p)
        tk = _pick_k_tile(n_p)
        resident_h = _spmm_resident_h_fits(n_p, d_p, tm, tk)

        # Layer 1 + layer 2's weight GEMM, fused:
        #   xw2 = relu(A_hat @ (X @ W1)) @ W2        (dropout == identity in eval mode)
        xw1 = _tiled_xw(x_p, w1_p, tm)
        xw2 = _tiled_spmm(a_raw, dr, dc, xw1, tm, tk, w2=w2_p,
                          apply_relu=True, resident_h=resident_h,
                          out_dtype=jnp.bfloat16)
        # Layer 2 aggregation: out = A_hat @ xw2
        out_p = _tiled_spmm(a_raw, dr, dc, xw2, tm, tk, w2=None,
                            apply_relu=False, resident_h=resident_h,
                            out_dtype=jnp.float32)
    return out_p[:n, :d]


# ----------------------------- references -----------------------------

def _reference_a_hat_parts(edge_index, num_nodes):
    src, dst = edge_index[0], edge_index[1]
    w = jnp.where(src != dst, 1.0, 0.0)
    a = jnp.zeros((num_nodes, num_nodes), jnp.float32).at[dst, src].add(w)
    diag = jnp.arange(num_nodes)
    a = a.at[diag, diag].set(1.0)
    deg = jnp.sum(a, axis=1)
    dinv = jnp.where(deg > 0.0, jax.lax.rsqrt(deg), 0.0)
    return a, dinv


def reference_gcn_encoder_f32(x, edge_index, w1, w2):
    """Pure f32 reference (PyTorch-module semantics, eval mode)."""
    a, dinv = _reference_a_hat_parts(edge_index, x.shape[0])
    a_hat = dinv[:, None] * a * dinv[None, :]
    h1 = jnp.maximum(a_hat @ (x @ w1), 0.0)
    return a_hat @ (h1 @ w2)


def reference_gcn_encoder_matched(x, edge_index, w1, w2):
    """Reference with the exact bf16/f32 mixed-precision recipe used in-kernel."""
    a, dinv = _reference_a_hat_parts(edge_index, x.shape[0])
    ac = (a * dinv[None, :]).astype(jnp.bfloat16)        # column-scaled A, bf16
    dr = dinv[:, None]                                   # row scaling in f32
    xb, w1b, w2b = (t.astype(jnp.bfloat16) for t in (x, w1, w2))
    xw1 = jnp.dot(xb, w1b, preferred_element_type=jnp.float32).astype(jnp.bfloat16)
    h1 = jnp.maximum(dr * jnp.dot(ac, xw1, preferred_element_type=jnp.float32), 0.0)
    xw2 = jnp.dot(h1.astype(jnp.bfloat16), w2b,
                  preferred_element_type=jnp.float32).astype(jnp.bfloat16)
    return dr * jnp.dot(ac, xw2, preferred_element_type=jnp.float32)


# ----------------------------- demo -----------------------------

def _make_inputs(num_nodes, hidden_dim, key):
    kx, k1, k2 = jax.random.split(key, 3)
    x = jax.random.normal(kx, (num_nodes, hidden_dim), dtype=jnp.float32)
    scale = (6.0 / (hidden_dim + hidden_dim)) ** 0.5     # Glorot-uniform, as PyG GCNConv
    w1 = jax.random.uniform(k1, (hidden_dim, hidden_dim), jnp.float32, -scale, scale)
    w2 = jax.random.uniform(k2, (hidden_dim, hidden_dim), jnp.float32, -scale, scale)
    # Deterministic bidirectional ring graph.
    srcs = jnp.arange(num_nodes, dtype=jnp.int32)
    dsts = (srcs + 1) % num_nodes
    edge_index = jnp.stack(
        [jnp.concatenate([srcs, dsts]), jnp.concatenate([dsts, srcs])], axis=0)
    return x, edge_index, w1, w2


if __name__ == "__main__":
    hidden_dim = 256                      # module default
    k_a, k_b = jax.random.split(jax.random.PRNGKey(0))

    # Case A: small graph -> single fused pallas_call (everything VMEM-resident).
    xa, ea, w1a, w2a = _make_inputs(300, hidden_dim, k_a)
    out_a = jax.block_until_ready(gcn_encoder(xa, ea, w1a, w2a))
    assert out_a.shape == (300, hidden_dim)
    assert jnp.allclose(out_a, reference_gcn_encoder_matched(xa, ea, w1a, w2a),
                        atol=2e-3, rtol=2e-3), "fused path mismatch vs matched reference"
    assert jnp.allclose(out_a, reference_gcn_encoder_f32(xa, ea, w1a, w2a),
                        atol=5e-2, rtol=5e-2), "fused path drifted vs f32 reference"

    # Case B: force the tiled path (row-parallel SpMM, resident H, fused W2 epilogue),
    # sized so the k-accumulation loop runs >1 step (n_p=1024, tm=512, tk=512).
    xb, eb, w1b, w2b = _make_inputs(700, hidden_dim, k_b)
    out_b = jax.block_until_ready(gcn_encoder(xb, eb, w1b, w2b, force_tiled=True))
    assert out_b.shape == (700, hidden_dim)
    assert jnp.allclose(out_b, reference_gcn_encoder_matched(xb, eb, w1b, w2b),
                        atol=2e-3, rtol=2e-3), "tiled path mismatch vs matched reference"
    assert jnp.allclose(out_b, reference_gcn_encoder_f32(xb, eb, w1b, w2b),
                        atol=5e-2, rtol=5e-2), "tiled path drifted vs f32 reference"

    print("KERNEL_OK")
</pallas_src>

<mosaic_0001>
module attributes {stable_mosaic.version = 11 : i64} {
  func.func @_fused_small_kernel(%arg0: memref<512x512xbf16, #tpu.memory_space<vmem>>, %arg1: memref<512x1xf32, #tpu.memory_space<vmem>>, %arg2: memref<1x512xf32, #tpu.memory_space<vmem>>, %arg3: memref<512x256xbf16, #tpu.memory_space<vmem>>, %arg4: memref<256x256xbf16, #tpu.memory_space<vmem>>, %arg5: memref<256x256xbf16, #tpu.memory_space<vmem>>, %arg6: memref<512x256xf32, #tpu.memory_space<vmem>>) attributes {dimension_semantics = [], scalar_prefetch = 0 : i64, scratch_operands = 0 : i64, tpu.core_type = #tpu.core_type<tc>} {
    %c0 = arith.constant 0 : index
    %c0_0 = arith.constant 0 : index
    %0 = vector.load %arg0[%c0, %c0_0] : memref<512x512xbf16, #tpu.memory_space<vmem>>, vector<512x512xbf16>
    %1 = arith.extf %0 : vector<512x512xbf16> to vector<512x512xf32>
    %c0_1 = arith.constant 0 : index
    %c0_2 = arith.constant 0 : index
    %2 = vector.load %arg2[%c0_1, %c0_2] : memref<1x512xf32, #tpu.memory_space<vmem>>, vector<1x512xf32>
    %3 = vector.broadcast %2 : vector<1x512xf32> to vector<512x512xf32>
    %4 = arith.mulf %1, %3 : vector<512x512xf32>
    %5 = arith.truncf %4 : vector<512x512xf32> to vector<512x512xbf16>
    %c0_3 = arith.constant 0 : index
    %c0_4 = arith.constant 0 : index
    %6 = vector.load %arg1[%c0_3, %c0_4] : memref<512x1xf32, #tpu.memory_space<vmem>>, vector<512x1xf32>
    %c0_5 = arith.constant 0 : index
    %c0_6 = arith.constant 0 : index
    %7 = vector.load %arg3[%c0_5, %c0_6] : memref<512x256xbf16, #tpu.memory_space<vmem>>, vector<512x256xbf16>
    %c0_7 = arith.constant 0 : index
    %c0_8 = arith.constant 0 : index
    %8 = vector.load %arg4[%c0_7, %c0_8] : memref<256x256xbf16, #tpu.memory_space<vmem>>, vector<256x256xbf16>
    %cst = arith.constant dense<0.000000e+00> : vector<512x256xf32>
    %9 = tpu.matmul %7, %8, %cst {dimension_numbers = #tpu.dot_dimension_numbers<[1], [0], [0], [1], [0, 0, 1, 1], [], []>} : vector<512x256xbf16>, vector<256x256xbf16>, vector<512x256xf32> -> vector<512x256xf32>
    %10 = arith.truncf %9 : vector<512x256xf32> to vector<512x256xbf16>
    %cst_9 = arith.constant dense<0.000000e+00> : vector<512x256xf32>
    %11 = tpu.matmul %5, %10, %cst_9 {dimension_numbers = #tpu.dot_dimension_numbers<[1], [0], [0], [1], [0, 0, 1, 1], [], []>} : vector<512x512xbf16>, vector<512x256xbf16>, vector<512x256xf32> -> vector<512x256xf32>
    %12 = vector.broadcast %6 : vector<512x1xf32> to vector<512x256xf32>
    %13 = arith.mulf %12, %11 : vector<512x256xf32>
    %cst_10 = arith.constant 0.000000e+00 : f32
    %14 = vector.broadcast %cst_10 : f32 to vector<512x256xf32>
    %15 = arith.maximumf %13, %14 : vector<512x256xf32>
    %16 = arith.truncf %15 : vector<512x256xf32> to vector<512x256xbf16>
    %c0_11 = arith.constant 0 : index
    %c0_12 = arith.constant 0 : index
    %17 = vector.load %arg5[%c0_11, %c0_12] : memref<256x256xbf16, #tpu.memory_space<vmem>>, vector<256x256xbf16>
    %cst_13 = arith.constant dense<0.000000e+00> : vector<512x256xf32>
    %18 = tpu.matmul %16, %17, %cst_13 {dimension_numbers = #tpu.dot_dimension_numbers<[1], [0], [0], [1], [0, 0, 1, 1], [], []>} : vector<512x256xbf16>, vector<256x256xbf16>, vector<512x256xf32> -> vector<512x256xf32>
    %19 = arith.truncf %18 : vector<512x256xf32> to vector<512x256xbf16>
    %cst_14 = arith.constant dense<0.000000e+00> : vector<512x256xf32>
    %20 = tpu.matmul %5, %19, %cst_14 {dimension_numbers = #tpu.dot_dimension_numbers<[1], [0], [0], [1], [0, 0, 1, 1], [], []>} : vector<512x512xbf16>, vector<512x256xbf16>, vector<512x256xf32> -> vector<512x256xf32>
    %21 = vector.broadcast %6 : vector<512x1xf32> to vector<512x256xf32>
    %22 = arith.mulf %21, %20 : vector<512x256xf32>
    %c0_15 = arith.constant 0 : index
    %c0_16 = arith.constant 0 : index
    %23 = vector.load %arg6[%c0_15, %c0_16] : memref<512x256xf32, #tpu.memory_space<vmem>>, vector<512x256xf32>
    tpu.vector_store %arg6[%c0_15, %c0_16], %22 {strides = array<i32>} : memref<512x256xf32, #tpu.memory_space<vmem>>, vector<512x256xf32>,
    return
  }
}

</mosaic_0001>

<llo_original>
// kernel: gcn_encoder.1
$region0: #{gcn_encoder.1}
  #allocation0 [shape = 'u32[]', space=smem, size = 0x4, offset = 0x4, fixed_abs, tag = 'smem constant byte address 0x4 - core index']
  #allocation1 [shape = 'u32[144,128]{1,0:T(1,128)}', space=vmem, size = 0x12000, scoped, tag = 'internal scratch']
  %s0 = inlined_call_operand.vmem [shape: bf16[512,512], index: 0, kind: input, shape index: {}]
  %s1 = inlined_call_operand.vmem [shape: f32[512,1], index: 1, kind: input, shape index: {}]
  %s2 = inlined_call_operand.vmem [shape: f32[1,512], index: 2, kind: input, shape index: {}]
  %s3 = inlined_call_operand.vmem [shape: bf16[512,256], index: 3, kind: input, shape index: {}]
  %s4 = inlined_call_operand.vmem [shape: bf16[256,256], index: 4, kind: input, shape index: {}]
  %s5 = inlined_call_operand.vmem [shape: bf16[256,256], index: 5, kind: input, shape index: {}]
  %s6 = inlined_call_operand.vmem [shape: f32[512,256], index: 6, kind: output, shape index: {}]
  %s7 = sld [smem:[#allocation0]]
  $region34: #{gcn_encoder.1} parent=0
    _
  %s9 = ssub.s32 1, %s7
  %s10 = scalar_select 0, %s9, %s7
  // Predicated region
  $region2: #{gcn_encoder.1} parent=0 // pred_check
    _
  $region3: #{gcn_encoder.1} parent=0 // pred_check_branch
    %12 = sbr.rel (0) target = $region5
  $region4: #{gcn_encoder.1} parent=0 // pred_region
    _
  $region5: #{gcn_encoder.1} parent=0 // pred_fallthru
    _
  // Predicated region
  $region6: #{gcn_encoder.1} parent=0 // pred_check
    _
  $region7: #{gcn_encoder.1} parent=0 // pred_check_branch
    %14 = sbr.rel (0) target = $region9
  $region8: #{gcn_encoder.1} parent=0 // pred_region
    _
  $region9: #{gcn_encoder.1} parent=0 // pred_fallthru
    _
  // Predicated region
  $region10: #{gcn_encoder.1} parent=0 // pred_check
    _
  $region11: #{gcn_encoder.1} parent=0 // pred_check_branch
    %16 = sbr.rel (0) target = $region13
  $region12: #{gcn_encoder.1} parent=0 // pred_region
    _
  $region13: #{gcn_encoder.1} parent=0 // pred_fallthru
    _
  // Predicated region
  $region14: #{gcn_encoder.1} parent=0 // pred_check
    _
  $region15: #{gcn_encoder.1} parent=0 // pred_check_branch
    %18 = sbr.rel (0) target = $region17
  $region16: #{gcn_encoder.1} parent=0 // pred_region
    _
  $region17: #{gcn_encoder.1} parent=0 // pred_fallthru
    _
  // Predicated region
  $region18: #{gcn_encoder.1} parent=0 // pred_check
    _
  $region19: #{gcn_encoder.1} parent=0 // pred_check_branch
    %20 = sbr.rel (0) target = $region21
  $region20: #{gcn_encoder.1} parent=0 // pred_region
    _
  $region21: #{gcn_encoder.1} parent=0 // pred_fallthru
    _
  // Predicated region
  $region22: #{gcn_encoder.1} parent=0 // pred_check
    _
  $region23: #{gcn_encoder.1} parent=0 // pred_check_branch
    %22 = sbr.rel (0) target = $region25
  $region24: #{gcn_encoder.1} parent=0 // pred_region
    _
  $region25: #{gcn_encoder.1} parent=0 // pred_fallthru
    _
  %v23 = vld [vmem:[%s0] sm:$0xff]
  %v24 = vld [vmem:[%s0 + $0x8] sm:$0xff]
  %v25 = vld [vmem:[%s0 + $0x10] sm:$0xff]
  %v26 = vld [vmem:[%s0 + $0x18] sm:$0xff]
  %v27 = vld [vmem:[%s0 + $0x20] sm:$0xff]
  %v28 = vld [vmem:[%s0 + $0x28] sm:$0xff]
  %v29 = vld [vmem:[%s0 + $0x30] sm:$0xff]
  %v30 = vld [vmem:[%s0 + $0x38] sm:$0xff]
  %v31 = vld [vmem:[%s0 + $0x40] sm:$0xff]
  %v32 = vld [vmem:[%s0 + $0x48] sm:$0xff]
  %v33 = vld [vmem:[%s0 + $0x50] sm:$0xff]
  %v34 = vld [vmem:[%s0 + $0x58] sm:$0xff]
  %v35 = vld [vmem:[%s0 + $0x60] sm:$0xff]
  %v36 = vld [vmem:[%s0 + $0x68] sm:$0xff]
  %v37 = vld [vmem:[%s0 + $0x70] sm:$0xff]
  %v38 = vld [vmem:[%s0 + $0x78] sm:$0xff]
  %v39 = vld [vmem:[%s0 + $0x80] sm:$0xff]
  %v40 = vld [vmem:[%s0 + $0x88] sm:$0xff]
  %v41 = vld [vmem:[%s0 + $0x90] sm:$0xff]
  %v42 = vld [vmem:[%s0 + $0x98] sm:$0xff]
  %v43 = vld [vmem:[%s0 + $0xa0] sm:$0xff]
  %v44 = vld [vmem:[%s0 + $0xa8] sm:$0xff]
  %v45 = vld [vmem:[%s0 + $0xb0] sm:$0xff]
  %v46 = vld [vmem:[%s0 + $0xb8] sm:$0xff]
  %v47 = vld [vmem:[%s0 + $0xc0] sm:$0xff]
  %v48 = vld [vmem:[%s0 + $0xc8] sm:$0xff]
  %v49 = vld [vmem:[%s0 + $0xd0] sm:$0xff]
  %v50 = vld [vmem:[%s0 + $0xd8] sm:$0xff]
  %v51 = vld [vmem:[%s0 + $0xe0] sm:$0xff]
  %v52 = vld [vmem:[%s0 + $0xe8] sm:$0xff]
  %v53 = vld [vmem:[%s0 + $0xf0] sm:$0xff]
  %v54 = vld [vmem:[%s0 + $0xf8] sm:$0xff]
  %v55 = vld [vmem:[%s0 + $0x100] sm:$0xff]
  %v56 = vld [vmem:[%s0 + $0x108] sm:$0xff]
  %v57 = vld [vmem:[%s0 + $0x110] sm:$0xff]
  %v58 = vld [vmem:[%s0 + $0x118] sm:$0xff]
  %v59 = vld [vmem:[%s0 + $0x120] sm:$0xff]
  %v60 = vld [vmem:[%s0 + $0x128] sm:$0xff]
  %v61 = vld [vmem:[%s0 + $0x130] sm:$0xff]
  %v62 = vld [vmem:[%s0 + $0x138] sm:$0xff]
  %v63 = vld [vmem:[%s0 + $0x140] sm:$0xff]
  %v64 = vld [vmem:[%s0 + $0x148] sm:$0xff]
  %v65 = vld [vmem:[%s0 + $0x150] sm:$0xff]
  %v66 = vld [vmem:[%s0 + $0x158] sm:$0xff]
  %v67 = vld [vmem:[%s0 + $0x160] sm:$0xff]
  %v68 = vld [vmem:[%s0 + $0x168] sm:$0xff]
  %v69 = vld [vmem:[%s0 + $0x170] sm:$0xff]
  %v70 = vld [vmem:[%s0 + $0x178] sm:$0xff]
  %v71 = vld [vmem:[%s0 + $0x180] sm:$0xff]
  %v72 = vld [vmem:[%s0 + $0x188] sm:$0xff]
  %v73 = vld [vmem:[%s0 + $0x190] sm:$0xff]
  %v74 = vld [vmem:[%s0 + $0x198] sm:$0xff]
  %v75 = vld [vmem:[%s0 + $0x1a0] sm:$0xff]
  %v76 = vld [vmem:[%s0 + $0x1a8] sm:$0xff]
  %v77 = vld [vmem:[%s0 + $0x1b0] sm:$0xff]
  %v78 = vld [vmem:[%s0 + $0x1b8] sm:$0xff]
  %v79 = vld [vmem:[%s0 + $0x1c0] sm:$0xff]
  %v80 = vld [vmem:[%s0 + $0x1c8] sm:$0xff]
  %v81 = vld [vmem:[%s0 + $0x1d0] sm:$0xff]
  %v82 = vld [vmem:[%s0 + $0x1d8] sm:$0xff]
  %v83 = vld [vmem:[%s0 + $0x1e0] sm:$0xff]
  %v84 = vld [vmem:[%s0 + $0x1e8] sm:$0xff]
  %v85 = vld [vmem:[%s0 + $0x1f0] sm:$0xff]
  %v86 = vld [vmem:[%s0 + $0x1f8] sm:$0xff]
  %v87 = vld [vmem:[%s0 + $0x200] sm:$0xff]
  %v88 = vld [vmem:[%s0 + $0x208] sm:$0xff]
  %v89 = vld [vmem:[%s0 + $0x210] sm:$0xff]
  %v90 = vld [vmem:[%s0 + $0x218] sm:$0xff]
  %v91 = vld [vmem:[%s0 + $0x220] sm:$0xff]
  %v92 = vld [vmem:[%s0 + $0x228] sm:$0xff]
  %v93 = vld [vmem:[%s0 + $0x230] sm:$0xff]
  %v94 = vld [vmem:[%s0 + $0x238] sm:$0xff]
  %v95 = vld [vmem:[%s0 + $0x240] sm:$0xff]
  %v96 = vld [vmem:[%s0 + $0x248] sm:$0xff]
  %v97 = vld [vmem:[%s0 + $0x250] sm:$0xff]
  %v98 = vld [vmem:[%s0 + $0x258] sm:$0xff]
  %v99 = vld [vmem:[%s0 + $0x260] sm:$0xff]
  %v100 = vld [vmem:[%s0 + $0x268] sm:$0xff]
  %v101 = vld [vmem:[%s0 + $0x270] sm:$0xff]
  %v102 = vld [vmem:[%s0 + $0x278] sm:$0xff]
  %v103 = vld [vmem:[%s0 + $0x280] sm:$0xff]
  %v104 = vld [vmem:[%s0 + $0x288] sm:$0xff]
  %v105 = vld [vmem:[%s0 + $0x290] sm:$0xff]
  %v106 = vld [vmem:[%s0 + $0x298] sm:$0xff]
  %v107 = vld [vmem:[%s0 + $0x2a0] sm:$0xff]
  %v108 = vld [vmem:[%s0 + $0x2a8] sm:$0xff]
  %v109 = vld [vmem:[%s0 + $0x2b0] sm:$0xff]
  %v110 = vld [vmem:[%s0 + $0x2b8] sm:$0xff]
  %v111 = vld [vmem:[%s0 + $0x2c0] sm:$0xff]
  %v112 = vld [vmem:[%s0 + $0x2c8] sm:$0xff]
  %v113 = vld [vmem:[%s0 + $0x2d0] sm:$0xff]
  %v114 = vld [vmem:[%s0 + $0x2d8] sm:$0xff]
  %v115 = vld [vmem:[%s0 + $0x2e0] sm:$0xff]
  %v116 = vld [vmem:[%s0 + $0x2e8] sm:$0xff]
  %v117 = vld [vmem:[%s0 + $0x2f0] sm:$0xff]
  %v118 = vld [vmem:[%s0 + $0x2f8] sm:$0xff]
  %v119 = vld [vmem:[%s0 + $0x300] sm:$0xff]
  %v120 = vld [vmem:[%s0 + $0x308] sm:$0xff]
  %v121 = vld [vmem:[%s0 + $0x310] sm:$0xff]
  %v122 = vld [vmem:[%s0 + $0x318] sm:$0xff]
  %v123 = vld [vmem:[%s0 + $0x320] sm:$0xff]
  %v124 = vld [vmem:[%s0 + $0x328] sm:$0xff]
  %v125 = vld [vmem:[%s0 + $0x330] sm:$0xff]
  %v126 = vld [vmem:[%s0 + $0x338] sm:$0xff]
  %v127 = vld [vmem:[%s0 + $0x340] sm:$0xff]
  %v128 = vld [vmem:[%s0 + $0x348] sm:$0xff]
  %v129 = vld [vmem:[%s0 + $0x350] sm:$0xff]
  %v130 = vld [vmem:[%s0 + $0x358] sm:$0xff]
  %v131 = vld [vmem:[%s0 + $0x360] sm:$0xff]
  %v132 = vld [vmem:[%s0 + $0x368] sm:$0xff]
  %v133 = vld [vmem:[%s0 + $0x370] sm:$0xff]
  %v134 = vld [vmem:[%s0 + $0x378] sm:$0xff]
  %v135 = vld [vmem:[%s0 + $0x380] sm:$0xff]
  %v136 = vld [vmem:[%s0 + $0x388] sm:$0xff]
  %v137 = vld [vmem:[%s0 + $0x390] sm:$0xff]
  %v138 = vld [vmem:[%s0 + $0x398] sm:$0xff]
  %v139 = vld [vmem:[%s0 + $0x3a0] sm:$0xff]
  %v140 = vld [vmem:[%s0 + $0x3a8] sm:$0xff]
  %v141 = vld [vmem:[%s0 + $0x3b0] sm:$0xff]
  %v142 = vld [vmem:[%s0 + $0x3b8] sm:$0xff]
  %v143 = vld [vmem:[%s0 + $0x3c0] sm:$0xff]
  %v144 = vld [vmem:[%s0 + $0x3c8] sm:$0xff]
  %v145 = vld [vmem:[%s0 + $0x3d0] sm:$0xff]
  %v146 = vld [vmem:[%s0 + $0x3d8] sm:$0xff]
  %v147 = vld [vmem:[%s0 + $0x3e0] sm:$0xff]
  %v148 = vld [vmem:[%s0 + $0x3e8] sm:$0xff]
  %v149 = vld [vmem:[%s0 + $0x3f0] sm:$0xff]
  %v150 = vld [vmem:[%s0 + $0x3f8] sm:$0xff]
  %v151 = vunpack.c.l.bf16 %v23
  %v152 = vunpack.c.h.bf16 %v23
  %v153 = vunpack.c.l.bf16 %v24
  %v154 = vunpack.c.h.bf16 %v24
  %v155 = vunpack.c.l.bf16 %v25
  %v156 = vunpack.c.h.bf16 %v25
  %v157 = vunpack.c.l.bf16 %v26
  %v158 = vunpack.c.h.bf16 %v26
  %v159 = vunpack.c.l.bf16 %v27
  %v160 = vunpack.c.h.bf16 %v27
  %v161 = vunpack.c.l.bf16 %v28
  %v162 = vunpack.c.h.bf16 %v28
  %v163 = vunpack.c.l.bf16 %v29
  %v164 = vunpack.c.h.bf16 %v29
  %v165 = vunpack.c.l.bf16 %v30
  %v166 = vunpack.c.h.bf16 %v30
  %v167 = vunpack.c.l.bf16 %v31
  %v168 = vunpack.c.h.bf16 %v31
  %v169 = vunpack.c.l.bf16 %v32
  %v170 = vunpack.c.h.bf16 %v32
  %v171 = vunpack.c.l.bf16 %v33
  %v172 = vunpack.c.h.bf16 %v33
  %v173 = vunpack.c.l.bf16 %v34
  %v174 = vunpack.c.h.bf16 %v34
  %v175 = vunpack.c.l.bf16 %v35
  %v176 = vunpack.c.h.bf16 %v35
  %v177 = vunpack.c.l.bf16 %v36
  %v178 = vunpack.c.h.bf16 %v36
  %v179 = vunpack.c.l.bf16 %v37
  %v180 = vunpack.c.h.bf16 %v37
  %v181 = vunpack.c.l.bf16 %v38
  %v182 = vunpack.c.h.bf16 %v38
  %v183 = vunpack.c.l.bf16 %v39
  %v184 = vunpack.c.h.bf16 %v39
  %v185 = vunpack.c.l.bf16 %v40
  %v186 = vunpack.c.h.bf16 %v40
  %v187 = vunpack.c.l.bf16 %v41
  %v188 = vunpack.c.h.bf16 %v41
  %v189 = vunpack.c.l.bf16 %v42
  %v190 = vunpack.c.h.bf16 %v42
  %v191 = vunpack.c.l.bf16 %v43
  %v192 = vunpack.c.h.bf16 %v43
  %v193 = vunpack.c.l.bf16 %v44
  %v194 = vunpack.c.h.bf16 %v44
  %v195 = vunpack.c.l.bf16 %v45
  %v196 = vunpack.c.h.bf16 %v45
  %v197 = vunpack.c.l.bf16 %v46
  %v198 = vunpack.c.h.bf16 %v46
  %v199 = vunpack.c.l.bf16 %v47
  %v200 = vunpack.c.h.bf16 %v47
  %v201 = vunpack.c.l.bf16 %v48
  %v202 = vunpack.c.h.bf16 %v48
  %v203 = vunpack.c.l.bf16 %v49
  %v204 = vunpack.c.h.bf16 %v49
  %v205 = vunpack.c.l.bf16 %v50
  %v206 = vunpack.c.h.bf16 %v50
  %v207 = vunpack.c.l.bf16 %v51
  %v208 = vunpack.c.h.bf16 %v51
  %v209 = vunpack.c.l.bf16 %v52
  %v210 = vunpack.c.h.bf16 %v52
  %v211 = vunpack.c.l.bf16 %v53
  %v212 = vunpack.c.h.bf16 %v53
  %v213 = vunpack.c.l.bf16 %v54
  %v214 = vunpack.c.h.bf16 %v54
  %v215 = vunpack.c.l.bf16 %v55
  %v216 = vunpack.c.h.bf16 %v55
  %v217 = vunpack.c.l.bf16 %v56
  %v218 = vunpack.c.h.bf16 %v56
  %v219 = vunpack.c.l.bf16 %v57
  %v220 = vunpack.c.h.bf16 %v57
  %v221 = vunpack.c.l.bf16 %v58
  %v222 = vunpack.c.h.bf16 %v58
  %v223 = vunpack.c.l.bf16 %v59
  %v224 = vunpack.c.h.bf16 %v59
  %v225 = vunpack.c.l.bf16 %v60
  %v226 = vunpack.c.h.bf16 %v60
  %v227 = vunpack.c.l.bf16 %v61
  %v228 = vunpack.c.h.bf16 %v61
  %v229 = vunpack.c.l.bf16 %v62
  %v230 = vunpack.c.h.bf16 %v62
  %v231 = vunpack.c.l.bf16 %v63
  %v232 = vunpack.c.h.bf16 %v63
  %v233 = vunpack.c.l.bf16 %v64
  %v234 = vunpack.c.h.bf16 %v64
  %v235 = vunpack.c.l.bf16 %v65
  %v236 = vunpack.c.h.bf16 %v65
  %v237 = vunpack.c.l.bf16 %v66
  %v238 = vunpack.c.h.bf16 %v66
  %v239 = vunpack.c.l.bf16 %v67
  %v240 = vunpack.c.h.bf16 %v67
  %v241 = vunpack.c.l.bf16 %v68
  %v242 = vunpack.c.h.bf16 %v68
  %v243 = vunpack.c.l.bf16 %v69
  %v244 = vunpack.c.h.bf16 %v69
  %v245 = vunpack.c.l.bf16 %v70
  %v246 = vunpack.c.h.bf16 %v70
  %v247 = vunpack.c.l.bf16 %v71
  %v248 = vunpack.c.h.bf16 %v71
  %v249 = vunpack.c.l.bf16 %v72
  %v250 = vunpack.c.h.bf16 %v72
  %v251 = vunpack.c.l.bf16 %v73
  %v252 = vunpack.c.h.bf16 %v73
  %v253 = vunpack.c.l.bf16 %v74
  %v254 = vunpack.c.h.bf16 %v74
  %v255 = vunpack.c.l.bf16 %v75
  %v256 = vunpack.c.h.bf16 %v75
  %v257 = vunpack.c.l.bf16 %v76
  %v258 = vunpack.c.h.bf16 %v76
  %v259 = vunpack.c.l.bf16 %v77
  %v260 = vunpack.c.h.bf16 %v77
  %v261 = vunpack.c.l.bf16 %v78
  %v262 = vunpack.c.h.bf16 %v78
  %v263 = vunpack.c.l.bf16 %v79
  %v264 = vunpack.c.h.bf16 %v79
  %v265 = vunpack.c.l.bf16 %v80
  %v266 = vunpack.c.h.bf16 %v80
  %v267 = vunpack.c.l.bf16 %v81
  %v268 = vunpack.c.h.bf16 %v81
  %v269 = vunpack.c.l.bf16 %v82
  %v270 = vunpack.c.h.bf16 %v82
  %v271 = vunpack.c.l.bf16 %v83
  %v272 = vunpack.c.h.bf16 %v83
  %v273 = vunpack.c.l.bf16 %v84
  %v274 = vunpack.c.h.bf16 %v84
  %v275 = vunpack.c.l.bf16 %v85
  %v276 = vunpack.c.h.bf16 %v85
  %v277 = vunpack.c.l.bf16 %v86
  %v278 = vunpack.c.h.bf16 %v86
  %v279 = vunpack.c.l.bf16 %v87
  %v280 = vunpack.c.h.bf16 %v87
  %v281 = vunpack.c.l.bf16 %v88
  %v282 = vunpack.c.h.bf16 %v88
  %v283 = vunpack.c.l.bf16 %v89
  %v284 = vunpack.c.h.bf16 %v89
  %v285 = vunpack.c.l.bf16 %v90
  %v286 = vunpack.c.h.bf16 %v90
  %v287 = vunpack.c.l.bf16 %v91
  %v288 = vunpack.c.h.bf16 %v91
  %v289 = vunpack.c.l.bf16 %v92
  %v290 = vunpack.c.h.bf16 %v92
  %v291 = vunpack.c.l.bf16 %v93
  %v292 = vunpack.c.h.bf16 %v93
  %v293 = vunpack.c.l.bf16 %v94
  %v294 = vunpack.c.h.bf16 %v94
  %v295 = vunpack.c.l.bf16 %v95
  %v296 = vunpack.c.h.bf16 %v95
  %v297 = vunpack.c.l.bf16 %v96
  %v298 = vunpack.c.h.bf16 %v96
  %v299 = vunpack.c.l.bf16 %v97
  %v300 = vunpack.c.h.bf16 %v97
  %v301 = vunpack.c.l.bf16 %v98
  %v302 = vunpack.c.h.bf16 %v98
  %v303 = vunpack.c.l.bf16 %v99
  %v304 = vunpack.c.h.bf16 %v99
  %v305 = vunpack.c.l.bf16 %v100
  %v306 = vunpack.c.h.bf16 %v100
  %v307 = vunpack.c.l.bf16 %v101
  %v308 = vunpack.c.h.bf16 %v101
  %v309 = vunpack.c.l.bf16 %v102
  %v310 = vunpack.c.h.bf16 %v102
  %v311 = vunpack.c.l.bf16 %v103
  %v312 = vunpack.c.h.bf16 %v103
  %v313 = vunpack.c.l.bf16 %v104
  %v314 = vunpack.c.h.bf16 %v104
  %v315 = vunpack.c.l.bf16 %v105
  %v316 = vunpack.c.h.bf16 %v105
  %v317 = vunpack.c.l.bf16 %v106
  %v318 = vunpack.c.h.bf16 %v106
  %v319 = vunpack.c.l.bf16 %v107
  %v320 = vunpack.c.h.bf16 %v107
  %v321 = vunpack.c.l.bf16 %v108
  %v322 = vunpack.c.h.bf16 %v108
  %v323 = vunpack.c.l.bf16 %v109
  %v324 = vunpack.c.h.bf16 %v109
  %v325 = vunpack.c.l.bf16 %v110
  %v326 = vunpack.c.h.bf16 %v110
  %v327 = vunpack.c.l.bf16 %v111
  %v328 = vunpack.c.h.bf16 %v111
  %v329 = vunpack.c.l.bf16 %v112
  %v330 = vunpack.c.h.bf16 %v112
  %v331 = vunpack.c.l.bf16 %v113
  %v332 = vunpack.c.h.bf16 %v113
  %v333 = vunpack.c.l.bf16 %v114
  %v334 = vunpack.c.h.bf16 %v114
  %v335 = vunpack.c.l.bf16 %v115
  %v336 = vunpack.c.h.bf16 %v115
  %v337 = vunpack.c.l.bf16 %v116
  %v338 = vunpack.c.h.bf16 %v116
  %v339 = vunpack.c.l.bf16 %v117
  %v340 = vunpack.c.h.bf16 %v117
  %v341 = vunpack.c.l.bf16 %v118
  %v342 = vunpack.c.h.bf16 %v118
  %v343 = vunpack.c.l.bf16 %v119
  %v344 = vunpack.c.h.bf16 %v119
  %v345 = vunpack.c.l.bf16 %v120
  %v346 = vunpack.c.h.bf16 %v120
  %v347 = vunpack.c.l.bf16 %v121
  %v348 = vunpack.c.h.bf16 %v121
  %v349 = vunpack.c.l.bf16 %v122
  %v350 = vunpack.c.h.bf16 %v122
  %v351 = vunpack.c.l.bf16 %v123
  %v352 = vunpack.c.h.bf16 %v123
  %v353 = vunpack.c.l.bf16 %v124
  %v354 = vunpack.c.h.bf16 %v124
  %v355 = vunpack.c.l.bf16 %v125
  %v356 = vunpack.c.h.bf16 %v125
  %v357 = vunpack.c.l.bf16 %v126
  %v358 = vunpack.c.h.bf16 %v126
  %v359 = vunpack.c.l.bf16 %v127
  %v360 = vunpack.c.h.bf16 %v127
  %v361 = vunpack.c.l.bf16 %v128
  %v362 = vunpack.c.h.bf16 %v128
  %v363 = vunpack.c.l.bf16 %v129
  %v364 = vunpack.c.h.bf16 %v129
  %v365 = vunpack.c.l.bf16 %v130
  %v366 = vunpack.c.h.bf16 %v130
  %v367 = vunpack.c.l.bf16 %v131
  %v368 = vunpack.c.h.bf16 %v131
  %v369 = vunpack.c.l.bf16 %v132
  %v370 = vunpack.c.h.bf16 %v132
  %v371 = vunpack.c.l.bf16 %v133
  %v372 = vunpack.c.h.bf16 %v133
  %v373 = vunpack.c.l.bf16 %v134
  %v374 = vunpack.c.h.bf16 %v134
  %v375 = vunpack.c.l.bf16 %v135
  %v376 = vunpack.c.h.bf16 %v135
  %v377 = vunpack.c.l.bf16 %v136
  %v378 = vunpack.c.h.bf16 %v136
  %v379 = vunpack.c.l.bf16 %v137
  %v380 = vunpack.c.h.bf16 %v137
  %v381 = vunpack.c.l.bf16 %v138
  %v382 = vunpack.c.h.bf16 %v138
  %v383 = vunpack.c.l.bf16 %v139
  %v384 = vunpack.c.h.bf16 %v139
  %v385 = vunpack.c.l.bf16 %v140
  %v386 = vunpack.c.h.bf16 %v140
  %v387 = vunpack.c.l.bf16 %v141
  %v388 = vunpack.c.h.bf16 %v141
  %v389 = vunpack.c.l.bf16 %v142
  %v390 = vunpack.c.h.bf16 %v142
  %v391 = vunpack.c.l.bf16 %v143
  %v392 = vunpack.c.h.bf16 %v143
  %v393 = vunpack.c.l.bf16 %v144
  %v394 = vunpack.c.h.bf16 %v144
  %v395 = vunpack.c.l.bf16 %v145
  %v396 = vunpack.c.h.bf16 %v145
  %v397 = vunpack.c.l.bf16 %v146
  %v398 = vunpack.c.h.bf16 %v146
  %v399 = vunpack.c.l.bf16 %v147
  %v400 = vunpack.c.h.bf16 %v147
  %v401 = vunpack.c.l.bf16 %v148
  %v402 = vunpack.c.h.bf16 %v148
  %v403 = vunpack.c.l.bf16 %v149
  %v404 = vunpack.c.h.bf16 %v149
  %v405 = vunpack.c.l.bf16 %v150
  %v406 = vunpack.c.h.bf16 %v150
  %v407 = vld [vmem:[%s2] sm:$0xf]
  %v409 = vlaneseq
  %v410 = vshrl.u32 %v409, 7
  %v411 = vsub.s32 0, %v410
  %v412 = vrot.slane %v407, %v411
  %v413 = vlaneseq
  %v414 = vshrl.u32 %v413, 7
  %v415 = vsub.s32 1, %v414
  %v416 = vrot.slane %v407, %v415
  %v417 = vlaneseq
  %v418 = vshrl.u32 %v417, 7
  %v419 = vsub.s32 2, %v418
  %v420 = vrot.slane %v407, %v419
  %v421 = vlaneseq
  %v422 = vshrl.u32 %v421, 7
  %v423 = vsub.s32 3, %v422
  %v424 = vrot.slane %v407, %v423
  %v429 = vmul.f32 %v151, %v412
  %v430 = vmul.f32 %v152, %v416
  %v431 = vmul.f32 %v153, %v420
  %v432 = vmul.f32 %v154, %v424
  %v433 = vmul.f32 %v155, %v412
  %v434 = vmul.f32 %v156, %v416
  %v435 = vmul.f32 %v157, %v420
  %v436 = vmul.f32 %v158, %v424
  %v437 = vmul.f32 %v159, %v412
  %v438 = vmul.f32 %v160, %v416
  %v439 = vmul.f32 %v161, %v420
  %v440 = vmul.f32 %v162, %v424
  %v441 = vmul.f32 %v163, %v412
  %v442 = vmul.f32 %v164, %v416
  %v443 = vmul.f32 %v165, %v420
  %v444 = vmul.f32 %v166, %v424
  %v445 = vmul.f32 %v167, %v412
  %v446 = vmul.f32 %v168, %v416
  %v447 = vmul.f32 %v169, %v420
  %v448 = vmul.f32 %v170, %v424
  %v449 = vmul.f32 %v171, %v412
  %v450 = vmul.f32 %v172, %v416
  %v451 = vmul.f32 %v173, %v420
  %v452 = vmul.f32 %v174, %v424
  %v453 = vmul.f32 %v175, %v412
  %v454 = vmul.f32 %v176, %v416
  %v455 = vmul.f32 %v177, %v420
  %v456 = vmul.f32 %v178, %v424
  %v457 = vmul.f32 %v179, %v412
  %v458 = vmul.f32 %v180, %v416
  %v459 = vmul.f32 %v181, %v420
  %v460 = vmul.f32 %v182, %v424
  %v461 = vmul.f32 %v183, %v412
  %v462 = vmul.f32 %v184, %v416
  %v463 = vmul.f32 %v185, %v420
  %v464 = vmul.f32 %v186, %v424
  %v465 = vmul.f32 %v187, %v412
  %v466 = vmul.f32 %v188, %v416
  %v467 = vmul.f32 %v189, %v420
  %v468 = vmul.f32 %v190, %v424
  %v469 = vmul.f32 %v191, %v412
  %v470 = vmul.f32 %v192, %v416
  %v471 = vmul.f32 %v193, %v420
  %v472 = vmul.f32 %v194, %v424
  %v473 = vmul.f32 %v195, %v412
  %v474 = vmul.f32 %v196, %v416
  %v475 = vmul.f32 %v197, %v420
  %v476 = vmul.f32 %v198, %v424
  %v477 = vmul.f32 %v199, %v412
  %v478 = vmul.f32 %v200, %v416
  %v479 = vmul.f32 %v201, %v420
  %v480 = vmul.f32 %v202, %v424
  %v481 = vmul.f32 %v203, %v412
  %v482 = vmul.f32 %v204, %v416
  %v483 = vmul.f32 %v205, %v420
  %v484 = vmul.f32 %v206, %v424
  %v485 = vmul.f32 %v207, %v412
  %v486 = vmul.f32 %v208, %v416
  %v487 = vmul.f32 %v209, %v420
  %v488 = vmul.f32 %v210, %v424
  %v489 = vmul.f32 %v211, %v412
  %v490 = vmul.f32 %v212, %v416
  %v491 = vmul.f32 %v213, %v420
  %v492 = vmul.f32 %v214, %v424
  %v493 = vmul.f32 %v215, %v412
  %v494 = vmul.f32 %v216, %v416
  %v495 = vmul.f32 %v217, %v420
  %v496 = vmul.f32 %v218, %v424
  %v497 = vmul.f32 %v219, %v412
  %v498 = vmul.f32 %v220, %v416
  %v499 = vmul.f32 %v221, %v420
  %v500 = vmul.f32 %v222, %v424
  %v501 = vmul.f32 %v223, %v412
  %v502 = vmul.f32 %v224, %v416
  %v503 = vmul.f32 %v225, %v420
  %v504 = vmul.f32 %v226, %v424
  %v505 = vmul.f32 %v227, %v412
  %v506 = vmul.f32 %v228, %v416
  %v507 = vmul.f32 %v229, %v420
  %v508 = vmul.f32 %v230, %v424
  %v509 = vmul.f32 %v231, %v412
  %v510 = vmul.f32 %v232, %v416
  %v511 = vmul.f32 %v233, %v420
  %v512 = vmul.f32 %v234, %v424
  %v513 = vmul.f32 %v235, %v412
  %v514 = vmul.f32 %v236, %v416
  %v515 = vmul.f32 %v237, %v420
  %v516 = vmul.f32 %v238, %v424
  %v517 = vmul.f32 %v239, %v412
  %v518 = vmul.f32 %v240, %v416
  %v519 = vmul.f32 %v241, %v420
  %v520 = vmul.f32 %v242, %v424
  %v521 = vmul.f32 %v243, %v412
  %v522 = vmul.f32 %v244, %v416
  %v523 = vmul.f32 %v245, %v420
  %v524 = vmul.f32 %v246, %v424
  %v525 = vmul.f32 %v247, %v412
  %v526 = vmul.f32 %v248, %v416
  %v527 = vmul.f32 %v249, %v420
  %v528 = vmul.f32 %v250, %v424
  %v529 = vmul.f32 %v251, %v412
  %v530 = vmul.f32 %v252, %v416
  %v531 = vmul.f32 %v253, %v420
  %v532 = vmul.f32 %v254, %v424
  %v533 = vmul.f32 %v255, %v412
  %v534 = vmul.f32 %v256, %v416
  %v535 = vmul.f32 %v257, %v420
  %v536 = vmul.f32 %v258, %v424
  %v537 = vmul.f32 %v259, %v412
  %v538 = vmul.f32 %v260, %v416
  %v539 = vmul.f32 %v261, %v420
  %v540 = vmul.f32 %v262, %v424
  %v541 = vmul.f32 %v263, %v412
  %v542 = vmul.f32 %v264, %v416
  %v543 = vmul.f32 %v265, %v420
  %v544 = vmul.f32 %v266, %v424
  %v545 = vmul.f32 %v267, %v412
  %v546 = vmul.f32 %v268, %v416
  %v547 = vmul.f32 %v269, %v420
  %v548 = vmul.f32 %v270, %v424
  %v549 = vmul.f32 %v271, %v412
  %v550 = vmul.f32 %v272, %v416
  %v551 = vmul.f32 %v273, %v420
  %v552 = vmul.f32 %v274, %v424
  %v553 = vmul.f32 %v275, %v412
  %v554 = vmul.f32 %v276, %v416
  %v555 = vmul.f32 %v277, %v420
  %v556 = vmul.f32 %v278, %v424
  %v557 = vmul.f32 %v279, %v412
  %v558 = vmul.f32 %v280, %v416
  %v559 = vmul.f32 %v281, %v420
  %v560 = vmul.f32 %v282, %v424
  %v561 = vmul.f32 %v283, %v412
  %v562 = vmul.f32 %v284, %v416
  %v563 = vmul.f32 %v285, %v420
  %v564 = vmul.f32 %v286, %v424
  %v565 = vmul.f32 %v287, %v412
  %v566 = vmul.f32 %v288, %v416
  %v567 = vmul.f32 %v289, %v420
  %v568 = vmul.f32 %v290, %v424
  %v569 = vmul.f32 %v291, %v412
  %v570 = vmul.f32 %v292, %v416
  %v571 = vmul.f32 %v293, %v420
  %v572 = vmul.f32 %v294, %v424
  %v573 = vmul.f32 %v295, %v412
  %v574 = vmul.f32 %v296, %v416
  %v575 = vmul.f32 %v297, %v420
  %v576 = vmul.f32 %v298, %v424
  %v577 = vmul.f32 %v299, %v412
  %v578 = vmul.f32 %v300, %v416
  %v579 = vmul.f32 %v301, %v420
  %v580 = vmul.f32 %v302, %v424
  %v581 = vmul.f32 %v303, %v412
  %v582 = vmul.f32 %v304, %v416
  %v583 = vmul.f32 %v305, %v420
  %v584 = vmul.f32 %v306, %v424
  %v585 = vmul.f32 %v307, %v412
  %v586 = vmul.f32 %v308, %v416
  %v587 = vmul.f32 %v309, %v420
  %v588 = vmul.f32 %v310, %v424
  %v589 = vmul.f32 %v311, %v412
  %v590 = vmul.f32 %v312, %v416
  %v591 = vmul.f32 %v313, %v420
  %v592 = vmul.f32 %v314, %v424
  %v593 = vmul.f32 %v315, %v412
  %v594 = vmul.f32 %v316, %v416
  %v595 = vmul.f32 %v317, %v420
  %v596 = vmul.f32 %v318, %v424
  %v597 = vmul.f32 %v319, %v412
  %v598 = vmul.f32 %v320, %v416
  %v599 = vmul.f32 %v321, %v420
  %v600 = vmul.f32 %v322, %v424
  %v601 = vmul.f32 %v323, %v412
  %v602 = vmul.f32 %v324, %v416
  %v603 = vmul.f32 %v325, %v420
  %v604 = vmul.f32 %v326, %v424
  %v605 = vmul.f32 %v327, %v412
  %v606 = vmul.f32 %v328, %v416
  %v607 = vmul.f32 %v329, %v420
  %v608 = vmul.f32 %v330, %v424
  %v609 = vmul.f32 %v331, %v412
  %v610 = vmul.f32 %v332, %v416
  %v611 = vmul.f32 %v333, %v420
  %v612 = vmul.f32 %v334, %v424
  %v613 = vmul.f32 %v335, %v412
  %v614 = vmul.f32 %v336, %v416
  %v615 = vmul.f32 %v337, %v420
  %v616 = vmul.f32 %v338, %v424
  %v617 = vmul.f32 %v339, %v412
  %v618 = vmul.f32 %v340, %v416
  %v619 = vmul.f32 %v341, %v420
  %v620 = vmul.f32 %v342, %v424
  %v621 = vmul.f32 %v343, %v412
  %v622 = vmul.f32 %v344, %v416
  %v623 = vmul.f32 %v345, %v420
  %v624 = vmul.f32 %v346, %v424
  %v625 = vmul.f32 %v347, %v412
  %v626 = vmul.f32 %v348, %v416
  %v627 = vmul.f32 %v349, %v420
  %v628 = vmul.f32 %v350, %v424
  %v629 = vmul.f32 %v351, %v412
  %v630 = vmul.f32 %v352, %v416
  %v631 = vmul.f32 %v353, %v420
  %v632 = vmul.f32 %v354, %v424
  %v633 = vmul.f32 %v355, %v412
  %v634 = vmul.f32 %v356, %v416
  %v635 = vmul.f32 %v357, %v420
  %v636 = vmul.f32 %v358, %v424
  %v637 = vmul.f32 %v359, %v412
  %v638 = vmul.f32 %v360, %v416
  %v639 = vmul.f32 %v361, %v420
  %v640 = vmul.f32 %v362, %v424
  %v641 = vmul.f32 %v363, %v412
  %v642 = vmul.f32 %v364, %v416
  %v643 = vmul.f32 %v365, %v420
  %v644 = vmul.f32 %v366, %v424
  %v645 = vmul.f32 %v367, %v412
  %v646 = vmul.f32 %v368, %v416
  %v647 = vmul.f32 %v369, %v420
  %v648 = vmul.f32 %v370, %v424
  %v649 = vmul.f32 %v371, %v412
  %v650 = vmul.f32 %v372, %v416
  %v651 = vmul.f32 %v373, %v420
  %v652 = vmul.f32 %v374, %v424
  %v653 = vmul.f32 %v375, %v412
  %v654 = vmul.f32 %v376, %v416
  %v655 = vmul.f32 %v377, %v420
  %v656 = vmul.f32 %v378, %v424
  %v657 = vmul.f32 %v379, %v412
  %v658 = vmul.f32 %v380, %v416
  %v659 = vmul.f32 %v381, %v420
  %v660 = vmul.f32 %v382, %v424
  %v661 = vmul.f32 %v383, %v412
  %v662 = vmul.f32 %v384, %v416
  %v663 = vmul.f32 %v385, %v420
  %v664 = vmul.f32 %v386, %v424
  %v665 = vmul.f32 %v387, %v412
  %v666 = vmul.f32 %v388, %v416
  %v667 = vmul.f32 %v389, %v420
  %v668 = vmul.f32 %v390, %v424
  %v669 = vmul.f32 %v391, %v412
  %v670 = vmul.f32 %v392, %v416
  %v671 = vmul.f32 %v393, %v420
  %v672 = vmul.f32 %v394, %v424
  %v673 = vmul.f32 %v395, %v412
  %v674 = vmul.f32 %v396, %v416
  %v675 = vmul.f32 %v397, %v420
  %v676 = vmul.f32 %v398, %v424
  %v677 = vmul.f32 %v399, %v412
  %v678 = vmul.f32 %v400, %v416
  %v679 = vmul.f32 %v401, %v420
  %v680 = vmul.f32 %v402, %v424
  %v681 = vmul.f32 %v403, %v412
  %v682 = vmul.f32 %v404, %v416
  %v683 = vmul.f32 %v405, %v420
  %v684 = vmul.f32 %v406, %v424
  %v685 = vpack.c.bf16 %v433, %v429
  %v686 = vpack.c.bf16 %v434, %v430
  %v687 = vpack.c.bf16 %v435, %v431
  %v688 = vpack.c.bf16 %v436, %v432
  %v689 = vpack.c.bf16 %v441, %v437
  %v690 = vpack.c.bf16 %v442, %v438
  %v691 = vpack.c.bf16 %v443, %v439
  %v692 = vpack.c.bf16 %v444, %v440
  %v693 = vpack.c.bf16 %v449, %v445
  %v694 = vpack.c.bf16 %v450, %v446
  %v695 = vpack.c.bf16 %v451, %v447
  %v696 = vpack.c.bf16 %v452, %v448
  %v697 = vpack.c.bf16 %v457, %v453
  %v698 = vpack.c.bf16 %v458, %v454
  %v699 = vpack.c.bf16 %v459, %v455
  %v700 = vpack.c.bf16 %v460, %v456
  %v701 = vpack.c.bf16 %v465, %v461
  %v702 = vpack.c.bf16 %v466, %v462
  %v703 = vpack.c.bf16 %v467, %v463
  %v704 = vpack.c.bf16 %v468, %v464
  %v705 = vpack.c.bf16 %v473, %v469
  %v706 = vpack.c.bf16 %v474, %v470
  %v707 = vpack.c.bf16 %v475, %v471
  %v708 = vpack.c.bf16 %v476, %v472
  %v709 = vpack.c.bf16 %v481, %v477
  %v710 = vpack.c.bf16 %v482, %v478
  %v711 = vpack.c.bf16 %v483, %v479
  %v712 = vpack.c.bf16 %v484, %v480
  %v713 = vpack.c.bf16 %v489, %v485
  %v714 = vpack.c.bf16 %v490, %v486
  %v715 = vpack.c.bf16 %v491, %v487
  %v716 = vpack.c.bf16 %v492, %v488
  %v717 = vpack.c.bf16 %v497, %v493
  %v718 = vpack.c.bf16 %v498, %v494
  %v719 = vpack.c.bf16 %v499, %v495
  %v720 = vpack.c.bf16 %v500, %v496
  %v721 = vpack.c.bf16 %v505, %v501
  %v722 = vpack.c.bf16 %v506, %v502
  %v723 = vpack.c.bf16 %v507, %v503
  %v724 = vpack.c.bf16 %v508, %v504
  %v725 = vpack.c.bf16 %v513, %v509
  %v726 = vpack.c.bf16 %v514, %v510
  %v727 = vpack.c.bf16 %v515, %v511
  %v728 = vpack.c.bf16 %v516, %v512
  %v729 = vpack.c.bf16 %v521, %v517
  %v730 = vpack.c.bf16 %v522, %v518
  %v731 = vpack.c.bf16 %v523, %v519
  %v732 = vpack.c.bf16 %v524, %v520
  %v733 = vpack.c.bf16 %v529, %v525
  %v734 = vpack.c.bf16 %v530, %v526
  %v735 = vpack.c.bf16 %v531, %v527
  %v736 = vpack.c.bf16 %v532, %v528
  %v737 = vpack.c.bf16 %v537, %v533
  %v738 = vpack.c.bf16 %v538, %v534
  %v739 = vpack.c.bf16 %v539, %v535
  %v740 = vpack.c.bf16 %v540, %v536
  %v741 = vpack.c.bf16 %v545, %v541
  %v742 = vpack.c.bf16 %v546, %v542
  %v743 = vpack.c.bf16 %v547, %v543
  %v744 = vpack.c.bf16 %v548, %v544
  %v745 = vpack.c.bf16 %v553, %v549
  %v746 = vpack.c.bf16 %v554, %v550
  %v747 = vpack.c.bf16 %v555, %v551
  %v748 = vpack.c.bf16 %v556, %v552
  %v749 = vpack.c.bf16 %v561, %v557
  %v750 = vpack.c.bf16 %v562, %v558
  %v751 = vpack.c.bf16 %v563, %v559
  %v752 = vpack.c.bf16 %v564, %v560
  %v753 = vpack.c.bf16 %v569, %v565
  %v754 = vpack.c.bf16 %v570, %v566
  %v755 = vpack.c.bf16 %v571, %v567
  %v756 = vpack.c.bf16 %v572, %v568
  %v757 = vpack.c.bf16 %v577, %v573
  %v758 = vpack.c.bf16 %v578, %v574
  %v759 = vpack.c.bf16 %v579, %v575
  %v760 = vpack.c.bf16 %v580, %v576
  %v761 = vpack.c.bf16 %v585, %v581
  %v762 = vpack.c.bf16 %v586, %v582
  %v763 = vpack.c.bf16 %v587, %v583
  %v764 = vpack.c.bf16 %v588, %v584
  %v765 = vpack.c.bf16 %v593, %v589
  %v766 = vpack.c.bf16 %v594, %v590
  %v767 = vpack.c.bf16 %v595, %v591
  %v768 = vpack.c.bf16 %v596, %v592
  %v769 = vpack.c.bf16 %v601, %v597
  %v770 = vpack.c.bf16 %v602, %v598
  %v771 = vpack.c.bf16 %v603, %v599
  %v772 = vpack.c.bf16 %v604, %v600
  %v773 = vpack.c.bf16 %v609, %v605
  %v774 = vpack.c.bf16 %v610, %v606
  %v775 = vpack.c.bf16 %v611, %v607
  %v776 = vpack.c.bf16 %v612, %v608
  %v777 = vpack.c.bf16 %v617, %v613
  %v778 = vpack.c.bf16 %v618, %v614
  %v779 = vpack.c.bf16 %v619, %v615
  %v780 = vpack.c.bf16 %v620, %v616
  %v781 = vpack.c.bf16 %v625, %v621
  %v782 = vpack.c.bf16 %v626, %v622
  %v783 = vpack.c.bf16 %v627, %v623
  %v784 = vpack.c.bf16 %v628, %v624
  %v785 = vpack.c.bf16 %v633, %v629
  %v786 = vpack.c.bf16 %v634, %v630
  %v787 = vpack.c.bf16 %v635, %v631
  %v788 = vpack.c.bf16 %v636, %v632
  %v789 = vpack.c.bf16 %v641, %v637
  %v790 = vpack.c.bf16 %v642, %v638
  %v791 = vpack.c.bf16 %v643, %v639
  %v792 = vpack.c.bf16 %v644, %v640
  %v793 = vpack.c.bf16 %v649, %v645
  %v794 = vpack.c.bf16 %v650, %v646
  %v795 = vpack.c.bf16 %v651, %v647
  %v796 = vpack.c.bf16 %v652, %v648
  %v797 = vpack.c.bf16 %v657, %v653
  %v798 = vpack.c.bf16 %v658, %v654
  %v799 = vpack.c.bf16 %v659, %v655
  %v800 = vpack.c.bf16 %v660, %v656
  %v801 = vpack.c.bf16 %v665, %v661
  %v802 = vpack.c.bf16 %v666, %v662
  %v803 = vpack.c.bf16 %v667, %v663
  %v804 = vpack.c.bf16 %v668, %v664
  %v805 = vpack.c.bf16 %v673, %v669
  %v806 = vpack.c.bf16 %v674, %v670
  %v807 = vpack.c.bf16 %v675, %v671
  %v808 = vpack.c.bf16 %v676, %v672
  %v809 = vpack.c.bf16 %v681, %v677
  %v810 = vpack.c.bf16 %v682, %v678
  %v811 = vpack.c.bf16 %v683, %v679
  %v812 = vpack.c.bf16 %v684, %v680
  %v813 = vld [vmem:[%s1] sm:$0xff]
  %v814 = vld [vmem:[%s1 + $0x8] sm:$0xff]
  %v815 = vld [vmem:[%s1 + $0x10] sm:$0xff]
  %v816 = vld [vmem:[%s1 + $0x18] sm:$0xff]
  %v817 = vld [vmem:[%s1 + $0x20] sm:$0xff]
  %v818 = vld [vmem:[%s1 + $0x28] sm:$0xff]
  %v819 = vld [vmem:[%s1 + $0x30] sm:$0xff]
  %v820 = vld [vmem:[%s1 + $0x38] sm:$0xff]
  %v821 = vld [vmem:[%s1 + $0x40] sm:$0xff]
  %v822 = vld [vmem:[%s1 + $0x48] sm:$0xff]
  %v823 = vld [vmem:[%s1 + $0x50] sm:$0xff]
  %v824 = vld [vmem:[%s1 + $0x58] sm:$0xff]
  %v825 = vld [vmem:[%s1 + $0x60] sm:$0xff]
  %v826 = vld [vmem:[%s1 + $0x68] sm:$0xff]
  %v827 = vld [vmem:[%s1 + $0x70] sm:$0xff]
  %v828 = vld [vmem:[%s1 + $0x78] sm:$0xff]
  %v829 = vld [vmem:[%s1 + $0x80] sm:$0xff]
  %v830 = vld [vmem:[%s1 + $0x88] sm:$0xff]
  %v831 = vld [vmem:[%s1 + $0x90] sm:$0xff]
  %v832 = vld [vmem:[%s1 + $0x98] sm:$0xff]
  %v833 = vld [vmem:[%s1 + $0xa0] sm:$0xff]
  %v834 = vld [vmem:[%s1 + $0xa8] sm:$0xff]
  %v835 = vld [vmem:[%s1 + $0xb0] sm:$0xff]
  %v836 = vld [vmem:[%s1 + $0xb8] sm:$0xff]
  %v837 = vld [vmem:[%s1 + $0xc0] sm:$0xff]
  %v838 = vld [vmem:[%s1 + $0xc8] sm:$0xff]
  %v839 = vld [vmem:[%s1 + $0xd0] sm:$0xff]
  %v840 = vld [vmem:[%s1 + $0xd8] sm:$0xff]
  %v841 = vld [vmem:[%s1 + $0xe0] sm:$0xff]
  %v842 = vld [vmem:[%s1 + $0xe8] sm:$0xff]
  %v843 = vld [vmem:[%s1 + $0xf0] sm:$0xff]
  %v844 = vld [vmem:[%s1 + $0xf8] sm:$0xff]
  %v845 = vld [vmem:[%s1 + $0x100] sm:$0xff]
  %v846 = vld [vmem:[%s1 + $0x108] sm:$0xff]
  %v847 = vld [vmem:[%s1 + $0x110] sm:$0xff]
  %v848 = vld [vmem:[%s1 + $0x118] sm:$0xff]
  %v849 = vld [vmem:[%s1 + $0x120] sm:$0xff]
  %v850 = vld [vmem:[%s1 + $0x128] sm:$0xff]
  %v851 = vld [vmem:[%s1 + $0x130] sm:$0xff]
  %v852 = vld [vmem:[%s1 + $0x138] sm:$0xff]
  %v853 = vld [vmem:[%s1 + $0x140] sm:$0xff]
  %v854 = vld [vmem:[%s1 + $0x148] sm:$0xff]
  %v855 = vld [vmem:[%s1 + $0x150] sm:$0xff]
  %v856 = vld [vmem:[%s1 + $0x158] sm:$0xff]
  %v857 = vld [vmem:[%s1 + $0x160] sm:$0xff]
  %v858 = vld [vmem:[%s1 + $0x168] sm:$0xff]
  %v859 = vld [vmem:[%s1 + $0x170] sm:$0xff]
  %v860 = vld [vmem:[%s1 + $0x178] sm:$0xff]
  %v861 = vld [vmem:[%s1 + $0x180] sm:$0xff]
  %v862 = vld [vmem:[%s1 + $0x188] sm:$0xff]
  %v863 = vld [vmem:[%s1 + $0x190] sm:$0xff]
  %v864 = vld [vmem:[%s1 + $0x198] sm:$0xff]
  %v865 = vld [vmem:[%s1 + $0x1a0] sm:$0xff]
  %v866 = vld [vmem:[%s1 + $0x1a8] sm:$0xff]
  %v867 = vld [vmem:[%s1 + $0x1b0] sm:$0xff]
  %v868 = vld [vmem:[%s1 + $0x1b8] sm:$0xff]
  %v869 = vld [vmem:[%s1 + $0x1c0] sm:$0xff]
  %v870 = vld [vmem:[%s1 + $0x1c8] sm:$0xff]
  %v871 = vld [vmem:[%s1 + $0x1d0] sm:$0xff]
  %v872 = vld [vmem:[%s1 + $0x1d8] sm:$0xff]
  %v873 = vld [vmem:[%s1 + $0x1e0] sm:$0xff]
  %v874 = vld [vmem:[%s1 + $0x1e8] sm:$0xff]
  %v875 = vld [vmem:[%s1 + $0x1f0] sm:$0xff]
  %v876 = vld [vmem:[%s1 + $0x1f8] sm:$0xff]
  %v877 = vld [vmem:[%s3] sm:$0xff]
  %v878 = vld [vmem:[%s3 + $0x8] sm:$0xff]
  %v879 = vld [vmem:[%s3 + $0x10] sm:$0xff]
  %v880 = vld [vmem:[%s3 + $0x18] sm:$0xff]
  %v881 = vld [vmem:[%s3 + $0x20] sm:$0xff]
  %v882 = vld [vmem:[%s3 + $0x28] sm:$0xff]
  %v883 = vld [vmem:[%s3 + $0x30] sm:$0xff]
  %v884 = vld [vmem:[%s3 + $0x38] sm:$0xff]
  %v885 = vld [vmem:[%s3 + $0x40] sm:$0xff]
  %v886 = vld [vmem:[%s3 + $0x48] sm:$0xff]
  %v887 = vld [vmem:[%s3 + $0x50] sm:$0xff]
  %v888 = vld [vmem:[%s3 + $0x58] sm:$0xff]
  %v889 = vld [vmem:[%s3 + $0x60] sm:$0xff]
  %v890 = vld [vmem:[%s3 + $0x68] sm:$0xff]
  %v891 = vld [vmem:[%s3 + $0x70] sm:$0xff]
  %v892 = vld [vmem:[%s3 + $0x78] sm:$0xff]
  %v893 = vld [vmem:[%s3 + $0x80] sm:$0xff]
  %v894 = vld [vmem:[%s3 + $0x88] sm:$0xff]
  %v895 = vld [vmem:[%s3 + $0x90] sm:$0xff]
  %v896 = vld [vmem:[%s3 + $0x98] sm:$0xff]
  %v897 = vld [vmem:[%s3 + $0xa0] sm:$0xff]
  %v898 = vld [vmem:[%s3 + $0xa8] sm:$0xff]
  %v899 = vld [vmem:[%s3 + $0xb0] sm:$0xff]
  %v900 = vld [vmem:[%s3 + $0xb8] sm:$0xff]
  %v901 = vld [vmem:[%s3 + $0xc0] sm:$0xff]
  %v902 = vld [vmem:[%s3 + $0xc8] sm:$0xff]
  %v903 = vld [vmem:[%s3 + $0xd0] sm:$0xff]
  %v904 = vld [vmem:[%s3 + $0xd8] sm:$0xff]
  %v905 = vld [vmem:[%s3 + $0xe0] sm:$0xff]
  %v906 = vld [vmem:[%s3 + $0xe8] sm:$0xff]
  %v907 = vld [vmem:[%s3 + $0xf0] sm:$0xff]
  %v908 = vld [vmem:[%s3 + $0xf8] sm:$0xff]
  %v909 = vld [vmem:[%s3 + $0x100] sm:$0xff]
  %v910 = vld [vmem:[%s3 + $0x108] sm:$0xff]
  %v911 = vld [vmem:[%s3 + $0x110] sm:$0xff]
  %v912 = vld [vmem:[%s3 + $0x118] sm:$0xff]
  %v913 = vld [vmem:[%s3 + $0x120] sm:$0xff]
  %v914 = vld [vmem:[%s3 + $0x128] sm:$0xff]
  %v915 = vld [vmem:[%s3 + $0x130] sm:$0xff]
  %v916 = vld [vmem:[%s3 + $0x138] sm:$0xff]
  %v917 = vld [vmem:[%s3 + $0x140] sm:$0xff]
  %v918 = vld [vmem:[%s3 + $0x148] sm:$0xff]
  %v919 = vld [vmem:[%s3 + $0x150] sm:$0xff]
  %v920 = vld [vmem:[%s3 + $0x158] sm:$0xff]
  %v921 = vld [vmem:[%s3 + $0x160] sm:$0xff]
  %v922 = vld [vmem:[%s3 + $0x168] sm:$0xff]
  %v923 = vld [vmem:[%s3 + $0x170] sm:$0xff]
  %v924 = vld [vmem:[%s3 + $0x178] sm:$0xff]
  %v925 = vld [vmem:[%s3 + $0x180] sm:$0xff]
  %v926 = vld [vmem:[%s3 + $0x188] sm:$0xff]
  %v927 = vld [vmem:[%s3 + $0x190] sm:$0xff]
  %v928 = vld [vmem:[%s3 + $0x198] sm:$0xff]
  %v929 = vld [vmem:[%s3 + $0x1a0] sm:$0xff]
  %v930 = vld [vmem:[%s3 + $0x1a8] sm:$0xff]
  %v931 = vld [vmem:[%s3 + $0x1b0] sm:$0xff]
  %v932 = vld [vmem:[%s3 + $0x1b8] sm:$0xff]
  %v933 = vld [vmem:[%s3 + $0x1c0] sm:$0xff]
  %v934 = vld [vmem:[%s3 + $0x1c8] sm:$0xff]
  %v935 = vld [vmem:[%s3 + $0x1d0] sm:$0xff]
  %v936 = vld [vmem:[%s3 + $0x1d8] sm:$0xff]
  %v937 = vld [vmem:[%s3 + $0x1e0] sm:$0xff]
  %v938 = vld [vmem:[%s3 + $0x1e8] sm:$0xff]
  %v939 = vld [vmem:[%s3 + $0x1f0] sm:$0xff]
  %v940 = vld [vmem:[%s3 + $0x1f8] sm:$0xff]
  %v941 = vld [vmem:[%s4] sm:$0xff]
  %v942 = vld [vmem:[%s4 + $0x8] sm:$0xff]
  %v943 = vld [vmem:[%s4 + $0x10] sm:$0xff]
  %v944 = vld [vmem:[%s4 + $0x18] sm:$0xff]
  %v945 = vld [vmem:[%s4 + $0x20] sm:$0xff]
  %v946 = vld [vmem:[%s4 + $0x28] sm:$0xff]
  %v947 = vld [vmem:[%s4 + $0x30] sm:$0xff]
  %v948 = vld [vmem:[%s4 + $0x38] sm:$0xff]
  %v949 = vld [vmem:[%s4 + $0x40] sm:$0xff]
  %v950 = vld [vmem:[%s4 + $0x48] sm:$0xff]
  %v951 = vld [vmem:[%s4 + $0x50] sm:$0xff]
  %v952 = vld [vmem:[%s4 + $0x58] sm:$0xff]
  %v953 = vld [vmem:[%s4 + $0x60] sm:$0xff]
  %v954 = vld [vmem:[%s4 + $0x68] sm:$0xff]
  %v955 = vld [vmem:[%s4 + $0x70] sm:$0xff]
  %v956 = vld [vmem:[%s4 + $0x78] sm:$0xff]
  %v957 = vld [vmem:[%s4 + $0x80] sm:$0xff]
  %v958 = vld [vmem:[%s4 + $0x88] sm:$0xff]
  %v959 = vld [vmem:[%s4 + $0x90] sm:$0xff]
  %v960 = vld [vmem:[%s4 + $0x98] sm:$0xff]
  %v961 = vld [vmem:[%s4 + $0xa0] sm:$0xff]
  %v962 = vld [vmem:[%s4 + $0xa8] sm:$0xff]
  %v963 = vld [vmem:[%s4 + $0xb0] sm:$0xff]
  %v964 = vld [vmem:[%s4 + $0xb8] sm:$0xff]
  %v965 = vld [vmem:[%s4 + $0xc0] sm:$0xff]
  %v966 = vld [vmem:[%s4 + $0xc8] sm:$0xff]
  %v967 = vld [vmem:[%s4 + $0xd0] sm:$0xff]
  %v968 = vld [vmem:[%s4 + $0xd8] sm:$0xff]
  %v969 = vld [vmem:[%s4 + $0xe0] sm:$0xff]
  %v970 = vld [vmem:[%s4 + $0xe8] sm:$0xff]
  %v971 = vld [vmem:[%s4 + $0xf0] sm:$0xff]
  %v972 = vld [vmem:[%s4 + $0xf8] sm:$0xff]
  %v1037 = vunpack.c.l.b16 %v877
  %v1038 = vunpack.c.h.b16 %v877
  %v1039 = vunpack.c.l.b16 %v878
  %v1040 = vunpack.c.h.b16 %v878
  %v1041 = vunpack.c.l.b16 %v879
  %v1042 = vunpack.c.h.b16 %v879
  %v1043 = vunpack.c.l.b16 %v880
  %v1044 = vunpack.c.h.b16 %v880
  %v1045 = vunpack.c.l.b16 %v881
  %v1046 = vunpack.c.h.b16 %v881
  %v1047 = vunpack.c.l.b16 %v882
  %v1048 = vunpack.c.h.b16 %v882
  %v1049 = vunpack.c.l.b16 %v883
  %v1050 = vunpack.c.h.b16 %v883
  %v1051 = vunpack.c.l.b16 %v884
  %v1052 = vunpack.c.h.b16 %v884
  %v1053 = vunpack.c.l.b16 %v885
  %v1054 = vunpack.c.h.b16 %v885
  %v1055 = vunpack.c.l.b16 %v886
  %v1056 = vunpack.c.h.b16 %v886
  %v1057 = vunpack.c.l.b16 %v887
  %v1058 = vunpack.c.h.b16 %v887
  %v1059 = vunpack.c.l.b16 %v888
  %v1060 = vunpack.c.h.b16 %v888
  %v1061 = vunpack.c.l.b16 %v889
  %v1062 = vunpack.c.h.b16 %v889
  %v1063 = vunpack.c.l.b16 %v890
  %v1064 = vunpack.c.h.b16 %v890
  %v1065 = vunpack.c.l.b16 %v891
  %v1066 = vunpack.c.h.b16 %v891
  %v1067 = vunpack.c.l.b16 %v892
  %v1068 = vunpack.c.h.b16 %v892
  %v1069 = vunpack.c.l.b16 %v893
  %v1070 = vunpack.c.h.b16 %v893
  %v1071 = vunpack.c.l.b16 %v894
  %v1072 = vunpack.c.h.b16 %v894
  %v1073 = vunpack.c.l.b16 %v895
  %v1074 = vunpack.c.h.b16 %v895
  %v1075 = vunpack.c.l.b16 %v896
  %v1076 = vunpack.c.h.b16 %v896
  %v1077 = vunpack.c.l.b16 %v897
  %v1078 = vunpack.c.h.b16 %v897
  %v1079 = vunpack.c.l.b16 %v898
  %v1080 = vunpack.c.h.b16 %v898
  %v1081 = vunpack.c.l.b16 %v899
  %v1082 = vunpack.c.h.b16 %v899
  %v1083 = vunpack.c.l.b16 %v900
  %v1084 = vunpack.c.h.b16 %v900
  %v1085 = vunpack.c.l.b16 %v901
  %v1086 = vunpack.c.h.b16 %v901
  %v1087 = vunpack.c.l.b16 %v902
  %v1088 = vunpack.c.h.b16 %v902
  %v1089 = vunpack.c.l.b16 %v903
  %v1090 = vunpack.c.h.b16 %v903
  %v1091 = vunpack.c.l.b16 %v904
  %v1092 = vunpack.c.h.b16 %v904
  %v1093 = vunpack.c.l.b16 %v905
  %v1094 = vunpack.c.h.b16 %v905
  %v1095 = vunpack.c.l.b16 %v906
  %v1096 = vunpack.c.h.b16 %v906
  %v1097 = vunpack.c.l.b16 %v907
  %v1098 = vunpack.c.h.b16 %v907
  %v1099 = vunpack.c.l.b16 %v908
  %v1100 = vunpack.c.h.b16 %v908
  %v1101 = vunpack.c.l.b16 %v909
  %v1102 = vunpack.c.h.b16 %v909
  %v1103 = vunpack.c.l.b16 %v910
  %v1104 = vunpack.c.h.b16 %v910
  %v1105 = vunpack.c.l.b16 %v911
  %v1106 = vunpack.c.h.b16 %v911
  %v1107 = vunpack.c.l.b16 %v912
  %v1108 = vunpack.c.h.b16 %v912
  %v1109 = vunpack.c.l.b16 %v913
  %v1110 = vunpack.c.h.b16 %v913
  %v1111 = vunpack.c.l.b16 %v914
  %v1112 = vunpack.c.h.b16 %v914
  %v1113 = vunpack.c.l.b16 %v915
  %v1114 = vunpack.c.h.b16 %v915
  %v1115 = vunpack.c.l.b16 %v916
  %v1116 = vunpack.c.h.b16 %v916
  %v1117 = vunpack.c.l.b16 %v917
  %v1118 = vunpack.c.h.b16 %v917
  %v1119 = vunpack.c.l.b16 %v918
  %v1120 = vunpack.c.h.b16 %v918
  %v1121 = vunpack.c.l.b16 %v919
  %v1122 = vunpack.c.h.b16 %v919
  %v1123 = vunpack.c.l.b16 %v920
  %v1124 = vunpack.c.h.b16 %v920
  %v1125 = vunpack.c.l.b16 %v921
  %v1126 = vunpack.c.h.b16 %v921
  %v1127 = vunpack.c.l.b16 %v922
  %v1128 = vunpack.c.h.b16 %v922
  %v1129 = vunpack.c.l.b16 %v923
  %v1130 = vunpack.c.h.b16 %v923
  %v1131 = vunpack.c.l.b16 %v924
  %v1132 = vunpack.c.h.b16 %v924
  %v1133 = vunpack.c.l.b16 %v925
  %v1134 = vunpack.c.h.b16 %v925
  %v1135 = vunpack.c.l.b16 %v926
  %v1136 = vunpack.c.h.b16 %v926
  %v1137 = vunpack.c.l.b16 %v927
  %v1138 = vunpack.c.h.b16 %v927
  %v1139 = vunpack.c.l.b16 %v928
  %v1140 = vunpack.c.h.b16 %v928
  %v1141 = vunpack.c.l.b16 %v929
  %v1142 = vunpack.c.h.b16 %v929
  %v1143 = vunpack.c.l.b16 %v930
  %v1144 = vunpack.c.h.b16 %v930
  %v1145 = vunpack.c.l.b16 %v931
  %v1146 = vunpack.c.h.b16 %v931
  %v1147 = vunpack.c.l.b16 %v932
  %v1148 = vunpack.c.h.b16 %v932
  %v1149 = vunpack.c.l.b16 %v933
  %v1150 = vunpack.c.h.b16 %v933
  %v1151 = vunpack.c.l.b16 %v934
  %v1152 = vunpack.c.h.b16 %v934
  %v1153 = vunpack.c.l.b16 %v935
  %v1154 = vunpack.c.h.b16 %v935
  %v1155 = vunpack.c.l.b16 %v936
  %v1156 = vunpack.c.h.b16 %v936
  %v1157 = vunpack.c.l.b16 %v937
  %v1158 = vunpack.c.h.b16 %v937
  %v1159 = vunpack.c.l.b16 %v938
  %v1160 = vunpack.c.h.b16 %v938
  %v1161 = vunpack.c.l.b16 %v939
  %v1162 = vunpack.c.h.b16 %v939
  %v1163 = vunpack.c.l.b16 %v940
  %v1164 = vunpack.c.h.b16 %v940
  %v1165 = vpack.c.b16 %v1039, %v1037
  %v1166 = vpack.c.b16 %v1040, %v1038
  %v1167 = vpack.c.b16 %v1043, %v1041
  %v1168 = vpack.c.b16 %v1044, %v1042
  %v1169 = vpack.c.b16 %v1047, %v1045
  %v1170 = vpack.c.b16 %v1048, %v1046
  %v1171 = vpack.c.b16 %v1051, %v1049
  %v1172 = vpack.c.b16 %v1052, %v1050
  %v1173 = vpack.c.b16 %v1055, %v1053
  %v1174 = vpack.c.b16 %v1056, %v1054
  %v1175 = vpack.c.b16 %v1059, %v1057
  %v1176 = vpack.c.b16 %v1060, %v1058
  %v1177 = vpack.c.b16 %v1063, %v1061
  %v1178 = vpack.c.b16 %v1064, %v1062
  %v1179 = vpack.c.b16 %v1067, %v1065
  %v1180 = vpack.c.b16 %v1068, %v1066
  %v1181 = vpack.c.b16 %v1071, %v1069
  %v1182 = vpack.c.b16 %v1072, %v1070
  %v1183 = vpack.c.b16 %v1075, %v1073
  %v1184 = vpack.c.b16 %v1076, %v1074
  %v1185 = vpack.c.b16 %v1079, %v1077
  %v1186 = vpack.c.b16 %v1080, %v1078
  %v1187 = vpack.c.b16 %v1083, %v1081
  %v1188 = vpack.c.b16 %v1084, %v1082
  %v1189 = vpack.c.b16 %v1087, %v1085
  %v1190 = vpack.c.b16 %v1088, %v1086
  %v1191 = vpack.c.b16 %v1091, %v1089
  %v1192 = vpack.c.b16 %v1092, %v1090
  %v1193 = vpack.c.b16 %v1095, %v1093
  %v1194 = vpack.c.b16 %v1096, %v1094
  %v1195 = vpack.c.b16 %v1099, %v1097
  %v1196 = vpack.c.b16 %v1100, %v1098
  %v1197 = vpack.c.b16 %v1103, %v1101
  %v1198 = vpack.c.b16 %v1104, %v1102
  %v1199 = vpack.c.b16 %v1107, %v1105
  %v1200 = vpack.c.b16 %v1108, %v1106
  %v1201 = vpack.c.b16 %v1111, %v1109
  %v1202 = vpack.c.b16 %v1112, %v1110
  %v1203 = vpack.c.b16 %v1115, %v1113
  %v1204 = vpack.c.b16 %v1116, %v1114
  %v1205 = vpack.c.b16 %v1119, %v1117
  %v1206 = vpack.c.b16 %v1120, %v1118
  %v1207 = vpack.c.b16 %v1123, %v1121
  %v1208 = vpack.c.b16 %v1124, %v1122
  %v1209 = vpack.c.b16 %v1127, %v1125
  %v1210 = vpack.c.b16 %v1128, %v1126
  %v1211 = vpack.c.b16 %v1131, %v1129
  %v1212 = vpack.c.b16 %v1132, %v1130
  %v1213 = vpack.c.b16 %v1135, %v1133
  %v1214 = vpack.c.b16 %v1136, %v1134
  %v1215 = vpack.c.b16 %v1139, %v1137
  %v1216 = vpack.c.b16 %v1140, %v1138
  %v1217 = vpack.c.b16 %v1143, %v1141
  %v1218 = vpack.c.b16 %v1144, %v1142
  %v1219 = vpack.c.b16 %v1147, %v1145
  %v1220 = vpack.c.b16 %v1148, %v1146
  %v1221 = vpack.c.b16 %v1151, %v1149
  %v1222 = vpack.c.b16 %v1152, %v1150
  %v1223 = vpack.c.b16 %v1155, %v1153
  %v1224 = vpack.c.b16 %v1156, %v1154
  %v1225 = vpack.c.b16 %v1159, %v1157
  %v1226 = vpack.c.b16 %v1160, %v1158
  %v1227 = vpack.c.b16 %v1163, %v1161
  %v1228 = vpack.c.b16 %v1164, %v1162
  %v1325 = vunpack.c.l.b16 %v941
  %v1326 = vunpack.c.h.b16 %v941
  %v1327 = vunpack.c.l.b16 %v942
  %v1328 = vunpack.c.h.b16 %v942
  %v1329 = vunpack.c.l.b16 %v943
  %v1330 = vunpack.c.h.b16 %v943
  %v1331 = vunpack.c.l.b16 %v944
  %v1332 = vunpack.c.h.b16 %v944
  %v1333 = vunpack.c.l.b16 %v945
  %v1334 = vunpack.c.h.b16 %v945
  %v1335 = vunpack.c.l.b16 %v946
  %v1336 = vunpack.c.h.b16 %v946
  %v1337 = vunpack.c.l.b16 %v947
  %v1338 = vunpack.c.h.b16 %v947
  %v1339 = vunpack.c.l.b16 %v948
  %v1340 = vunpack.c.h.b16 %v948
  %v1341 = vunpack.c.l.b16 %v949
  %v1342 = vunpack.c.h.b16 %v949
  %v1343 = vunpack.c.l.b16 %v950
  %v1344 = vunpack.c.h.b16 %v950
  %v1345 = vunpack.c.l.b16 %v951
  %v1346 = vunpack.c.h.b16 %v951
  %v1347 = vunpack.c.l.b16 %v952
  %v1348 = vunpack.c.h.b16 %v952
  %v1349 = vunpack.c.l.b16 %v953
  %v1350 = vunpack.c.h.b16 %v953
  %v1351 = vunpack.c.l.b16 %v954
  %v1352 = vunpack.c.h.b16 %v954
  %v1353 = vunpack.c.l.b16 %v955
  %v1354 = vunpack.c.h.b16 %v955
  %v1355 = vunpack.c.l.b16 %v956
  %v1356 = vunpack.c.h.b16 %v956
  %v1357 = vunpack.c.l.b16 %v957
  %v1358 = vunpack.c.h.b16 %v957
  %v1359 = vunpack.c.l.b16 %v958
  %v1360 = vunpack.c.h.b16 %v958
  %v1361 = vunpack.c.l.b16 %v959
  %v1362 = vunpack.c.h.b16 %v959
  %v1363 = vunpack.c.l.b16 %v960
  %v1364 = vunpack.c.h.b16 %v960
  %v1365 = vunpack.c.l.b16 %v961
  %v1366 = vunpack.c.h.b16 %v961
  %v1367 = vunpack.c.l.b16 %v962
  %v1368 = vunpack.c.h.b16 %v962
  %v1369 = vunpack.c.l.b16 %v963
  %v1370 = vunpack.c.h.b16 %v963
  %v1371 = vunpack.c.l.b16 %v964
  %v1372 = vunpack.c.h.b16 %v964
  %v1373 = vunpack.c.l.b16 %v965
  %v1374 = vunpack.c.h.b16 %v965
  %v1375 = vunpack.c.l.b16 %v966
  %v1376 = vunpack.c.h.b16 %v966
  %v1377 = vunpack.c.l.b16 %v967
  %v1378 = vunpack.c.h.b16 %v967
  %v1379 = vunpack.c.l.b16 %v968
  %v1380 = vunpack.c.h.b16 %v968
  %v1381 = vunpack.c.l.b16 %v969
  %v1382 = vunpack.c.h.b16 %v969
  %v1383 = vunpack.c.l.b16 %v970
  %v1384 = vunpack.c.h.b16 %v970
  %v1385 = vunpack.c.l.b16 %v971
  %v1386 = vunpack.c.h.b16 %v971
  %v1387 = vunpack.c.l.b16 %v972
  %v1388 = vunpack.c.h.b16 %v972
  %v1389 = vpack.c.b16 %v1327, %v1325
  %v1390 = vpack.c.b16 %v1328, %v1326
  %v1391 = vpack.c.b16 %v1331, %v1329
  %v1392 = vpack.c.b16 %v1332, %v1330
  %v1393 = vpack.c.b16 %v1335, %v1333
  %v1394 = vpack.c.b16 %v1336, %v1334
  %v1395 = vpack.c.b16 %v1339, %v1337
  %v1396 = vpack.c.b16 %v1340, %v1338
  %v1397 = vpack.c.b16 %v1343, %v1341
  %v1398 = vpack.c.b16 %v1344, %v1342
  %v1399 = vpack.c.b16 %v1347, %v1345
  %v1400 = vpack.c.b16 %v1348, %v1346
  %v1401 = vpack.c.b16 %v1351, %v1349
  %v1402 = vpack.c.b16 %v1352, %v1350
  %v1403 = vpack.c.b16 %v1355, %v1353
  %v1404 = vpack.c.b16 %v1356, %v1354
  %v1405 = vpack.c.b16 %v1359, %v1357
  %v1406 = vpack.c.b16 %v1360, %v1358
  %v1407 = vpack.c.b16 %v1363, %v1361
  %v1408 = vpack.c.b16 %v1364, %v1362
  %v1409 = vpack.c.b16 %v1367, %v1365
  %v1410 = vpack.c.b16 %v1368, %v1366
  %v1411 = vpack.c.b16 %v1371, %v1369
  %v1412 = vpack.c.b16 %v1372, %v1370
  %v1413 = vpack.c.b16 %v1375, %v1373
  %v1414 = vpack.c.b16 %v1376, %v1374
  %v1415 = vpack.c.b16 %v1379, %v1377
  %v1416 = vpack.c.b16 %v1380, %v1378
  %v1417 = vpack.c.b16 %v1383, %v1381
  %v1418 = vpack.c.b16 %v1384, %v1382
  %v1419 = vpack.c.b16 %v1387, %v1385
  %v1420 = vpack.c.b16 %v1388, %v1386
  %1453 = vmatprep.subr.bf16.mxu0 %v1404
  %1454 = vmatpush1.bf16.msra.mxu0 %v1403
  %1455 = vmatprep.subr.bf16.mxu0 %v1402
  %1456 = vmatpush1.bf16.msra.mxu0 %v1401
  %1457 = vmatprep.subr.bf16.mxu0 %v1400
  %1458 = vmatpush1.bf16.msra.mxu0 %v1399
  %1459 = vmatprep.subr.bf16.mxu0 %v1398
  %1460 = vmatpush1.bf16.msra.mxu0 %v1397
  %1461 = vmatprep.subr.bf16.mxu0 %v1396
  %1462 = vmatpush1.bf16.msra.mxu0 %v1395
  %1463 = vmatprep.subr.bf16.mxu0 %v1394
  %1464 = vmatpush1.bf16.msra.mxu0 %v1393
  %1465 = vmatprep.subr.bf16.mxu0 %v1392
  %1466 = vmatpush1.bf16.msra.mxu0 %v1391
  %1467 = vmatprep.subr.bf16.mxu0 %v1390
  %1468 = vmatpush1.bf16.msra.mxu0 %v1389
  %1469 = vmatprep.subr.bf16.mxu0 %v1420
  %1470 = vmatpush2.bf16.msra.mxu0 %v1419
  %1471 = vmatprep.subr.bf16.mxu0 %v1418
  %1472 = vmatpush2.bf16.msra.mxu0 %v1417
  %1473 = vmatprep.subr.bf16.mxu0 %v1416
  %1474 = vmatpush2.bf16.msra.mxu0 %v1415
  %1475 = vmatprep.subr.bf16.mxu0 %v1414
  %1476 = vmatpush2.bf16.msra.mxu0 %v1413
  %1477 = vmatprep.subr.bf16.mxu0 %v1412
  %1478 = vmatpush2.bf16.msra.mxu0 %v1411
  %1479 = vmatprep.subr.bf16.mxu0 %v1410
  %1480 = vmatpush2.bf16.msra.mxu0 %v1409
  %1481 = vmatprep.subr.bf16.mxu0 %v1408
  %1482 = vmatpush2.bf16.msra.mxu0 %v1407
  %1483 = vmatprep.subr.bf16.mxu0 %v1406
  %1484 = vmatpush2.bf16.msra.mxu0 %v1405
  %1485 = vmatprep.mubr.bf16.mxu0 %v1166
  %1486 = vmatmul.mubr.bf16.gmra.mxu0 %v1165
  %v1487 = vpop.f32.mrf.mxu0
  %v1488 = vadd.f32 0.0, %v1487
  %v1489 = vpop.f32.mrf.mxu0
  %v1490 = vadd.f32 0.0, %v1489
  %v1491 = vpop.f32.mrf.mxu0
  %v1492 = vadd.f32 0.0, %v1491
  %v1493 = vpop.f32.mrf.mxu0
  %v1494 = vadd.f32 0.0, %v1493
  %1495 = vmatprep.mubr.bf16.mxu0 %v1168
  %1496 = vmatmul.mubr.bf16.gmra.mxu0 %v1167
  %v1497 = vpop.f32.mrf.mxu0
  %v1498 = vadd.f32 0.0, %v1497
  %v1499 = vpop.f32.mrf.mxu0
  %v1500 = vadd.f32 0.0, %v1499
  %v1501 = vpop.f32.mrf.mxu0
  %v1502 = vadd.f32 0.0, %v1501
  %v1503 = vpop.f32.mrf.mxu0
  %v1504 = vadd.f32 0.0, %v1503
  %1505 = vmatprep.mubr.bf16.mxu0 %v1170
  %1506 = vmatmul.mubr.bf16.gmra.mxu0 %v1169
  %v1507 = vpop.f32.mrf.mxu0
  %v1508 = vadd.f32 0.0, %v1507
  %v1509 = vpop.f32.mrf.mxu0
  %v1510 = vadd.f32 0.0, %v1509
  %v1511 = vpop.f32.mrf.mxu0
  %v1512 = vadd.f32 0.0, %v1511
  %v1513 = vpop.f32.mrf.mxu0
  %v1514 = vadd.f32 0.0, %v1513
  %1515 = vmatprep.mubr.bf16.mxu0 %v1172
  %1516 = vmatmul.mubr.bf16.gmra.mxu0 %v1171
  %v1517 = vpop.f32.mrf.mxu0
  %v1518 = vadd.f32 0.0, %v1517
  %v1519 = vpop.f32.mrf.mxu0
  %v1520 = vadd.f32 0.0, %v1519
  %v1521 = vpop.f32.mrf.mxu0
  %v1522 = vadd.f32 0.0, %v1521
  %v1523 = vpop.f32.mrf.mxu0
  %v1524 = vadd.f32 0.0, %v1523
  %1525 = vmatprep.mubr.bf16.mxu0 %v1174
  %1526 = vmatmul.mubr.bf16.gmra.mxu0 %v1173
  %v1527 = vpop.f32.mrf.mxu0
  %v1528 = vadd.f32 0.0, %v1527
  %v1529 = vpop.f32.mrf.mxu0
  %v1530 = vadd.f32 0.0, %v1529
  %v1531 = vpop.f32.mrf.mxu0
  %v1532 = vadd.f32 0.0, %v1531
  %v1533 = vpop.f32.mrf.mxu0
  %v1534 = vadd.f32 0.0, %v1533
  %1535 = vmatprep.mubr.bf16.mxu0 %v1176
  %1536 = vmatmul.mubr.bf16.gmra.mxu0 %v1175
  %v1537 = vpop.f32.mrf.mxu0
  %v1538 = vadd.f32 0.0, %v1537
  %v1539 = vpop.f32.mrf.mxu0
  %v1540 = vadd.f32 0.0, %v1539
  %v1541 = vpop.f32.mrf.mxu0
  %v1542 = vadd.f32 0.0, %v1541
  %v1543 = vpop.f32.mrf.mxu0
  %v1544 = vadd.f32 0.0, %v1543
  %1545 = vmatprep.mubr.bf16.mxu0 %v1178
  %1546 = vmatmul.mubr.bf16.gmra.mxu0 %v1177
  %v1547 = vpop.f32.mrf.mxu0
  %v1548 = vadd.f32 0.0, %v1547
  %v1549 = vpop.f32.mrf.mxu0
  %v1550 = vadd.f32 0.0, %v1549
  %v1551 = vpop.f32.mrf.mxu0
  %v1552 = vadd.f32 0.0, %v1551
  %v1553 = vpop.f32.mrf.mxu0
  %v1554 = vadd.f32 0.0, %v1553
  %1555 = vmatprep.mubr.bf16.mxu0 %v1180
  %1556 = vmatmul.mubr.bf16.gmra.mxu0 %v1179
  %v1557 = vpop.f32.mrf.mxu0
  %v1558 = vadd.f32 0.0, %v1557
  %v1559 = vpop.f32.mrf.mxu0
  %v1560 = vadd.f32 0.0, %v1559
  %v1561 = vpop.f32.mrf.mxu0
  %v1562 = vadd.f32 0.0, %v1561
  %v1563 = vpop.f32.mrf.mxu0
  %v1564 = vadd.f32 0.0, %v1563
  %1565 = vmatprep.mubr.bf16.mxu0 %v1182
  %1566 = vmatmul.mubr.bf16.gmra.mxu0 %v1181
  %v1567 = vpop.f32.mrf.mxu0
  %v1568 = vadd.f32 0.0, %v1567
  %v1569 = vpop.f32.mrf.mxu0
  %v1570 = vadd.f32 0.0, %v1569
  %v1571 = vpop.f32.mrf.mxu0
  %v1572 = vadd.f32 0.0, %v1571
  %v1573 = vpop.f32.mrf.mxu0
  %v1574 = vadd.f32 0.0, %v1573
  %1575 = vmatprep.mubr.bf16.mxu0 %v1184
  %1576 = vmatmul.mubr.bf16.gmra.mxu0 %v1183
  %v1577 = vpop.f32.mrf.mxu0
  %v1578 = vadd.f32 0.0, %v1577
  %v1579 = vpop.f32.mrf.mxu0
  %v1580 = vadd.f32 0.0, %v1579
  %v1581 = vpop.f32.mrf.mxu0
  %v1582 = vadd.f32 0.0, %v1581
  %v1583 = vpop.f32.mrf.mxu0
  %v1584 = vadd.f32 0.0, %v1583
  %1585 = vmatprep.mubr.bf16.mxu0 %v1186
  %1586 = vmatmul.mubr.bf16.gmra.mxu0 %v1185
  %v1587 = vpop.f32.mrf.mxu0
  %v1588 = vadd.f32 0.0, %v1587
  %v1589 = vpop.f32.mrf.mxu0
  %v1590 = vadd.f32 0.0, %v1589
  %v1591 = vpop.f32.mrf.mxu0
  %v1592 = vadd.f32 0.0, %v1591
  %v1593 = vpop.f32.mrf.mxu0
  %v1594 = vadd.f32 0.0, %v1593
  %1595 = vmatprep.mubr.bf16.mxu0 %v1188
  %1596 = vmatmul.mubr.bf16.gmra.mxu0 %v1187
  %v1597 = vpop.f32.mrf.mxu0
  %v1598 = vadd.f32 0.0, %v1597
  %v1599 = vpop.f32.mrf.mxu0
  %v1600 = vadd.f32 0.0, %v1599
  %v1601 = vpop.f32.mrf.mxu0
  %v1602 = vadd.f32 0.0, %v1601
  %v1603 = vpop.f32.mrf.mxu0
  %v1604 = vadd.f32 0.0, %v1603
  %1605 = vmatprep.mubr.bf16.mxu0 %v1190
  %1606 = vmatmul.mubr.bf16.gmra.mxu0 %v1189
  %v1607 = vpop.f32.mrf.mxu0
  %v1608 = vadd.f32 0.0, %v1607
  %v1609 = vpop.f32.mrf.mxu0
  %v1610 = vadd.f32 0.0, %v1609
  %v1611 = vpop.f32.mrf.mxu0
  %v1612 = vadd.f32 0.0, %v1611
  %v1613 = vpop.f32.mrf.mxu0
  %v1614 = vadd.f32 0.0, %v1613
  %1615 = vmatprep.mubr.bf16.mxu0 %v1192
  %1616 = vmatmul.mubr.bf16.gmra.mxu0 %v1191
  %v1617 = vpop.f32.mrf.mxu0
  %v1618 = vadd.f32 0.0, %v1617
  %v1619 = vpop.f32.mrf.mxu0
  %v1620 = vadd.f32 0.0, %v1619
  %v1621 = vpop.f32.mrf.mxu0
  %v1622 = vadd.f32 0.0, %v1621
  %v1623 = vpop.f32.mrf.mxu0
  %v1624 = vadd.f32 0.0, %v1623
  %1625 = vmatprep.mubr.bf16.mxu0 %v1194
  %1626 = vmatmul.mubr.bf16.gmra.mxu0 %v1193
  %v1627 = vpop.f32.mrf.mxu0
  %v1628 = vadd.f32 0.0, %v1627
  %v1629 = vpop.f32.mrf.mxu0
  %v1630 = vadd.f32 0.0, %v1629
  %v1631 = vpop.f32.mrf.mxu0
  %v1632 = vadd.f32 0.0, %v1631
  %v1633 = vpop.f32.mrf.mxu0
  %v1634 = vadd.f32 0.0, %v1633
  %1635 = vmatprep.mubr.bf16.mxu0 %v1196
  %1636 = vmatmul.mubr.bf16.gmra.mxu0 %v1195
  %v1637 = vpop.f32.mrf.mxu0
  %v1638 = vadd.f32 0.0, %v1637
  %v1639 = vpop.f32.mrf.mxu0
  %v1640 = vadd.f32 0.0, %v1639
  %v1641 = vpop.f32.mrf.mxu0
  %v1642 = vadd.f32 0.0, %v1641
  %v1643 = vpop.f32.mrf.mxu0
  %v1644 = vadd.f32 0.0, %v1643
  %1645 = vmatprep.mubr.bf16.mxu0 %v1198
  %1646 = vmatmul.mubr.bf16.gmra.mxu0 %v1197
  %v1647 = vpop.f32.mrf.mxu0
  %v1648 = vadd.f32 0.0, %v1647
  %v1649 = vpop.f32.mrf.mxu0
  %v1650 = vadd.f32 0.0, %v1649
  %v1651 = vpop.f32.mrf.mxu0
  %v1652 = vadd.f32 0.0, %v1651
  %v1653 = vpop.f32.mrf.mxu0
  %v1654 = vadd.f32 0.0, %v1653
  %1655 = vmatprep.mubr.bf16.mxu0 %v1200
  %1656 = vmatmul.mubr.bf16.gmra.mxu0 %v1199
  %v1657 = vpop.f32.mrf.mxu0
  %v1658 = vadd.f32 0.0, %v1657
  %v1659 = vpop.f32.mrf.mxu0
  %v1660 = vadd.f32 0.0, %v1659
  %v1661 = vpop.f32.mrf.mxu0
  %v1662 = vadd.f32 0.0, %v1661
  %v1663 = vpop.f32.mrf.mxu0
  %v1664 = vadd.f32 0.0, %v1663
  %1665 = vmatprep.mubr.bf16.mxu0 %v1202
  %1666 = vmatmul.mubr.bf16.gmra.mxu0 %v1201
  %v1667 = vpop.f32.mrf.mxu0
  %v1668 = vadd.f32 0.0, %v1667
  %v1669 = vpop.f32.mrf.mxu0
  %v1670 = vadd.f32 0.0, %v1669
  %v1671 = vpop.f32.mrf.mxu0
  %v1672 = vadd.f32 0.0, %v1671
  %v1673 = vpop.f32.mrf.mxu0
  %v1674 = vadd.f32 0.0, %v1673
  %1675 = vmatprep.mubr.bf16.mxu0 %v1204
  %1676 = vmatmul.mubr.bf16.gmra.mxu0 %v1203
  %v1677 = vpop.f32.mrf.mxu0
  %v1678 = vadd.f32 0.0, %v1677
  %v1679 = vpop.f32.mrf.mxu0
  %v1680 = vadd.f32 0.0, %v1679
  %v1681 = vpop.f32.mrf.mxu0
  %v1682 = vadd.f32 0.0, %v1681
  %v1683 = vpop.f32.mrf.mxu0
  %v1684 = vadd.f32 0.0, %v1683
  %1685 = vmatprep.mubr.bf16.mxu0 %v1206
  %1686 = vmatmul.mubr.bf16.gmra.mxu0 %v1205
  %v1687 = vpop.f32.mrf.mxu0
  %v1688 = vadd.f32 0.0, %v1687
  %v1689 = vpop.f32.mrf.mxu0
  %v1690 = vadd.f32 0.0, %v1689
  %v1691 = vpop.f32.mrf.mxu0
  %v1692 = vadd.f32 0.0, %v1691
  %v1693 = vpop.f32.mrf.mxu0
  %v1694 = vadd.f32 0.0, %v1693
  %1695 = vmatprep.mubr.bf16.mxu0 %v1208
  %1696 = vmatmul.mubr.bf16.gmra.mxu0 %v1207
  %v1697 = vpop.f32.mrf.mxu0
  %v1698 = vadd.f32 0.0, %v1697
  %v1699 = vpop.f32.mrf.mxu0
  %v1700 = vadd.f32 0.0, %v1699
  %v1701 = vpop.f32.mrf.mxu0
  %v1702 = vadd.f32 0.0, %v1701
  %v1703 = vpop.f32.mrf.mxu0
  %v1704 = vadd.f32 0.0, %v1703
  %1705 = vmatprep.mubr.bf16.mxu0 %v1210
  %1706 = vmatmul.mubr.bf16.gmra.mxu0 %v1209
  %v1707 = vpop.f32.mrf.mxu0
  %v1708 = vadd.f32 0.0, %v1707
  %v1709 = vpop.f32.mrf.mxu0
  %v1710 = vadd.f32 0.0, %v1709
  %v1711 = vpop.f32.mrf.mxu0
  %v1712 = vadd.f32 0.0, %v1711
  %v1713 = vpop.f32.mrf.mxu0
  %v1714 = vadd.f32 0.0, %v1713
  %1715 = vmatprep.mubr.bf16.mxu0 %v1212
  %1716 = vmatmul.mubr.bf16.gmra.mxu0 %v1211
  %v1717 = vpop.f32.mrf.mxu0
  %v1718 = vadd.f32 0.0, %v1717
  %v1719 = vpop.f32.mrf.mxu0
  %v1720 = vadd.f32 0.0, %v1719
  %v1721 = vpop.f32.mrf.mxu0
  %v1722 = vadd.f32 0.0, %v1721
  %v1723 = vpop.f32.mrf.mxu0
  %v1724 = vadd.f32 0.0, %v1723
  %1725 = vmatprep.mubr.bf16.mxu0 %v1214
  %1726 = vmatmul.mubr.bf16.gmra.mxu0 %v1213
  %v1727 = vpop.f32.mrf.mxu0
  %v1728 = vadd.f32 0.0, %v1727
  %v1729 = vpop.f32.mrf.mxu0
  %v1730 = vadd.f32 0.0, %v1729
  %v1731 = vpop.f32.mrf.mxu0
  %v1732 = vadd.f32 0.0, %v1731
  %v1733 = vpop.f32.mrf.mxu0
  %v1734 = vadd.f32 0.0, %v1733
  %1735 = vmatprep.mubr.bf16.mxu0 %v1216
  %1736 = vmatmul.mubr.bf16.gmra.mxu0 %v1215
  %v1737 = vpop.f32.mrf.mxu0
  %v1738 = vadd.f32 0.0, %v1737
  %v1739 = vpop.f32.mrf.mxu0
  %v1740 = vadd.f32 0.0, %v1739
  %v1741 = vpop.f32.mrf.mxu0
  %v1742 = vadd.f32 0.0, %v1741
  %v1743 = vpop.f32.mrf.mxu0
  %v1744 = vadd.f32 0.0, %v1743
  %1745 = vmatprep.mubr.bf16.mxu0 %v1218
  %1746 = vmatmul.mubr.bf16.gmra.mxu0 %v1217
  %v1747 = vpop.f32.mrf.mxu0
  %v1748 = vadd.f32 0.0, %v1747
  %v1749 = vpop.f32.mrf.mxu0
  %v1750 = vadd.f32 0.0, %v1749
  %v1751 = vpop.f32.mrf.mxu0
  %v1752 = vadd.f32 0.0, %v1751
  %v1753 = vpop.f32.mrf.mxu0
  %v1754 = vadd.f32 0.0, %v1753
  %1755 = vmatprep.mubr.bf16.mxu0 %v1220
  %1756 = vmatmul.mubr.bf16.gmra.mxu0 %v1219
  %v1757 = vpop.f32.mrf.mxu0
  %v1758 = vadd.f32 0.0, %v1757
  %v1759 = vpop.f32.mrf.mxu0
  %v1760 = vadd.f32 0.0, %v1759
  %v1761 = vpop.f32.mrf.mxu0
  %v1762 = vadd.f32 0.0, %v1761
  %v1763 = vpop.f32.mrf.mxu0
  %v1764 = vadd.f32 0.0, %v1763
  %1765 = vmatprep.mubr.bf16.mxu0 %v1222
  %1766 = vmatmul.mubr.bf16.gmra.mxu0 %v1221
  %v1767 = vpop.f32.mrf.mxu0
  %v1768 = vadd.f32 0.0, %v1767
  %v1769 = vpop.f32.mrf.mxu0
  %v1770 = vadd.f32 0.0, %v1769
  %v1771 = vpop.f32.mrf.mxu0
  %v1772 = vadd.f32 0.0, %v1771
  %v1773 = vpop.f32.mrf.mxu0
  %v1774 = vadd.f32 0.0, %v1773
  %1775 = vmatprep.mubr.bf16.mxu0 %v1224
  %1776 = vmatmul.mubr.bf16.gmra.mxu0 %v1223
  %v1777 = vpop.f32.mrf.mxu0
  %v1778 = vadd.f32 0.0, %v1777
  %v1779 = vpop.f32.mrf.mxu0
  %v1780 = vadd.f32 0.0, %v1779
  %v1781 = vpop.f32.mrf.mxu0
  %v1782 = vadd.f32 0.0, %v1781
  %v1783 = vpop.f32.mrf.mxu0
  %v1784 = vadd.f32 0.0, %v1783
  %1785 = vmatprep.mubr.bf16.mxu0 %v1226
  %1786 = vmatmul.mubr.bf16.gmra.mxu0 %v1225
  %v1787 = vpop.f32.mrf.mxu0
  %v1788 = vadd.f32 0.0, %v1787
  %v1789 = vpop.f32.mrf.mxu0
  %v1790 = vadd.f32 0.0, %v1789
  %v1791 = vpop.f32.mrf.mxu0
  %v1792 = vadd.f32 0.0, %v1791
  %v1793 = vpop.f32.mrf.mxu0
  %v1794 = vadd.f32 0.0, %v1793
  %1795 = vmatprep.mubr.bf16.mxu0 %v1228
  %1796 = vmatmul.mubr.bf16.gmra.mxu0 %v1227
  %v1797 = vpop.f32.mrf.mxu0
  %v1798 = vadd.f32 0.0, %v1797
  %v1799 = vpop.f32.mrf.mxu0
  %v1800 = vadd.f32 0.0, %v1799
  %v1801 = vpop.f32.mrf.mxu0
  %v1802 = vadd.f32 0.0, %v1801
  %v1803 = vpop.f32.mrf.mxu0
  %v1804 = vadd.f32 0.0, %v1803
  %1805 = vdwg.mxu0
  %v1806 = vpack.c.bf16 %v1492, %v1488
  %v1807 = vpack.c.bf16 %v1494, %v1490
  %v1808 = vpack.c.bf16 %v1502, %v1498
  %v1809 = vpack.c.bf16 %v1504, %v1500
  %v1810 = vpack.c.bf16 %v1512, %v1508
  %v1811 = vpack.c.bf16 %v1514, %v1510
  %v1812 = vpack.c.bf16 %v1522, %v1518
  %v1813 = vpack.c.bf16 %v1524, %v1520
  %v1814 = vpack.c.bf16 %v1532, %v1528
  %v1815 = vpack.c.bf16 %v1534, %v1530
  %v1816 = vpack.c.bf16 %v1542, %v1538
  %v1817 = vpack.c.bf16 %v1544, %v1540
  %v1818 = vpack.c.bf16 %v1552, %v1548
  %v1819 = vpack.c.bf16 %v1554, %v1550
  %v1820 = vpack.c.bf16 %v1562, %v1558
  %v1821 = vpack.c.bf16 %v1564, %v1560
  %v1822 = vpack.c.bf16 %v1572, %v1568
  %v1823 = vpack.c.bf16 %v1574, %v1570
  %v1824 = vpack.c.bf16 %v1582, %v1578
  %v1825 = vpack.c.bf16 %v1584, %v1580
  %v1826 = vpack.c.bf16 %v1592, %v1588
  %v1827 = vpack.c.bf16 %v1594, %v1590
  %v1828 = vpack.c.bf16 %v1602, %v1598
  %v1829 = vpack.c.bf16 %v1604, %v1600
  %v1830 = vpack.c.bf16 %v1612, %v1608
  %v1831 = vpack.c.bf16 %v1614, %v1610
  %v1832 = vpack.c.bf16 %v1622, %v1618
  %v1833 = vpack.c.bf16 %v1624, %v1620
  %v1834 = vpack.c.bf16 %v1632, %v1628
  %v1835 = vpack.c.bf16 %v1634, %v1630
  %v1836 = vpack.c.bf16 %v1642, %v1638
  %v1837 = vpack.c.bf16 %v1644, %v1640
  %v1838 = vpack.c.bf16 %v1652, %v1648
  %v1839 = vpack.c.bf16 %v1654, %v1650
  %v1840 = vpack.c.bf16 %v1662, %v1658
  %v1841 = vpack.c.bf16 %v1664, %v1660
  %v1842 = vpack.c.bf16 %v1672, %v1668
  %v1843 = vpack.c.bf16 %v1674, %v1670
  %v1844 = vpack.c.bf16 %v1682, %v1678
  %v1845 = vpack.c.bf16 %v1684, %v1680
  %v1846 = vpack.c.bf16 %v1692, %v1688
  %v1847 = vpack.c.bf16 %v1694, %v1690
  %v1848 = vpack.c.bf16 %v1702, %v1698
  %v1849 = vpack.c.bf16 %v1704, %v1700
  %v1850 = vpack.c.bf16 %v1712, %v1708
  %v1851 = vpack.c.bf16 %v1714, %v1710
  %v1852 = vpack.c.bf16 %v1722, %v1718
  %v1853 = vpack.c.bf16 %v1724, %v1720
  %v1854 = vpack.c.bf16 %v1732, %v1728
  %v1855 = vpack.c.bf16 %v1734, %v1730
  %v1856 = vpack.c.bf16 %v1742, %v1738
  %v1857 = vpack.c.bf16 %v1744, %v1740
  %v1858 = vpack.c.bf16 %v1752, %v1748
  %v1859 = vpack.c.bf16 %v1754, %v1750
  %v1860 = vpack.c.bf16 %v1762, %v1758
  %v1861 = vpack.c.bf16 %v1764, %v1760
  %v1862 = vpack.c.bf16 %v1772, %v1768
  %v1863 = vpack.c.bf16 %v1774, %v1770
  %v1864 = vpack.c.bf16 %v1782, %v1778
  %v1865 = vpack.c.bf16 %v1784, %v1780
  %v1866 = vpack.c.bf16 %v1792, %v1788
  %v1867 = vpack.c.bf16 %v1794, %v1790
  %v1868 = vpack.c.bf16 %v1802, %v1798
  %v1869 = vpack.c.bf16 %v1804, %v1800
  %1870 = vmatprep.subr.bf16.mxu0 %v1821
  %1871 = vmatpush1.bf16.msra.mxu0 %v1820
  %1872 = vmatprep.subr.bf16.mxu0 %v1819
  %1873 = vmatpush1.bf16.msra.mxu0 %v1818
  %1874 = vmatprep.subr.bf16.mxu0 %v1817
  %1875 = vmatpush1.bf16.msra.mxu0 %v1816
  %1876 = vmatprep.subr.bf16.mxu0 %v1815
  %1877 = vmatpush1.bf16.msra.mxu0 %v1814
  %1878 = vmatprep.subr.bf16.mxu0 %v1813
  %1879 = vmatpush1.bf16.msra.mxu0 %v1812
  %1880 = vmatprep.subr.bf16.mxu0 %v1811
  %1881 = vmatpush1.bf16.msra.mxu0 %v1810
  %1882 = vmatprep.subr.bf16.mxu0 %v1809
  %1883 = vmatpush1.bf16.msra.mxu0 %v1808
  %1884 = vmatprep.subr.bf16.mxu0 %v1807
  %1885 = vmatpush1.bf16.msra.mxu0 %v1806
  %1886 = vmatprep.subr.bf16.mxu0 %v1837
  %1887 = vmatpush2.bf16.msra.mxu0 %v1836
  %1888 = vmatprep.subr.bf16.mxu0 %v1835
  %1889 = vmatpush2.bf16.msra.mxu0 %v1834
  %1890 = vmatprep.subr.bf16.mxu0 %v1833
  %1891 = vmatpush2.bf16.msra.mxu0 %v1832
  %1892 = vmatprep.subr.bf16.mxu0 %v1831
  %1893 = vmatpush2.bf16.msra.mxu0 %v1830
  %1894 = vmatprep.subr.bf16.mxu0 %v1829
  %1895 = vmatpush2.bf16.msra.mxu0 %v1828
  %1896 = vmatprep.subr.bf16.mxu0 %v1827
  %1897 = vmatpush2.bf16.msra.mxu0 %v1826
  %1898 = vmatprep.subr.bf16.mxu0 %v1825
  %1899 = vmatpush2.bf16.msra.mxu0 %v1824
  %1900 = vmatprep.subr.bf16.mxu0 %v1823
  %1901 = vmatpush2.bf16.msra.mxu0 %v1822
  %1902 = vmatprep.mubr.bf16.mxu0 %v686
  %1903 = vmatmul.mubr.bf16.gmra.mxu0 %v685
  %v1904 = vpop.f32.mrf.mxu0
  %v1905 = vadd.f32 0.0, %v1904
  %v1906 = vpop.f32.mrf.mxu0
  %v1907 = vadd.f32 0.0, %v1906
  %v1908 = vpop.f32.mrf.mxu0
  %v1909 = vadd.f32 0.0, %v1908
  %v1910 = vpop.f32.mrf.mxu0
  %v1911 = vadd.f32 0.0, %v1910
  %1912 = vmatprep.mubr.bf16.mxu0 %v690
  %1913 = vmatmul.mubr.bf16.gmra.mxu0 %v689
  %v1914 = vpop.f32.mrf.mxu0
  %v1915 = vadd.f32 0.0, %v1914
  %v1916 = vpop.f32.mrf.mxu0
  %v1917 = vadd.f32 0.0, %v1916
  %v1918 = vpop.f32.mrf.mxu0
  %v1919 = vadd.f32 0.0, %v1918
  %v1920 = vpop.f32.mrf.mxu0
  %v1921 = vadd.f32 0.0, %v1920
  %1922 = vmatprep.mubr.bf16.mxu0 %v694
  %1923 = vmatmul.mubr.bf16.gmra.mxu0 %v693
  %v1924 = vpop.f32.mrf.mxu0
  %v1925 = vadd.f32 0.0, %v1924
  %v1926 = vpop.f32.mrf.mxu0
  %v1927 = vadd.f32 0.0, %v1926
  %v1928 = vpop.f32.mrf.mxu0
  %v1929 = vadd.f32 0.0, %v1928
  %v1930 = vpop.f32.mrf.mxu0
  %v1931 = vadd.f32 0.0, %v1930
  %1932 = vmatprep.mubr.bf16.mxu0 %v698
  %1933 = vmatmul.mubr.bf16.gmra.mxu0 %v697
  %v1934 = vpop.f32.mrf.mxu0
  %v1935 = vadd.f32 0.0, %v1934
  %v1936 = vpop.f32.mrf.mxu0
  %v1937 = vadd.f32 0.0, %v1936
  %v1938 = vpop.f32.mrf.mxu0
  %v1939 = vadd.f32 0.0, %v1938
  %v1940 = vpop.f32.mrf.mxu0
  %v1941 = vadd.f32 0.0, %v1940
  %1942 = vmatprep.mubr.bf16.mxu0 %v702
  %1943 = vmatmul.mubr.bf16.gmra.mxu0 %v701
  %v1944 = vpop.f32.mrf.mxu0
  %v1945 = vadd.f32 0.0, %v1944
  %v1946 = vpop.f32.mrf.mxu0
  %v1947 = vadd.f32 0.0, %v1946
  %v1948 = vpop.f32.mrf.mxu0
  %v1949 = vadd.f32 0.0, %v1948
  %v1950 = vpop.f32.mrf.mxu0
  %v1951 = vadd.f32 0.0, %v1950
  %1952 = vmatprep.mubr.bf16.mxu0 %v706
  %1953 = vmatmul.mubr.bf16.gmra.mxu0 %v705
  %v1954 = vpop.f32.mrf.mxu0
  %v1955 = vadd.f32 0.0, %v1954
  %v1956 = vpop.f32.mrf.mxu0
  %v1957 = vadd.f32 0.0, %v1956
  %v1958 = vpop.f32.mrf.mxu0
  %v1959 = vadd.f32 0.0, %v1958
  %v1960 = vpop.f32.mrf.mxu0
  %v1961 = vadd.f32 0.0, %v1960
  %1962 = vmatprep.mubr.bf16.mxu0 %v710
  %1963 = vmatmul.mubr.bf16.gmra.mxu0 %v709
  %v1964 = vpop.f32.mrf.mxu0
  %v1965 = vadd.f32 0.0, %v1964
  %v1966 = vpop.f32.mrf.mxu0
  %v1967 = vadd.f32 0.0, %v1966
  %v1968 = vpop.f32.mrf.mxu0
  %v1969 = vadd.f32 0.0, %v1968
  %v1970 = vpop.f32.mrf.mxu0
  %v1971 = vadd.f32 0.0, %v1970
  %1972 = vmatprep.mubr.bf16.mxu0 %v714
  %1973 = vmatmul.mubr.bf16.gmra.mxu0 %v713
  %v1974 = vpop.f32.mrf.mxu0
  %v1975 = vadd.f32 0.0, %v1974
  %v1976 = vpop.f32.mrf.mxu0
  %v1977 = vadd.f32 0.0, %v1976
  %v1978 = vpop.f32.mrf.mxu0
  %v1979 = vadd.f32 0.0, %v1978
  %v1980 = vpop.f32.mrf.mxu0
  %v1981 = vadd.f32 0.0, %v1980
  %1982 = vmatprep.mubr.bf16.mxu0 %v718
  %1983 = vmatmul.mubr.bf16.gmra.mxu0 %v717
  %v1984 = vpop.f32.mrf.mxu0
  %v1985 = vadd.f32 0.0, %v1984
  %v1986 = vpop.f32.mrf.mxu0
  %v1987 = vadd.f32 0.0, %v1986
  %v1988 = vpop.f32.mrf.mxu0
  %v1989 = vadd.f32 0.0, %v1988
  %v1990 = vpop.f32.mrf.mxu0
  %v1991 = vadd.f32 0.0, %v1990
  %1992 = vmatprep.mubr.bf16.mxu0 %v722
  %1993 = vmatmul.mubr.bf16.gmra.mxu0 %v721
  %v1994 = vpop.f32.mrf.mxu0
  %v1995 = vadd.f32 0.0, %v1994
  %v1996 = vpop.f32.mrf.mxu0
  %v1997 = vadd.f32 0.0, %v1996
  %v1998 = vpop.f32.mrf.mxu0
  %v1999 = vadd.f32 0.0, %v1998
  %v2000 = vpop.f32.mrf.mxu0
  %v2001 = vadd.f32 0.0, %v2000
  %2002 = vmatprep.mubr.bf16.mxu0 %v726
  %2003 = vmatmul.mubr.bf16.gmra.mxu0 %v725
  %v2004 = vpop.f32.mrf.mxu0
  %v2005 = vadd.f32 0.0, %v2004
  %v2006 = vpop.f32.mrf.mxu0
  %v2007 = vadd.f32 0.0, %v2006
  %v2008 = vpop.f32.mrf.mxu0
  %v2009 = vadd.f32 0.0, %v2008
  %v2010 = vpop.f32.mrf.mxu0
  %v2011 = vadd.f32 0.0, %v2010
  %2012 = vmatprep.mubr.bf16.mxu0 %v730
  %2013 = vmatmul.mubr.bf16.gmra.mxu0 %v729
  %v2014 = vpop.f32.mrf.mxu0
  %v2015 = vadd.f32 0.0, %v2014
  %v2016 = vpop.f32.mrf.mxu0
  %v2017 = vadd.f32 0.0, %v2016
  %v2018 = vpop.f32.mrf.mxu0
  %v2019 = vadd.f32 0.0, %v2018
  %v2020 = vpop.f32.mrf.mxu0
  %v2021 = vadd.f32 0.0, %v2020
  %2022 = vmatprep.mubr.bf16.mxu0 %v734
  %2023 = vmatmul.mubr.bf16.gmra.mxu0 %v733
  %v2024 = vpop.f32.mrf.mxu0
  %v2025 = vadd.f32 0.0, %v2024
  %v2026 = vpop.f32.mrf.mxu0
  %v2027 = vadd.f32 0.0, %v2026
  %v2028 = vpop.f32.mrf.mxu0
  %v2029 = vadd.f32 0.0, %v2028
  %v2030 = vpop.f32.mrf.mxu0
  %v2031 = vadd.f32 0.0, %v2030
  %2032 = vmatprep.mubr.bf16.mxu0 %v738
  %2033 = vmatmul.mubr.bf16.gmra.mxu0 %v737
  %v2034 = vpop.f32.mrf.mxu0
  %v2035 = vadd.f32 0.0, %v2034
  %v2036 = vpop.f32.mrf.mxu0
  %v2037 = vadd.f32 0.0, %v2036
  %v2038 = vpop.f32.mrf.mxu0
  %v2039 = vadd.f32 0.0, %v2038
  %v2040 = vpop.f32.mrf.mxu0
  %v2041 = vadd.f32 0.0, %v2040
  %2042 = vmatprep.mubr.bf16.mxu0 %v742
  %2043 = vmatmul.mubr.bf16.gmra.mxu0 %v741
  %v2044 = vpop.f32.mrf.mxu0
  %v2045 = vadd.f32 0.0, %v2044
  %v2046 = vpop.f32.mrf.mxu0
  %v2047 = vadd.f32 0.0, %v2046
  %v2048 = vpop.f32.mrf.mxu0
  %v2049 = vadd.f32 0.0, %v2048
  %v2050 = vpop.f32.mrf.mxu0
  %v2051 = vadd.f32 0.0, %v2050
  %2052 = vmatprep.mubr.bf16.mxu0 %v746
  %2053 = vmatmul.mubr.bf16.gmra.mxu0 %v745
  %v2054 = vpop.f32.mrf.mxu0
  %v2055 = vadd.f32 0.0, %v2054
  %v2056 = vpop.f32.mrf.mxu0
  %v2057 = vadd.f32 0.0, %v2056
  %v2058 = vpop.f32.mrf.mxu0
  %v2059 = vadd.f32 0.0, %v2058
  %v2060 = vpop.f32.mrf.mxu0
  %v2061 = vadd.f32 0.0, %v2060
  %2062 = vmatprep.mubr.bf16.mxu0 %v750
  %2063 = vmatmul.mubr.bf16.gmra.mxu0 %v749
  %v2064 = vpop.f32.mrf.mxu0
  %v2065 = vadd.f32 0.0, %v2064
  %v2066 = vpop.f32.mrf.mxu0
  %v2067 = vadd.f32 0.0, %v2066
  %v2068 = vpop.f32.mrf.mxu0
  %v2069 = vadd.f32 0.0, %v2068
  %v2070 = vpop.f32.mrf.mxu0
  %v2071 = vadd.f32 0.0, %v2070
  %2072 = vmatprep.mubr.bf16.mxu0 %v754
  %2073 = vmatmul.mubr.bf16.gmra.mxu0 %v753
  %v2074 = vpop.f32.mrf.mxu0
  %v2075 = vadd.f32 0.0, %v2074
  %v2076 = vpop.f32.mrf.mxu0
  %v2077 = vadd.f32 0.0, %v2076
  %v2078 = vpop.f32.mrf.mxu0
  %v2079 = vadd.f32 0.0, %v2078
  %v2080 = vpop.f32.mrf.mxu0
  %v2081 = vadd.f32 0.0, %v2080
  %2082 = vmatprep.mubr.bf16.mxu0 %v758
  %2083 = vmatmul.mubr.bf16.gmra.mxu0 %v757
  %v2084 = vpop.f32.mrf.mxu0
  %v2085 = vadd.f32 0.0, %v2084
  %v2086 = vpop.f32.mrf.mxu0
  %v2087 = vadd.f32 0.0, %v2086
  %v2088 = vpop.f32.mrf.mxu0
  %v2089 = vadd.f32 0.0, %v2088
  %v2090 = vpop.f32.mrf.mxu0
  %v2091 = vadd.f32 0.0, %v2090
  %2092 = vmatprep.mubr.bf16.mxu0 %v762
  %2093 = vmatmul.mubr.bf16.gmra.mxu0 %v761
  %v2094 = vpop.f32.mrf.mxu0
  %v2095 = vadd.f32 0.0, %v2094
  %v2096 = vpop.f32.mrf.mxu0
  %v2097 = vadd.f32 0.0, %v2096
  %v2098 = vpop.f32.mrf.mxu0
  %v2099 = vadd.f32 0.0, %v2098
  %v2100 = vpop.f32.mrf.mxu0
  %v2101 = vadd.f32 0.0, %v2100
  %2102 = vmatprep.mubr.bf16.mxu0 %v766
  %2103 = vmatmul.mubr.bf16.gmra.mxu0 %v765
  %v2104 = vpop.f32.mrf.mxu0
  %v2105 = vadd.f32 0.0, %v2104
  %v2106 = vpop.f32.mrf.mxu0
  %v2107 = vadd.f32 0.0, %v2106
  %v2108 = vpop.f32.mrf.mxu0
  %v2109 = vadd.f32 0.0, %v2108
  %v2110 = vpop.f32.mrf.mxu0
  %v2111 = vadd.f32 0.0, %v2110
  %2112 = vmatprep.mubr.bf16.mxu0 %v770
  %2113 = vmatmul.mubr.bf16.gmra.mxu0 %v769
  %v2114 = vpop.f32.mrf.mxu0
  %v2115 = vadd.f32 0.0, %v2114
  %v2116 = vpop.f32.mrf.mxu0
  %v2117 = vadd.f32 0.0, %v2116
  %v2118 = vpop.f32.mrf.mxu0
  %v2119 = vadd.f32 0.0, %v2118
  %v2120 = vpop.f32.mrf.mxu0
  %v2121 = vadd.f32 0.0, %v2120
  %2122 = vmatprep.mubr.bf16.mxu0 %v774
  %2123 = vmatmul.mubr.bf16.gmra.mxu0 %v773
  %v2124 = vpop.f32.mrf.mxu0
  %v2125 = vadd.f32 0.0, %v2124
  %v2126 = vpop.f32.mrf.mxu0
  %v2127 = vadd.f32 0.0, %v2126
  %v2128 = vpop.f32.mrf.mxu0
  %v2129 = vadd.f32 0.0, %v2128
  %v2130 = vpop.f32.mrf.mxu0
  %v2131 = vadd.f32 0.0, %v2130
  %2132 = vmatprep.mubr.bf16.mxu0 %v778
  %2133 = vmatmul.mubr.bf16.gmra.mxu0 %v777
  %v2134 = vpop.f32.mrf.mxu0
  %v2135 = vadd.f32 0.0, %v2134
  %v2136 = vpop.f32.mrf.mxu0
  %v2137 = vadd.f32 0.0, %v2136
  %v2138 = vpop.f32.mrf.mxu0
  %v2139 = vadd.f32 0.0, %v2138
  %v2140 = vpop.f32.mrf.mxu0
  %v2141 = vadd.f32 0.0, %v2140
  %2142 = vmatprep.mubr.bf16.mxu0 %v782
  %2143 = vmatmul.mubr.bf16.gmra.mxu0 %v781
  %v2144 = vpop.f32.mrf.mxu0
  %v2145 = vadd.f32 0.0, %v2144
  %v2146 = vpop.f32.mrf.mxu0
  %v2147 = vadd.f32 0.0, %v2146
  %v2148 = vpop.f32.mrf.mxu0
  %v2149 = vadd.f32 0.0, %v2148
  %v2150 = vpop.f32.mrf.mxu0
  %v2151 = vadd.f32 0.0, %v2150
  %2152 = vmatprep.mubr.bf16.mxu0 %v786
  %2153 = vmatmul.mubr.bf16.gmra.mxu0 %v785
  %v2154 = vpop.f32.mrf.mxu0
  %v2155 = vadd.f32 0.0, %v2154
  %v2156 = vpop.f32.mrf.mxu0
  %v2157 = vadd.f32 0.0, %v2156
  %v2158 = vpop.f32.mrf.mxu0
  %v2159 = vadd.f32 0.0, %v2158
  %v2160 = vpop.f32.mrf.mxu0
  %v2161 = vadd.f32 0.0, %v2160
  %2162 = vmatprep.mubr.bf16.mxu0 %v790
  %2163 = vmatmul.mubr.bf16.gmra.mxu0 %v789
  %v2164 = vpop.f32.mrf.mxu0
  %v2165 = vadd.f32 0.0, %v2164
  %v2166 = vpop.f32.mrf.mxu0
  %v2167 = vadd.f32 0.0, %v2166
  %v2168 = vpop.f32.mrf.mxu0
  %v2169 = vadd.f32 0.0, %v2168
  %v2170 = vpop.f32.mrf.mxu0
  %v2171 = vadd.f32 0.0, %v2170
  %2172 = vmatprep.mubr.bf16.mxu0 %v794
  %2173 = vmatmul.mubr.bf16.gmra.mxu0 %v793
  %v2174 = vpop.f32.mrf.mxu0
  %v2175 = vadd.f32 0.0, %v2174
  %v2176 = vpop.f32.mrf.mxu0
  %v2177 = vadd.f32 0.0, %v2176
  %v2178 = vpop.f32.mrf.mxu0
  %v2179 = vadd.f32 0.0, %v2178
  %v2180 = vpop.f32.mrf.mxu0
  %v2181 = vadd.f32 0.0, %v2180
  %2182 = vmatprep.mubr.bf16.mxu0 %v798
  %2183 = vmatmul.mubr.bf16.gmra.mxu0 %v797
  %v2184 = vpop.f32.mrf.mxu0
  %v2185 = vadd.f32 0.0, %v2184
  %v2186 = vpop.f32.mrf.mxu0
  %v2187 = vadd.f32 0.0, %v2186
  %v2188 = vpop.f32.mrf.mxu0
  %v2189 = vadd.f32 0.0, %v2188
  %v2190 = vpop.f32.mrf.mxu0
  %v2191 = vadd.f32 0.0, %v2190
  %2192 = vmatprep.mubr.bf16.mxu0 %v802
  %2193 = vmatmul.mubr.bf16.gmra.mxu0 %v801
  %v2194 = vpop.f32.mrf.mxu0
  %v2195 = vadd.f32 0.0, %v2194
  %v2196 = vpop.f32.mrf.mxu0
  %v2197 = vadd.f32 0.0, %v2196
  %v2198 = vpop.f32.mrf.mxu0
  %v2199 = vadd.f32 0.0, %v2198
  %v2200 = vpop.f32.mrf.mxu0
  %v2201 = vadd.f32 0.0, %v2200
  %2202 = vmatprep.mubr.bf16.mxu0 %v806
  %2203 = vmatmul.mubr.bf16.gmra.mxu0 %v805
  %v2204 = vpop.f32.mrf.mxu0
  %v2205 = vadd.f32 0.0, %v2204
  %v2206 = vpop.f32.mrf.mxu0
  %v2207 = vadd.f32 0.0, %v2206
  %v2208 = vpop.f32.mrf.mxu0
  %v2209 = vadd.f32 0.0, %v2208
  %v2210 = vpop.f32.mrf.mxu0
  %v2211 = vadd.f32 0.0, %v2210
  %2212 = vmatprep.mubr.bf16.mxu0 %v810
  %2213 = vmatmul.mubr.bf16.gmra.mxu0 %v809
  %v2214 = vpop.f32.mrf.mxu0
  %v2215 = vadd.f32 0.0, %v2214
  %v2216 = vpop.f32.mrf.mxu0
  %v2217 = vadd.f32 0.0, %v2216
  %v2218 = vpop.f32.mrf.mxu0
  %v2219 = vadd.f32 0.0, %v2218
  %v2220 = vpop.f32.mrf.mxu0
  %v2221 = vadd.f32 0.0, %v2220
  %2222 = vdwg.mxu0
  %2223 = vmatprep.subr.bf16.mxu0 %v1853
  %2224 = vmatpush1.bf16.msra.mxu0 %v1852
  %2225 = vmatprep.subr.bf16.mxu0 %v1851
  %2226 = vmatpush1.bf16.msra.mxu0 %v1850
  %2227 = vmatprep.subr.bf16.mxu0 %v1849
  %2228 = vmatpush1.bf16.msra.mxu0 %v1848
  %2229 = vmatprep.subr.bf16.mxu0 %v1847
  %2230 = vmatpush1.bf16.msra.mxu0 %v1846
  %2231 = vmatprep.subr.bf16.mxu0 %v1845
  %2232 = vmatpush1.bf16.msra.mxu0 %v1844
  %2233 = vmatprep.subr.bf16.mxu0 %v1843
  %2234 = vmatpush1.bf16.msra.mxu0 %v1842
  %2235 = vmatprep.subr.bf16.mxu0 %v1841
  %2236 = vmatpush1.bf16.msra.mxu0 %v1840
  %2237 = vmatprep.subr.bf16.mxu0 %v1839
  %2238 = vmatpush1.bf16.msra.mxu0 %v1838
  %2239 = vmatprep.subr.bf16.mxu0 %v1869
  %2240 = vmatpush2.bf16.msra.mxu0 %v1868
  %2241 = vmatprep.subr.bf16.mxu0 %v1867
  %2242 = vmatpush2.bf16.msra.mxu0 %v1866
  %2243 = vmatprep.subr.bf16.mxu0 %v1865
  %2244 = vmatpush2.bf16.msra.mxu0 %v1864
  %2245 = vmatprep.subr.bf16.mxu0 %v1863
  %2246 = vmatpush2.bf16.msra.mxu0 %v1862
  %2247 = vmatprep.subr.bf16.mxu0 %v1861
  %2248 = vmatpush2.bf16.msra.mxu0 %v1860
  %2249 = vmatprep.subr.bf16.mxu0 %v1859
  %2250 = vmatpush2.bf16.msra.mxu0 %v1858
  %2251 = vmatprep.subr.bf16.mxu0 %v1857
  %2252 = vmatpush2.bf16.msra.mxu0 %v1856
  %2253 = vmatprep.subr.bf16.mxu0 %v1855
  %2254 = vmatpush2.bf16.msra.mxu0 %v1854
  %2255 = vmatprep.mubr.bf16.mxu0 %v688
  %2256 = vmatmul.mubr.bf16.gmra.mxu0 %v687
  %v2257 = vpop.f32.mrf.mxu0
  %v2258 = vadd.f32 %v1905, %v2257
  %v2259 = vpop.f32.mrf.mxu0
  %v2260 = vadd.f32 %v1907, %v2259
  %v2261 = vpop.f32.mrf.mxu0
  %v2262 = vadd.f32 %v1909, %v2261
  %v2263 = vpop.f32.mrf.mxu0
  %v2264 = vadd.f32 %v1911, %v2263
  %2265 = vmatprep.mubr.bf16.mxu0 %v692
  %2266 = vmatmul.mubr.bf16.gmra.mxu0 %v691
  %v2267 = vpop.f32.mrf.mxu0
  %v2268 = vadd.f32 %v1915, %v2267
  %v2269 = vpop.f32.mrf.mxu0
  %v2270 = vadd.f32 %v1917, %v2269
  %v2271 = vpop.f32.mrf.mxu0
  %v2272 = vadd.f32 %v1919, %v2271
  %v2273 = vpop.f32.mrf.mxu0
  %v2274 = vadd.f32 %v1921, %v2273
  %2275 = vmatprep.mubr.bf16.mxu0 %v696
  %2276 = vmatmul.mubr.bf16.gmra.mxu0 %v695
  %v2277 = vpop.f32.mrf.mxu0
  %v2278 = vadd.f32 %v1925, %v2277
  %v2279 = vpop.f32.mrf.mxu0
  %v2280 = vadd.f32 %v1927, %v2279
  %v2281 = vpop.f32.mrf.mxu0
  %v2282 = vadd.f32 %v1929, %v2281
  %v2283 = vpop.f32.mrf.mxu0
  %v2284 = vadd.f32 %v1931, %v2283
  %2285 = vmatprep.mubr.bf16.mxu0 %v700
  %2286 = vmatmul.mubr.bf16.gmra.mxu0 %v699
  %v2287 = vpop.f32.mrf.mxu0
  %v2288 = vadd.f32 %v1935, %v2287
  %v2289 = vpop.f32.mrf.mxu0
  %v2290 = vadd.f32 %v1937, %v2289
  %v2291 = vpop.f32.mrf.mxu0
  %v2292 = vadd.f32 %v1939, %v2291
  %v2293 = vpop.f32.mrf.mxu0
  %v2294 = vadd.f32 %v1941, %v2293
  %2295 = vmatprep.mubr.bf16.mxu0 %v704
  %2296 = vmatmul.mubr.bf16.gmra.mxu0 %v703
  %v2297 = vpop.f32.mrf.mxu0
  %v2298 = vadd.f32 %v1945, %v2297
  %v2299 = vpop.f32.mrf.mxu0
  %v2300 = vadd.f32 %v1947, %v2299
  %v2301 = vpop.f32.mrf.mxu0
  %v2302 = vadd.f32 %v1949, %v2301
  %v2303 = vpop.f32.mrf.mxu0
  %v2304 = vadd.f32 %v1951, %v2303
  %2305 = vmatprep.mubr.bf16.mxu0 %v708
  %2306 = vmatmul.mubr.bf16.gmra.mxu0 %v707
  %v2307 = vpop.f32.mrf.mxu0
  %v2308 = vadd.f32 %v1955, %v2307
  %v2309 = vpop.f32.mrf.mxu0
  %v2310 = vadd.f32 %v1957, %v2309
  %v2311 = vpop.f32.mrf.mxu0
  %v2312 = vadd.f32 %v1959, %v2311
  %v2313 = vpop.f32.mrf.mxu0
  %v2314 = vadd.f32 %v1961, %v2313
  %2315 = vmatprep.mubr.bf16.mxu0 %v712
  %2316 = vmatmul.mubr.bf16.gmra.mxu0 %v711
  %v2317 = vpop.f32.mrf.mxu0
  %v2318 = vadd.f32 %v1965, %v2317
  %v2319 = vpop.f32.mrf.mxu0
  %v2320 = vadd.f32 %v1967, %v2319
  %v2321 = vpop.f32.mrf.mxu0
  %v2322 = vadd.f32 %v1969, %v2321
  %v2323 = vpop.f32.mrf.mxu0
  %v2324 = vadd.f32 %v1971, %v2323
  %2325 = vmatprep.mubr.bf16.mxu0 %v716
  %2326 = vmatmul.mubr.bf16.gmra.mxu0 %v715
  %v2327 = vpop.f32.mrf.mxu0
  %v2328 = vadd.f32 %v1975, %v2327
  %v2329 = vpop.f32.mrf.mxu0
  %v2330 = vadd.f32 %v1977, %v2329
  %v2331 = vpop.f32.mrf.mxu0
  %v2332 = vadd.f32 %v1979, %v2331
  %v2333 = vpop.f32.mrf.mxu0
  %v2334 = vadd.f32 %v1981, %v2333
  %2335 = vmatprep.mubr.bf16.mxu0 %v720
  %2336 = vmatmul.mubr.bf16.gmra.mxu0 %v719
  %v2337 = vpop.f32.mrf.mxu0
  %v2338 = vadd.f32 %v1985, %v2337
  %v2339 = vpop.f32.mrf.mxu0
  %v2340 = vadd.f32 %v1987, %v2339
  %v2341 = vpop.f32.mrf.mxu0
  %v2342 = vadd.f32 %v1989, %v2341
  %v2343 = vpop.f32.mrf.mxu0
  %v2344 = vadd.f32 %v1991, %v2343
  %2345 = vmatprep.mubr.bf16.mxu0 %v724
  %2346 = vmatmul.mubr.bf16.gmra.mxu0 %v723
  %v2347 = vpop.f32.mrf.mxu0
  %v2348 = vadd.f32 %v1995, %v2347
  %v2349 = vpop.f32.mrf.mxu0
  %v2350 = vadd.f32 %v1997, %v2349
  %v2351 = vpop.f32.mrf.mxu0
  %v2352 = vadd.f32 %v1999, %v2351
  %v2353 = vpop.f32.mrf.mxu0
  %v2354 = vadd.f32 %v2001, %v2353
  %2355 = vmatprep.mubr.bf16.mxu0 %v728
  %2356 = vmatmul.mubr.bf16.gmra.mxu0 %v727
  %v2357 = vpop.f32.mrf.mxu0
  %v2358 = vadd.f32 %v2005, %v2357
  %v2359 = vpop.f32.mrf.mxu0
  %v2360 = vadd.f32 %v2007, %v2359
  %v2361 = vpop.f32.mrf.mxu0
  %v2362 = vadd.f32 %v2009, %v2361
  %v2363 = vpop.f32.mrf.mxu0
  %v2364 = vadd.f32 %v2011, %v2363
  %2365 = vmatprep.mubr.bf16.mxu0 %v732
  %2366 = vmatmul.mubr.bf16.gmra.mxu0 %v731
  %v2367 = vpop.f32.mrf.mxu0
  %v2368 = vadd.f32 %v2015, %v2367
  %v2369 = vpop.f32.mrf.mxu0
  %v2370 = vadd.f32 %v2017, %v2369
  %v2371 = vpop.f32.mrf.mxu0
  %v2372 = vadd.f32 %v2019, %v2371
  %v2373 = vpop.f32.mrf.mxu0
  %v2374 = vadd.f32 %v2021, %v2373
  %2375 = vmatprep.mubr.bf16.mxu0 %v736
  %2376 = vmatmul.mubr.bf16.gmra.mxu0 %v735
  %v2377 = vpop.f32.mrf.mxu0
  %v2378 = vadd.f32 %v2025, %v2377
  %v2379 = vpop.f32.mrf.mxu0
  %v2380 = vadd.f32 %v2027, %v2379
  %v2381 = vpop.f32.mrf.mxu0
  %v2382 = vadd.f32 %v2029, %v2381
  %v2383 = vpop.f32.mrf.mxu0
  %v2384 = vadd.f32 %v2031, %v2383
  %2385 = vmatprep.mubr.bf16.mxu0 %v740
  %2386 = vmatmul.mubr.bf16.gmra.mxu0 %v739
  %v2387 = vpop.f32.mrf.mxu0
  %v2388 = vadd.f32 %v2035, %v2387
  %v2389 = vpop.f32.mrf.mxu0
  %v2390 = vadd.f32 %v2037, %v2389
  %v2391 = vpop.f32.mrf.mxu0
  %v2392 = vadd.f32 %v2039, %v2391
  %v2393 = vpop.f32.mrf.mxu0
  %v2394 = vadd.f32 %v2041, %v2393
  %2395 = vmatprep.mubr.bf16.mxu0 %v744
  %2396 = vmatmul.mubr.bf16.gmra.mxu0 %v743
  %v2397 = vpop.f32.mrf.mxu0
  %v2398 = vadd.f32 %v2045, %v2397
  %v2399 = vpop.f32.mrf.mxu0
  %v2400 = vadd.f32 %v2047, %v2399
  %v2401 = vpop.f32.mrf.mxu0
  %v2402 = vadd.f32 %v2049, %v2401
  %v2403 = vpop.f32.mrf.mxu0
  %v2404 = vadd.f32 %v2051, %v2403
  %2405 = vmatprep.mubr.bf16.mxu0 %v748
  %2406 = vmatmul.mubr.bf16.gmra.mxu0 %v747
  %v2407 = vpop.f32.mrf.mxu0
  %v2408 = vadd.f32 %v2055, %v2407
  %v2409 = vpop.f32.mrf.mxu0
  %v2410 = vadd.f32 %v2057, %v2409
  %v2411 = vpop.f32.mrf.mxu0
  %v2412 = vadd.f32 %v2059, %v2411
  %v2413 = vpop.f32.mrf.mxu0
  %v2414 = vadd.f32 %v2061, %v2413
  %2415 = vmatprep.mubr.bf16.mxu0 %v752
  %2416 = vmatmul.mubr.bf16.gmra.mxu0 %v751
  %v2417 = vpop.f32.mrf.mxu0
  %v2418 = vadd.f32 %v2065, %v2417
  %v2419 = vpop.f32.mrf.mxu0
  %v2420 = vadd.f32 %v2067, %v2419
  %v2421 = vpop.f32.mrf.mxu0
  %v2422 = vadd.f32 %v2069, %v2421
  %v2423 = vpop.f32.mrf.mxu0
  %v2424 = vadd.f32 %v2071, %v2423
  %2425 = vmatprep.mubr.bf16.mxu0 %v756
  %2426 = vmatmul.mubr.bf16.gmra.mxu0 %v755
  %v2427 = vpop.f32.mrf.mxu0
  %v2428 = vadd.f32 %v2075, %v2427
  %v2429 = vpop.f32.mrf.mxu0
  %v2430 = vadd.f32 %v2077, %v2429
  %v2431 = vpop.f32.mrf.mxu0
  %v2432 = vadd.f32 %v2079, %v2431
  %v2433 = vpop.f32.mrf.mxu0
  %v2434 = vadd.f32 %v2081, %v2433
  %2435 = vmatprep.mubr.bf16.mxu0 %v760
  %2436 = vmatmul.mubr.bf16.gmra.mxu0 %v759
  %v2437 = vpop.f32.mrf.mxu0
  %v2438 = vadd.f32 %v2085, %v2437
  %v2439 = vpop.f32.mrf.mxu0
  %v2440 = vadd.f32 %v2087, %v2439
  %v2441 = vpop.f32.mrf.mxu0
  %v2442 = vadd.f32 %v2089, %v2441
  %v2443 = vpop.f32.mrf.mxu0
  %v2444 = vadd.f32 %v2091, %v2443
  %2445 = vmatprep.mubr.bf16.mxu0 %v764
  %2446 = vmatmul.mubr.bf16.gmra.mxu0 %v763
  %v2447 = vpop.f32.mrf.mxu0
  %v2448 = vadd.f32 %v2095, %v2447
  %v2449 = vpop.f32.mrf.mxu0
  %v2450 = vadd.f32 %v2097, %v2449
  %v2451 = vpop.f32.mrf.mxu0
  %v2452 = vadd.f32 %v2099, %v2451
  %v2453 = vpop.f32.mrf.mxu0
  %v2454 = vadd.f32 %v2101, %v2453
  %2455 = vmatprep.mubr.bf16.mxu0 %v768
  %2456 = vmatmul.mubr.bf16.gmra.mxu0 %v767
  %v2457 = vpop.f32.mrf.mxu0
  %v2458 = vadd.f32 %v2105, %v2457
  %v2459 = vpop.f32.mrf.mxu0
  %v2460 = vadd.f32 %v2107, %v2459
  %v2461 = vpop.f32.mrf.mxu0
  %v2462 = vadd.f32 %v2109, %v2461
  %v2463 = vpop.f32.mrf.mxu0
  %v2464 = vadd.f32 %v2111, %v2463
  %2465 = vmatprep.mubr.bf16.mxu0 %v772
  %2466 = vmatmul.mubr.bf16.gmra.mxu0 %v771
  %v2467 = vpop.f32.mrf.mxu0
  %v2468 = vadd.f32 %v2115, %v2467
  %v2469 = vpop.f32.mrf.mxu0
  %v2470 = vadd.f32 %v2117, %v2469
  %v2471 = vpop.f32.mrf.mxu0
  %v2472 = vadd.f32 %v2119, %v2471
  %v2473 = vpop.f32.mrf.mxu0
  %v2474 = vadd.f32 %v2121, %v2473
  %2475 = vmatprep.mubr.bf16.mxu0 %v776
  %2476 = vmatmul.mubr.bf16.gmra.mxu0 %v775
  %v2477 = vpop.f32.mrf.mxu0
  %v2478 = vadd.f32 %v2125, %v2477
  %v2479 = vpop.f32.mrf.mxu0
  %v2480 = vadd.f32 %v2127, %v2479
  %v2481 = vpop.f32.mrf.mxu0
  %v2482 = vadd.f32 %v2129, %v2481
  %v2483 = vpop.f32.mrf.mxu0
  %v2484 = vadd.f32 %v2131, %v2483
  %2485 = vmatprep.mubr.bf16.mxu0 %v780
  %2486 = vmatmul.mubr.bf16.gmra.mxu0 %v779
  %v2487 = vpop.f32.mrf.mxu0
  %v2488 = vadd.f32 %v2135, %v2487
  %v2489 = vpop.f32.mrf.mxu0
  %v2490 = vadd.f32 %v2137, %v2489
  %v2491 = vpop.f32.mrf.mxu0
  %v2492 = vadd.f32 %v2139, %v2491
  %v2493 = vpop.f32.mrf.mxu0
  %v2494 = vadd.f32 %v2141, %v2493
  %2495 = vmatprep.mubr.bf16.mxu0 %v784
  %2496 = vmatmul.mubr.bf16.gmra.mxu0 %v783
  %v2497 = vpop.f32.mrf.mxu0
  %v2498 = vadd.f32 %v2145, %v2497
  %v2499 = vpop.f32.mrf.mxu0
  %v2500 = vadd.f32 %v2147, %v2499
  %v2501 = vpop.f32.mrf.mxu0
  %v2502 = vadd.f32 %v2149, %v2501
  %v2503 = vpop.f32.mrf.mxu0
  %v2504 = vadd.f32 %v2151, %v2503
  %2505 = vmatprep.mubr.bf16.mxu0 %v788
  %2506 = vmatmul.mubr.bf16.gmra.mxu0 %v787
  %v2507 = vpop.f32.mrf.mxu0
  %v2508 = vadd.f32 %v2155, %v2507
  %v2509 = vpop.f32.mrf.mxu0
  %v2510 = vadd.f32 %v2157, %v2509
  %v2511 = vpop.f32.mrf.mxu0
  %v2512 = vadd.f32 %v2159, %v2511
  %v2513 = vpop.f32.mrf.mxu0
  %v2514 = vadd.f32 %v2161, %v2513
  %2515 = vmatprep.mubr.bf16.mxu0 %v792
  %2516 = vmatmul.mubr.bf16.gmra.mxu0 %v791
  %v2517 = vpop.f32.mrf.mxu0
  %v2518 = vadd.f32 %v2165, %v2517
  %v2519 = vpop.f32.mrf.mxu0
  %v2520 = vadd.f32 %v2167, %v2519
  %v2521 = vpop.f32.mrf.mxu0
  %v2522 = vadd.f32 %v2169, %v2521
  %v2523 = vpop.f32.mrf.mxu0
  %v2524 = vadd.f32 %v2171, %v2523
  %2525 = vmatprep.mubr.bf16.mxu0 %v796
  %2526 = vmatmul.mubr.bf16.gmra.mxu0 %v795
  %v2527 = vpop.f32.mrf.mxu0
  %v2528 = vadd.f32 %v2175, %v2527
  %v2529 = vpop.f32.mrf.mxu0
  %v2530 = vadd.f32 %v2177, %v2529
  %v2531 = vpop.f32.mrf.mxu0
  %v2532 = vadd.f32 %v2179, %v2531
  %v2533 = vpop.f32.mrf.mxu0
  %v2534 = vadd.f32 %v2181, %v2533
  %2535 = vmatprep.mubr.bf16.mxu0 %v800
  %2536 = vmatmul.mubr.bf16.gmra.mxu0 %v799
  %v2537 = vpop.f32.mrf.mxu0
  %v2538 = vadd.f32 %v2185, %v2537
  %v2539 = vpop.f32.mrf.mxu0
  %v2540 = vadd.f32 %v2187, %v2539
  %v2541 = vpop.f32.mrf.mxu0
  %v2542 = vadd.f32 %v2189, %v2541
  %v2543 = vpop.f32.mrf.mxu0
  %v2544 = vadd.f32 %v2191, %v2543
  %2545 = vmatprep.mubr.bf16.mxu0 %v804
  %2546 = vmatmul.mubr.bf16.gmra.mxu0 %v803
  %v2547 = vpop.f32.mrf.mxu0
  %v2548 = vadd.f32 %v2195, %v2547
  %v2549 = vpop.f32.mrf.mxu0
  %v2550 = vadd.f32 %v2197, %v2549
  %v2551 = vpop.f32.mrf.mxu0
  %v2552 = vadd.f32 %v2199, %v2551
  %v2553 = vpop.f32.mrf.mxu0
  %v2554 = vadd.f32 %v2201, %v2553
  %2555 = vmatprep.mubr.bf16.mxu0 %v808
  %2556 = vmatmul.mubr.bf16.gmra.mxu0 %v807
  %v2557 = vpop.f32.mrf.mxu0
  %v2558 = vadd.f32 %v2205, %v2557
  %v2559 = vpop.f32.mrf.mxu0
  %v2560 = vadd.f32 %v2207, %v2559
  %v2561 = vpop.f32.mrf.mxu0
  %v2562 = vadd.f32 %v2209, %v2561
  %v2563 = vpop.f32.mrf.mxu0
  %v2564 = vadd.f32 %v2211, %v2563
  %2565 = vmatprep.mubr.bf16.mxu0 %v812
  %2566 = vmatmul.mubr.bf16.gmra.mxu0 %v811
  %v2567 = vpop.f32.mrf.mxu0
  %v2568 = vadd.f32 %v2215, %v2567
  %v2569 = vpop.f32.mrf.mxu0
  %v2570 = vadd.f32 %v2217, %v2569
  %v2571 = vpop.f32.mrf.mxu0
  %v2572 = vadd.f32 %v2219, %v2571
  %v2573 = vpop.f32.mrf.mxu0
  %v2574 = vadd.f32 %v2221, %v2573
  %2575 = vdwg.mxu0
  %2577 = vset.pattern.permute.xlu0 0
  %2578 = vperm.xlu0 %2577, %v813
  %v2579 = vpop.permute.xlu0 %2578
  %2582 = vset.pattern.permute.xlu0 0
  %2583 = vperm.xlu0 %2582, %v814
  %v2584 = vpop.permute.xlu0 %2583
  %2587 = vset.pattern.permute.xlu0 0
  %2588 = vperm.xlu0 %2587, %v815
  %v2589 = vpop.permute.xlu0 %2588
  %2592 = vset.pattern.permute.xlu0 0
  %2593 = vperm.xlu0 %2592, %v816
  %v2594 = vpop.permute.xlu0 %2593
  %2597 = vset.pattern.permute.xlu0 0
  %2598 = vperm.xlu0 %2597, %v817
  %v2599 = vpop.permute.xlu0 %2598
  %2602 = vset.pattern.permute.xlu0 0
  %2603 = vperm.xlu0 %2602, %v818
  %v2604 = vpop.permute.xlu0 %2603
  %2607 = vset.pattern.permute.xlu0 0
  %2608 = vperm.xlu0 %2607, %v819
  %v2609 = vpop.permute.xlu0 %2608
  %2612 = vset.pattern.permute.xlu0 0
  %2613 = vperm.xlu0 %2612, %v820
  %v2614 = vpop.permute.xlu0 %2613
  %2617 = vset.pattern.permute.xlu0 0
  %2618 = vperm.xlu0 %2617, %v821
  %v2619 = vpop.permute.xlu0 %2618
  %2622 = vset.pattern.permute.xlu0 0
  %2623 = vperm.xlu0 %2622, %v822
  %v2624 = vpop.permute.xlu0 %2623
  %2627 = vset.pattern.permute.xlu0 0
  %2628 = vperm.xlu0 %2627, %v823
  %v2629 = vpop.permute.xlu0 %2628
  %2632 = vset.pattern.permute.xlu0 0
  %2633 = vperm.xlu0 %2632, %v824
  %v2634 = vpop.permute.xlu0 %2633
  %2637 = vset.pattern.permute.xlu0 0
  %2638 = vperm.xlu0 %2637, %v825
  %v2639 = vpop.permute.xlu0 %2638
  %2642 = vset.pattern.permute.xlu0 0
  %2643 = vperm.xlu0 %2642, %v826
  %v2644 = vpop.permute.xlu0 %2643
  %2647 = vset.pattern.permute.xlu0 0
  %2648 = vperm.xlu0 %2647, %v827
  %v2649 = vpop.permute.xlu0 %2648
  %2652 = vset.pattern.permute.xlu0 0
  %2653 = vperm.xlu0 %2652, %v828
  %v2654 = vpop.permute.xlu0 %2653
  %2657 = vset.pattern.permute.xlu0 0
  %2658 = vperm.xlu0 %2657, %v829
  %v2659 = vpop.permute.xlu0 %2658
  %2662 = vset.pattern.permute.xlu0 0
  %2663 = vperm.xlu0 %2662, %v830
  %v2664 = vpop.permute.xlu0 %2663
  %2667 = vset.pattern.permute.xlu0 0
  %2668 = vperm.xlu0 %2667, %v831
  %v2669 = vpop.permute.xlu0 %2668
  %2672 = vset.pattern.permute.xlu0 0
  %2673 = vperm.xlu0 %2672, %v832
  %v2674 = vpop.permute.xlu0 %2673
  %2677 = vset.pattern.permute.xlu0 0
  %2678 = vperm.xlu0 %2677, %v833
  %v2679 = vpop.permute.xlu0 %2678
  %2682 = vset.pattern.permute.xlu0 0
  %2683 = vperm.xlu0 %2682, %v834
  %v2684 = vpop.permute.xlu0 %2683
  %2687 = vset.pattern.permute.xlu0 0
  %2688 = vperm.xlu0 %2687, %v835
  %v2689 = vpop.permute.xlu0 %2688
  %2692 = vset.pattern.permute.xlu0 0
  %2693 = vperm.xlu0 %2692, %v836
  %v2694 = vpop.permute.xlu0 %2693
  %2697 = vset.pattern.permute.xlu0 0
  %2698 = vperm.xlu0 %2697, %v837
  %v2699 = vpop.permute.xlu0 %2698
  %2702 = vset.pattern.permute.xlu0 0
  %2703 = vperm.xlu0 %2702, %v838
  %v2704 = vpop.permute.xlu0 %2703
  %2707 = vset.pattern.permute.xlu0 0
  %2708 = vperm.xlu0 %2707, %v839
  %v2709 = vpop.permute.xlu0 %2708
  %2712 = vset.pattern.permute.xlu0 0
  %2713 = vperm.xlu0 %2712, %v840
  %v2714 = vpop.permute.xlu0 %2713
  %2717 = vset.pattern.permute.xlu0 0
  %2718 = vperm.xlu0 %2717, %v841
  %v2719 = vpop.permute.xlu0 %2718
  %2722 = vset.pattern.permute.xlu0 0
  %2723 = vperm.xlu0 %2722, %v842
  %v2724 = vpop.permute.xlu0 %2723
  %2727 = vset.pattern.permute.xlu0 0
  %2728 = vperm.xlu0 %2727, %v843
  %v2729 = vpop.permute.xlu0 %2728
  %2732 = vset.pattern.permute.xlu0 0
  %2733 = vperm.xlu0 %2732, %v844
  %v2734 = vpop.permute.xlu0 %2733
  %2737 = vset.pattern.permute.xlu0 0
  %2738 = vperm.xlu0 %2737, %v845
  %v2739 = vpop.permute.xlu0 %2738
  %2742 = vset.pattern.permute.xlu0 0
  %2743 = vperm.xlu0 %2742, %v846
  %v2744 = vpop.permute.xlu0 %2743
  %2747 = vset.pattern.permute.xlu0 0
  %2748 = vperm.xlu0 %2747, %v847
  %v2749 = vpop.permute.xlu0 %2748
  %2752 = vset.pattern.permute.xlu0 0
  %2753 = vperm.xlu0 %2752, %v848
  %v2754 = vpop.permute.xlu0 %2753
  %2757 = vset.pattern.permute.xlu0 0
  %2758 = vperm.xlu0 %2757, %v849
  %v2759 = vpop.permute.xlu0 %2758
  %2762 = vset.pattern.permute.xlu0 0
  %2763 = vperm.xlu0 %2762, %v850
  %v2764 = vpop.permute.xlu0 %2763
  %2767 = vset.pattern.permute.xlu0 0
  %2768 = vperm.xlu0 %2767, %v851
  %v2769 = vpop.permute.xlu0 %2768
  %2772 = vset.pattern.permute.xlu0 0
  %2773 = vperm.xlu0 %2772, %v852
  %v2774 = vpop.permute.xlu0 %2773
  %2777 = vset.pattern.permute.xlu0 0
  %2778 = vperm.xlu0 %2777, %v853
  %v2779 = vpop.permute.xlu0 %2778
  %2782 = vset.pattern.permute.xlu0 0
  %2783 = vperm.xlu0 %2782, %v854
  %v2784 = vpop.permute.xlu0 %2783
  %2787 = vset.pattern.permute.xlu0 0
  %2788 = vperm.xlu0 %2787, %v855
  %v2789 = vpop.permute.xlu0 %2788
  %2792 = vset.pattern.permute.xlu0 0
  %2793 = vperm.xlu0 %2792, %v856
  %v2794 = vpop.permute.xlu0 %2793
  %2797 = vset.pattern.permute.xlu0 0
  %2798 = vperm.xlu0 %2797, %v857
  %v2799 = vpop.permute.xlu0 %2798
  %2802 = vset.pattern.permute.xlu0 0
  %2803 = vperm.xlu0 %2802, %v858
  %v2804 = vpop.permute.xlu0 %2803
  %2807 = vset.pattern.permute.xlu0 0
  %2808 = vperm.xlu0 %2807, %v859
  %v2809 = vpop.permute.xlu0 %2808
  %2812 = vset.pattern.permute.xlu0 0
  %2813 = vperm.xlu0 %2812, %v860
  %v2814 = vpop.permute.xlu0 %2813
  %2817 = vset.pattern.permute.xlu0 0
  %2818 = vperm.xlu0 %2817, %v861
  %v2819 = vpop.permute.xlu0 %2818
  %2822 = vset.pattern.permute.xlu0 0
  %2823 = vperm.xlu0 %2822, %v862
  %v2824 = vpop.permute.xlu0 %2823
  %2827 = vset.pattern.permute.xlu0 0
  %2828 = vperm.xlu0 %2827, %v863
  %v2829 = vpop.permute.xlu0 %2828
  %2832 = vset.pattern.permute.xlu0 0
  %2833 = vperm.xlu0 %2832, %v864
  %v2834 = vpop.permute.xlu0 %2833
  %2837 = vset.pattern.permute.xlu0 0
  %2838 = vperm.xlu0 %2837, %v865
  %v2839 = vpop.permute.xlu0 %2838
  %2842 = vset.pattern.permute.xlu0 0
  %2843 = vperm.xlu0 %2842, %v866
  %v2844 = vpop.permute.xlu0 %2843
  %2847 = vset.pattern.permute.xlu0 0
  %2848 = vperm.xlu0 %2847, %v867
  %v2849 = vpop.permute.xlu0 %2848
  %2852 = vset.pattern.permute.xlu0 0
  %2853 = vperm.xlu0 %2852, %v868
  %v2854 = vpop.permute.xlu0 %2853
  %2857 = vset.pattern.permute.xlu0 0
  %2858 = vperm.xlu0 %2857, %v869
  %v2859 = vpop.permute.xlu0 %2858
  %2862 = vset.pattern.permute.xlu0 0
  %2863 = vperm.xlu0 %2862, %v870
  %v2864 = vpop.permute.xlu0 %2863
  %2867 = vset.pattern.permute.xlu0 0
  %2868 = vperm.xlu0 %2867, %v871
  %v2869 = vpop.permute.xlu0 %2868
  %2872 = vset.pattern.permute.xlu0 0
  %2873 = vperm.xlu0 %2872, %v872
  %v2874 = vpop.permute.xlu0 %2873
  %2877 = vset.pattern.permute.xlu0 0
  %2878 = vperm.xlu0 %2877, %v873
  %v2879 = vpop.permute.xlu0 %2878
  %2882 = vset.pattern.permute.xlu0 0
  %2883 = vperm.xlu0 %2882, %v874
  %v2884 = vpop.permute.xlu0 %2883
  %2887 = vset.pattern.permute.xlu0 0
  %2888 = vperm.xlu0 %2887, %v875
  %v2889 = vpop.permute.xlu0 %2888
  %2892 = vset.pattern.permute.xlu0 0
  %2893 = vperm.xlu0 %2892, %v876
  %v2894 = vpop.permute.xlu0 %2893
  %v2896 = vmul.f32 %v2579, %v2258
  %v2897 = vmul.f32 %v2579, %v2260
  %v2898 = vmul.f32 %v2584, %v2262
  %v2899 = vmul.f32 %v2584, %v2264
  %v2900 = vmul.f32 %v2589, %v2268
  %v2901 = vmul.f32 %v2589, %v2270
  %v2902 = vmul.f32 %v2594, %v2272
  %v2903 = vmul.f32 %v2594, %v2274
  %v2904 = vmul.f32 %v2599, %v2278
  %v2905 = vmul.f32 %v2599, %v2280
  %v2906 = vmul.f32 %v2604, %v2282
  %v2907 = vmul.f32 %v2604, %v2284
  %v2908 = vmul.f32 %v2609, %v2288
  %v2909 = vmul.f32 %v2609, %v2290
  %v2910 = vmul.f32 %v2614, %v2292
  %v2911 = vmul.f32 %v2614, %v2294
  %v2912 = vmul.f32 %v2619, %v2298
  %v2913 = vmul.f32 %v2619, %v2300
  %v2914 = vmul.f32 %v2624, %v2302
  %v2915 = vmul.f32 %v2624, %v2304
  %v2916 = vmul.f32 %v2629, %v2308
  %v2917 = vmul.f32 %v2629, %v2310
  %v2918 = vmul.f32 %v2634, %v2312
  %v2919 = vmul.f32 %v2634, %v2314
  %v2920 = vmul.f32 %v2639, %v2318
  %v2921 = vmul.f32 %v2639, %v2320
  %v2922 = vmul.f32 %v2644, %v2322
  %v2923 = vmul.f32 %v2644, %v2324
  %v2924 = vmul.f32 %v2649, %v2328
  %v2925 = vmul.f32 %v2649, %v2330
  %v2926 = vmul.f32 %v2654, %v2332
  %v2927 = vmul.f32 %v2654, %v2334
  %v2928 = vmul.f32 %v2659, %v2338
  %v2929 = vmul.f32 %v2659, %v2340
  %v2930 = vmul.f32 %v2664, %v2342
  %v2931 = vmul.f32 %v2664, %v2344
  %v2932 = vmul.f32 %v2669, %v2348
  %v2933 = vmul.f32 %v2669, %v2350
  %v2934 = vmul.f32 %v2674, %v2352
  %v2935 = vmul.f32 %v2674, %v2354
  %v2936 = vmul.f32 %v2679, %v2358
  %v2937 = vmul.f32 %v2679, %v2360
  %v2938 = vmul.f32 %v2684, %v2362
  %v2939 = vmul.f32 %v2684, %v2364
  %v2940 = vmul.f32 %v2689, %v2368
  %v2941 = vmul.f32 %v2689, %v2370
  %v2942 = vmul.f32 %v2694, %v2372
  %v2943 = vmul.f32 %v2694, %v2374
  %v2944 = vmul.f32 %v2699, %v2378
  %v2945 = vmul.f32 %v2699, %v2380
  %v2946 = vmul.f32 %v2704, %v2382
  %v2947 = vmul.f32 %v2704, %v2384
  %v2948 = vmul.f32 %v2709, %v2388
  %v2949 = vmul.f32 %v2709, %v2390
  %v2950 = vmul.f32 %v2714, %v2392
  %v2951 = vmul.f32 %v2714, %v2394
  %v2952 = vmul.f32 %v2719, %v2398
  %v2953 = vmul.f32 %v2719, %v2400
  %v2954 = vmul.f32 %v2724, %v2402
  %v2955 = vmul.f32 %v2724, %v2404
  %v2956 = vmul.f32 %v2729, %v2408
  %v2957 = vmul.f32 %v2729, %v2410
  %v2958 = vmul.f32 %v2734, %v2412
  %v2959 = vmul.f32 %v2734, %v2414
  %v2960 = vmul.f32 %v2739, %v2418
  %v2961 = vmul.f32 %v2739, %v2420
  %v2962 = vmul.f32 %v2744, %v2422
  %v2963 = vmul.f32 %v2744, %v2424
  %v2964 = vmul.f32 %v2749, %v2428
  %v2965 = vmul.f32 %v2749, %v2430
  %v2966 = vmul.f32 %v2754, %v2432
  %v2967 = vmul.f32 %v2754, %v2434
  %v2968 = vmul.f32 %v2759, %v2438
  %v2969 = vmul.f32 %v2759, %v2440
  %v2970 = vmul.f32 %v2764, %v2442
  %v2971 = vmul.f32 %v2764, %v2444
  %v2972 = vmul.f32 %v2769, %v2448
  %v2973 = vmul.f32 %v2769, %v2450
  %v2974 = vmul.f32 %v2774, %v2452
  %v2975 = vmul.f32 %v2774, %v2454
  %v2976 = vmul.f32 %v2779, %v2458
  %v2977 = vmul.f32 %v2779, %v2460
  %v2978 = vmul.f32 %v2784, %v2462
  %v2979 = vmul.f32 %v2784, %v2464
  %v2980 = vmul.f32 %v2789, %v2468
  %v2981 = vmul.f32 %v2789, %v2470
  %v2982 = vmul.f32 %v2794, %v2472
  %v2983 = vmul.f32 %v2794, %v2474
  %v2984 = vmul.f32 %v2799, %v2478
  %v2985 = vmul.f32 %v2799, %v2480
  %v2986 = vmul.f32 %v2804, %v2482
  %v2987 = vmul.f32 %v2804, %v2484
  %v2988 = vmul.f32 %v2809, %v2488
  %v2989 = vmul.f32 %v2809, %v2490
  %v2990 = vmul.f32 %v2814, %v2492
  %v2991 = vmul.f32 %v2814, %v2494
  %v2992 = vmul.f32 %v2819, %v2498
  %v2993 = vmul.f32 %v2819, %v2500
  %v2994 = vmul.f32 %v2824, %v2502
  %v2995 = vmul.f32 %v2824, %v2504
  %v2996 = vmul.f32 %v2829, %v2508
  %v2997 = vmul.f32 %v2829, %v2510
  %v2998 = vmul.f32 %v2834, %v2512
  %v2999 = vmul.f32 %v2834, %v2514
  %v3000 = vmul.f32 %v2839, %v2518
  %v3001 = vmul.f32 %v2839, %v2520
  %v3002 = vmul.f32 %v2844, %v2522
  %v3003 = vmul.f32 %v2844, %v2524
  %v3004 = vmul.f32 %v2849, %v2528
  %v3005 = vmul.f32 %v2849, %v2530
  %v3006 = vmul.f32 %v2854, %v2532
  %v3007 = vmul.f32 %v2854, %v2534
  %v3008 = vmul.f32 %v2859, %v2538
  %v3009 = vmul.f32 %v2859, %v2540
  %v3010 = vmul.f32 %v2864, %v2542
  %v3011 = vmul.f32 %v2864, %v2544
  %v3012 = vmul.f32 %v2869, %v2548
  %v3013 = vmul.f32 %v2869, %v2550
  %v3014 = vmul.f32 %v2874, %v2552
  %v3015 = vmul.f32 %v2874, %v2554
  %v3016 = vmul.f32 %v2879, %v2558
  %v3017 = vmul.f32 %v2879, %v2560
  %v3018 = vmul.f32 %v2884, %v2562
  %v3019 = vmul.f32 %v2884, %v2564
  %v3020 = vmul.f32 %v2889, %v2568
  %v3021 = vmul.f32 %v2889, %v2570
  %v3022 = vmul.f32 %v2894, %v2572
  %v3023 = vmul.f32 %v2894, %v2574
  %v3024 = vmax.f32 %v2896, 0.0
  %v3025 = vmax.f32 %v2897, 0.0
  %v3026 = vmax.f32 %v2898, 0.0
  %v3027 = vmax.f32 %v2899, 0.0
  %v3028 = vmax.f32 %v2900, 0.0
  %v3029 = vmax.f32 %v2901, 0.0
  %v3030 = vmax.f32 %v2902, 0.0
  %v3031 = vmax.f32 %v2903, 0.0
  %v3032 = vmax.f32 %v2904, 0.0
  %v3033 = vmax.f32 %v2905, 0.0
  %v3034 = vmax.f32 %v2906, 0.0
  %v3035 = vmax.f32 %v2907, 0.0
  %v3036 = vmax.f32 %v2908, 0.0
  %v3037 = vmax.f32 %v2909, 0.0
  %v3038 = vmax.f32 %v2910, 0.0
  %v3039 = vmax.f32 %v2911, 0.0
  %v3040 = vmax.f32 %v2912, 0.0
  %v3041 = vmax.f32 %v2913, 0.0
  %v3042 = vmax.f32 %v2914, 0.0
  %v3043 = vmax.f32 %v2915, 0.0
  %v3044 = vmax.f32 %v2916, 0.0
  %v3045 = vmax.f32 %v2917, 0.0
  %v3046 = vmax.f32 %v2918, 0.0
  %v3047 = vmax.f32 %v2919, 0.0
  %v3048 = vmax.f32 %v2920, 0.0
  %v3049 = vmax.f32 %v2921, 0.0
  %v3050 = vmax.f32 %v2922, 0.0
  %v3051 = vmax.f32 %v2923, 0.0
  %v3052 = vmax.f32 %v2924, 0.0
  %v3053 = vmax.f32 %v2925, 0.0
  %v3054 = vmax.f32 %v2926, 0.0
  %v3055 = vmax.f32 %v2927, 0.0
  %v3056 = vmax.f32 %v2928, 0.0
  %v3057 = vmax.f32 %v2929, 0.0
  %v3058 = vmax.f32 %v2930, 0.0
  %v3059 = vmax.f32 %v2931, 0.0
  %v3060 = vmax.f32 %v2932, 0.0
  %v3061 = vmax.f32 %v2933, 0.0
  %v3062 = vmax.f32 %v2934, 0.0
  %v3063 = vmax.f32 %v2935, 0.0
  %v3064 = vmax.f32 %v2936, 0.0
  %v3065 = vmax.f32 %v2937, 0.0
  %v3066 = vmax.f32 %v2938, 0.0
  %v3067 = vmax.f32 %v2939, 0.0
  %v3068 = vmax.f32 %v2940, 0.0
  %v3069 = vmax.f32 %v2941, 0.0
  %v3070 = vmax.f32 %v2942, 0.0
  %v3071 = vmax.f32 %v2943, 0.0
  %v3072 = vmax.f32 %v2944, 0.0
  %v3073 = vmax.f32 %v2945, 0.0
  %v3074 = vmax.f32 %v2946, 0.0
  %v3075 = vmax.f32 %v2947, 0.0
  %v3076 = vmax.f32 %v2948, 0.0
  %v3077 = vmax.f32 %v2949, 0.0
  %v3078 = vmax.f32 %v2950, 0.0
  %v3079 = vmax.f32 %v2951, 0.0
  %v3080 = vmax.f32 %v2952, 0.0
  %v3081 = vmax.f32 %v2953, 0.0
  %v3082 = vmax.f32 %v2954, 0.0
  %v3083 = vmax.f32 %v2955, 0.0
  %v3084 = vmax.f32 %v2956, 0.0
  %v3085 = vmax.f32 %v2957, 0.0
  %v3086 = vmax.f32 %v2958, 0.0
  %v3087 = vmax.f32 %v2959, 0.0
  %v3088 = vmax.f32 %v2960, 0.0
  %v3089 = vmax.f32 %v2961, 0.0
  %v3090 = vmax.f32 %v2962, 0.0
  %v3091 = vmax.f32 %v2963, 0.0
  %v3092 = vmax.f32 %v2964, 0.0
  %v3093 = vmax.f32 %v2965, 0.0
  %v3094 = vmax.f32 %v2966, 0.0
  %v3095 = vmax.f32 %v2967, 0.0
  %v3096 = vmax.f32 %v2968, 0.0
  %v3097 = vmax.f32 %v2969, 0.0
  %v3098 = vmax.f32 %v2970, 0.0
  %v3099 = vmax.f32 %v2971, 0.0
  %v3100 = vmax.f32 %v2972, 0.0
  %v3101 = vmax.f32 %v2973, 0.0
  %v3102 = vmax.f32 %v2974, 0.0
  %v3103 = vmax.f32 %v2975, 0.0
  %v3104 = vmax.f32 %v2976, 0.0
  %v3105 = vmax.f32 %v2977, 0.0
  %v3106 = vmax.f32 %v2978, 0.0
  %v3107 = vmax.f32 %v2979, 0.0
  %v3108 = vmax.f32 %v2980, 0.0
  %v3109 = vmax.f32 %v2981, 0.0
  %v3110 = vmax.f32 %v2982, 0.0
  %v3111 = vmax.f32 %v2983, 0.0
  %v3112 = vmax.f32 %v2984, 0.0
  %v3113 = vmax.f32 %v2985, 0.0
  %v3114 = vmax.f32 %v2986, 0.0
  %v3115 = vmax.f32 %v2987, 0.0
  %v3116 = vmax.f32 %v2988, 0.0
  %v3117 = vmax.f32 %v2989, 0.0
  %v3118 = vmax.f32 %v2990, 0.0
  %v3119 = vmax.f32 %v2991, 0.0
  %v3120 = vmax.f32 %v2992, 0.0
  %v3121 = vmax.f32 %v2993, 0.0
  %v3122 = vmax.f32 %v2994, 0.0
  %v3123 = vmax.f32 %v2995, 0.0
  %v3124 = vmax.f32 %v2996, 0.0
  %v3125 = vmax.f32 %v2997, 0.0
  %v3126 = vmax.f32 %v2998, 0.0
  %v3127 = vmax.f32 %v2999, 0.0
  %v3128 = vmax.f32 %v3000, 0.0
  %v3129 = vmax.f32 %v3001, 0.0
  %v3130 = vmax.f32 %v3002, 0.0
  %v3131 = vmax.f32 %v3003, 0.0
  %v3132 = vmax.f32 %v3004, 0.0
  %v3133 = vmax.f32 %v3005, 0.0
  %v3134 = vmax.f32 %v3006, 0.0
  %v3135 = vmax.f32 %v3007, 0.0
  %v3136 = vmax.f32 %v3008, 0.0
  %v3137 = vmax.f32 %v3009, 0.0
  %v3138 = vmax.f32 %v3010, 0.0
  %v3139 = vmax.f32 %v3011, 0.0
  %v3140 = vmax.f32 %v3012, 0.0
  %v3141 = vmax.f32 %v3013, 0.0
  %v3142 = vmax.f32 %v3014, 0.0
  %v3143 = vmax.f32 %v3015, 0.0
  %v3144 = vmax.f32 %v3016, 0.0
  %v3145 = vmax.f32 %v3017, 0.0
  %v3146 = vmax.f32 %v3018, 0.0
  %v3147 = vmax.f32 %v3019, 0.0
  %v3148 = vmax.f32 %v3020, 0.0
  %v3149 = vmax.f32 %v3021, 0.0
  %v3150 = vmax.f32 %v3022, 0.0
  %v3151 = vmax.f32 %v3023, 0.0
  %v3152 = vpack.c.bf16 %v3026, %v3024
  %v3153 = vpack.c.bf16 %v3027, %v3025
  %v3154 = vpack.c.bf16 %v3030, %v3028
  %v3155 = vpack.c.bf16 %v3031, %v3029
  %v3156 = vpack.c.bf16 %v3034, %v3032
  %v3157 = vpack.c.bf16 %v3035, %v3033
  %v3158 = vpack.c.bf16 %v3038, %v3036
  %v3159 = vpack.c.bf16 %v3039, %v3037
  %v3160 = vpack.c.bf16 %v3042, %v3040
  %v3161 = vpack.c.bf16 %v3043, %v3041
  %v3162 = vpack.c.bf16 %v3046, %v3044
  %v3163 = vpack.c.bf16 %v3047, %v3045
  %v3164 = vpack.c.bf16 %v3050, %v3048
  %v3165 = vpack.c.bf16 %v3051, %v3049
  %v3166 = vpack.c.bf16 %v3054, %v3052
  %v3167 = vpack.c.bf16 %v3055, %v3053
  %v3168 = vpack.c.bf16 %v3058, %v3056
  %v3169 = vpack.c.bf16 %v3059, %v3057
  %v3170 = vpack.c.bf16 %v3062, %v3060
  %v3171 = vpack.c.bf16 %v3063, %v3061
  %v3172 = vpack.c.bf16 %v3066, %v3064
  %v3173 = vpack.c.bf16 %v3067, %v3065
  %v3174 = vpack.c.bf16 %v3070, %v3068
  %v3175 = vpack.c.bf16 %v3071, %v3069
  %v3176 = vpack.c.bf16 %v3074, %v3072
  %v3177 = vpack.c.bf16 %v3075, %v3073
  %v3178 = vpack.c.bf16 %v3078, %v3076
  %v3179 = vpack.c.bf16 %v3079, %v3077
  %v3180 = vpack.c.bf16 %v3082, %v3080
  %v3181 = vpack.c.bf16 %v3083, %v3081
  %v3182 = vpack.c.bf16 %v3086, %v3084
  %v3183 = vpack.c.bf16 %v3087, %v3085
  %v3184 = vpack.c.bf16 %v3090, %v3088
  %v3185 = vpack.c.bf16 %v3091, %v3089
  %v3186 = vpack.c.bf16 %v3094, %v3092
  %v3187 = vpack.c.bf16 %v3095, %v3093
  %v3188 = vpack.c.bf16 %v3098, %v3096
  %v3189 = vpack.c.bf16 %v3099, %v3097
  %v3190 = vpack.c.bf16 %v3102, %v3100
  %v3191 = vpack.c.bf16 %v3103, %v3101
  %v3192 = vpack.c.bf16 %v3106, %v3104
  %v3193 = vpack.c.bf16 %v3107, %v3105
  %v3194 = vpack.c.bf16 %v3110, %v3108
  %v3195 = vpack.c.bf16 %v3111, %v3109
  %v3196 = vpack.c.bf16 %v3114, %v3112
  %v3197 = vpack.c.bf16 %v3115, %v3113
  %v3198 = vpack.c.bf16 %v3118, %v3116
  %v3199 = vpack.c.bf16 %v3119, %v3117
  %v3200 = vpack.c.bf16 %v3122, %v3120
  %v3201 = vpack.c.bf16 %v3123, %v3121
  %v3202 = vpack.c.bf16 %v3126, %v3124
  %v3203 = vpack.c.bf16 %v3127, %v3125
  %v3204 = vpack.c.bf16 %v3130, %v3128
  %v3205 = vpack.c.bf16 %v3131, %v3129
  %v3206 = vpack.c.bf16 %v3134, %v3132
  %v3207 = vpack.c.bf16 %v3135, %v3133
  %v3208 = vpack.c.bf16 %v3138, %v3136
  %v3209 = vpack.c.bf16 %v3139, %v3137
  %v3210 = vpack.c.bf16 %v3142, %v3140
  %v3211 = vpack.c.bf16 %v3143, %v3141
  %v3212 = vpack.c.bf16 %v3146, %v3144
  %v3213 = vpack.c.bf16 %v3147, %v3145
  %v3214 = vpack.c.bf16 %v3150, %v3148
  %v3215 = vpack.c.bf16 %v3151, %v3149
  %v3216 = vld [vmem:[%s5] sm:$0xff]
  %v3217 = vld [vmem:[%s5 + $0x8] sm:$0xff]
  %v3218 = vld [vmem:[%s5 + $0x10] sm:$0xff]
  %v3219 = vld [vmem:[%s5 + $0x18] sm:$0xff]
  %v3220 = vld [vmem:[%s5 + $0x20] sm:$0xff]
  %v3221 = vld [vmem:[%s5 + $0x28] sm:$0xff]
  %v3222 = vld [vmem:[%s5 + $0x30] sm:$0xff]
  %v3223 = vld [vmem:[%s5 + $0x38] sm:$0xff]
  %v3224 = vld [vmem:[%s5 + $0x40] sm:$0xff]
  %v3225 = vld [vmem:[%s5 + $0x48] sm:$0xff]
  %v3226 = vld [vmem:[%s5 + $0x50] sm:$0xff]
  %v3227 = vld [vmem:[%s5 + $0x58] sm:$0xff]
  %v3228 = vld [vmem:[%s5 + $0x60] sm:$0xff]
  %v3229 = vld [vmem:[%s5 + $0x68] sm:$0xff]
  %v3230 = vld [vmem:[%s5 + $0x70] sm:$0xff]
  %v3231 = vld [vmem:[%s5 + $0x78] sm:$0xff]
  %v3232 = vld [vmem:[%s5 + $0x80] sm:$0xff]
  %v3233 = vld [vmem:[%s5 + $0x88] sm:$0xff]
  %v3234 = vld [vmem:[%s5 + $0x90] sm:$0xff]
  %v3235 = vld [vmem:[%s5 + $0x98] sm:$0xff]
  %v3236 = vld [vmem:[%s5 + $0xa0] sm:$0xff]
  %v3237 = vld [vmem:[%s5 + $0xa8] sm:$0xff]
  %v3238 = vld [vmem:[%s5 + $0xb0] sm:$0xff]
  %v3239 = vld [vmem:[%s5 + $0xb8] sm:$0xff]
  %v3240 = vld [vmem:[%s5 + $0xc0] sm:$0xff]
  %v3241 = vld [vmem:[%s5 + $0xc8] sm:$0xff]
  %v3242 = vld [vmem:[%s5 + $0xd0] sm:$0xff]
  %v3243 = vld [vmem:[%s5 + $0xd8] sm:$0xff]
  %v3244 = vld [vmem:[%s5 + $0xe0] sm:$0xff]
  %v3245 = vld [vmem:[%s5 + $0xe8] sm:$0xff]
  %v3246 = vld [vmem:[%s5 + $0xf0] sm:$0xff]
  %v3247 = vld [vmem:[%s5 + $0xf8] sm:$0xff]
  %v3280 = vunpack.c.l.b16 %v3216
  %v3281 = vunpack.c.h.b16 %v3216
  %v3282 = vunpack.c.l.b16 %v3217
  %v3283 = vunpack.c.h.b16 %v3217
  %v3284 = vunpack.c.l.b16 %v3218
  %v3285 = vunpack.c.h.b16 %v3218
  %v3286 = vunpack.c.l.b16 %v3219
  %v3287 = vunpack.c.h.b16 %v3219
  %v3288 = vunpack.c.l.b16 %v3220
  %v3289 = vunpack.c.h.b16 %v3220
  %v3290 = vunpack.c.l.b16 %v3221
  %v3291 = vunpack.c.h.b16 %v3221
  %v3292 = vunpack.c.l.b16 %v3222
  %v3293 = vunpack.c.h.b16 %v3222
  %v3294 = vunpack.c.l.b16 %v3223
  %v3295 = vunpack.c.h.b16 %v3223
  %v3296 = vunpack.c.l.b16 %v3224
  %v3297 = vunpack.c.h.b16 %v3224
  %v3298 = vunpack.c.l.b16 %v3225
  %v3299 = vunpack.c.h.b16 %v3225
  %v3300 = vunpack.c.l.b16 %v3226
  %v3301 = vunpack.c.h.b16 %v3226
  %v3302 = vunpack.c.l.b16 %v3227
  %v3303 = vunpack.c.h.b16 %v3227
  %v3304 = vunpack.c.l.b16 %v3228
  %v3305 = vunpack.c.h.b16 %v3228
  %v3306 = vunpack.c.l.b16 %v3229
  %v3307 = vunpack.c.h.b16 %v3229
  %v3308 = vunpack.c.l.b16 %v3230
  %v3309 = vunpack.c.h.b16 %v3230
  %v3310 = vunpack.c.l.b16 %v3231
  %v3311 = vunpack.c.h.b16 %v3231
  %v3312 = vunpack.c.l.b16 %v3232
  %v3313 = vunpack.c.h.b16 %v3232
  %v3314 = vunpack.c.l.b16 %v3233
  %v3315 = vunpack.c.h.b16 %v3233
  %v3316 = vunpack.c.l.b16 %v3234
  %v3317 = vunpack.c.h.b16 %v3234
  %v3318 = vunpack.c.l.b16 %v3235
  %v3319 = vunpack.c.h.b16 %v3235
  %v3320 = vunpack.c.l.b16 %v3236
  %v3321 = vunpack.c.h.b16 %v3236
  %v3322 = vunpack.c.l.b16 %v3237
  %v3323 = vunpack.c.h.b16 %v3237
  %v3324 = vunpack.c.l.b16 %v3238
  %v3325 = vunpack.c.h.b16 %v3238
  %v3326 = vunpack.c.l.b16 %v3239
  %v3327 = vunpack.c.h.b16 %v3239
  %v3328 = vunpack.c.l.b16 %v3240
  %v3329 = vunpack.c.h.b16 %v3240
  %v3330 = vunpack.c.l.b16 %v3241
  %v3331 = vunpack.c.h.b16 %v3241
  %v3332 = vunpack.c.l.b16 %v3242
  %v3333 = vunpack.c.h.b16 %v3242
  %v3334 = vunpack.c.l.b16 %v3243
  %v3335 = vunpack.c.h.b16 %v3243
  %v3336 = vunpack.c.l.b16 %v3244
  %v3337 = vunpack.c.h.b16 %v3244
  %v3338 = vunpack.c.l.b16 %v3245
  %v3339 = vunpack.c.h.b16 %v3245
  %v3340 = vunpack.c.l.b16 %v3246
  %v3341 = vunpack.c.h.b16 %v3246
  %v3342 = vunpack.c.l.b16 %v3247
  %v3343 = vunpack.c.h.b16 %v3247
  %v3344 = vpack.c.b16 %v3282, %v3280
  %v3345 = vpack.c.b16 %v3283, %v3281
  %v3346 = vpack.c.b16 %v3286, %v3284
  %v3347 = vpack.c.b16 %v3287, %v3285
  %v3348 = vpack.c.b16 %v3290, %v3288
  %v3349 = vpack.c.b16 %v3291, %v3289
  %v3350 = vpack.c.b16 %v3294, %v3292
  %v3351 = vpack.c.b16 %v3295, %v3293
  %v3352 = vpack.c.b16 %v3298, %v3296
  %v3353 = vpack.c.b16 %v3299, %v3297
  %v3354 = vpack.c.b16 %v3302, %v3300
  %v3355 = vpack.c.b16 %v3303, %v3301
  %v3356 = vpack.c.b16 %v3306, %v3304
  %v3357 = vpack.c.b16 %v3307, %v3305
  %v3358 = vpack.c.b16 %v3310, %v3308
  %v3359 = vpack.c.b16 %v3311, %v3309
  %v3360 = vpack.c.b16 %v3314, %v3312
  %v3361 = vpack.c.b16 %v3315, %v3313
  %v3362 = vpack.c.b16 %v3318, %v3316
  %v3363 = vpack.c.b16 %v3319, %v3317
  %v3364 = vpack.c.b16 %v3322, %v3320
  %v3365 = vpack.c.b16 %v3323, %v3321
  %v3366 = vpack.c.b16 %v3326, %v3324
  %v3367 = vpack.c.b16 %v3327, %v3325
  %v3368 = vpack.c.b16 %v3330, %v3328
  %v3369 = vpack.c.b16 %v3331, %v3329
  %v3370 = vpack.c.b16 %v3334, %v3332
  %v3371 = vpack.c.b16 %v3335, %v3333
  %v3372 = vpack.c.b16 %v3338, %v3336
  %v3373 = vpack.c.b16 %v3339, %v3337
  %v3374 = vpack.c.b16 %v3342, %v3340
  %v3375 = vpack.c.b16 %v3343, %v3341
  %3408 = vmatprep.subr.bf16.mxu0 %v3359
  %3409 = vmatpush1.bf16.msra.mxu0 %v3358
  %3410 = vmatprep.subr.bf16.mxu0 %v3357
  %3411 = vmatpush1.bf16.msra.mxu0 %v3356
  %3412 = vmatprep.subr.bf16.mxu0 %v3355
  %3413 = vmatpush1.bf16.msra.mxu0 %v3354
  %3414 = vmatprep.subr.bf16.mxu0 %v3353
  %3415 = vmatpush1.bf16.msra.mxu0 %v3352
  %3416 = vmatprep.subr.bf16.mxu0 %v3351
  %3417 = vmatpush1.bf16.msra.mxu0 %v3350
  %3418 = vmatprep.subr.bf16.mxu0 %v3349
  %3419 = vmatpush1.bf16.msra.mxu0 %v3348
  %3420 = vmatprep.subr.bf16.mxu0 %v3347
  %3421 = vmatpush1.bf16.msra.mxu0 %v3346
  %3422 = vmatprep.subr.bf16.mxu0 %v3345
  %3423 = vmatpush1.bf16.msra.mxu0 %v3344
  %3424 = vmatprep.subr.bf16.mxu0 %v3375
  %3425 = vmatpush2.bf16.msra.mxu0 %v3374
  %3426 = vmatprep.subr.bf16.mxu0 %v3373
  %3427 = vmatpush2.bf16.msra.mxu0 %v3372
  %3428 = vmatprep.subr.bf16.mxu0 %v3371
  %3429 = vmatpush2.bf16.msra.mxu0 %v3370
  %3430 = vmatprep.subr.bf16.mxu0 %v3369
  %3431 = vmatpush2.bf16.msra.mxu0 %v3368
  %3432 = vmatprep.subr.bf16.mxu0 %v3367
  %3433 = vmatpush2.bf16.msra.mxu0 %v3366
  %3434 = vmatprep.subr.bf16.mxu0 %v3365
  %3435 = vmatpush2.bf16.msra.mxu0 %v3364
  %3436 = vmatprep.subr.bf16.mxu0 %v3363
  %3437 = vmatpush2.bf16.msra.mxu0 %v3362
  %3438 = vmatprep.subr.bf16.mxu0 %v3361
  %3439 = vmatpush2.bf16.msra.mxu0 %v3360
  %3440 = vmatprep.mubr.bf16.mxu0 %v3153
  %3441 = vmatmul.mubr.bf16.gmra.mxu0 %v3152
  %v3442 = vpop.f32.mrf.mxu0
  %v3443 = vadd.f32 0.0, %v3442
  %v3444 = vpop.f32.mrf.mxu0
  %v3445 = vadd.f32 0.0, %v3444
  %v3446 = vpop.f32.mrf.mxu0
  %v3447 = vadd.f32 0.0, %v3446
  %v3448 = vpop.f32.mrf.mxu0
  %v3449 = vadd.f32 0.0, %v3448
  %3450 = vmatprep.mubr.bf16.mxu0 %v3155
  %3451 = vmatmul.mubr.bf16.gmra.mxu0 %v3154
  %v3452 = vpop.f32.mrf.mxu0
  %v3453 = vadd.f32 0.0, %v3452
  %v3454 = vpop.f32.mrf.mxu0
  %v3455 = vadd.f32 0.0, %v3454
  %v3456 = vpop.f32.mrf.mxu0
  %v3457 = vadd.f32 0.0, %v3456
  %v3458 = vpop.f32.mrf.mxu0
  %v3459 = vadd.f32 0.0, %v3458
  %3460 = vmatprep.mubr.bf16.mxu0 %v3157
  %3461 = vmatmul.mubr.bf16.gmra.mxu0 %v3156
  %v3462 = vpop.f32.mrf.mxu0
  %v3463 = vadd.f32 0.0, %v3462
  %v3464 = vpop.f32.mrf.mxu0
  %v3465 = vadd.f32 0.0, %v3464
  %v3466 = vpop.f32.mrf.mxu0
  %v3467 = vadd.f32 0.0, %v3466
  %v3468 = vpop.f32.mrf.mxu0
  %v3469 = vadd.f32 0.0, %v3468
  %3470 = vmatprep.mubr.bf16.mxu0 %v3159
  %3471 = vmatmul.mubr.bf16.gmra.mxu0 %v3158
  %v3472 = vpop.f32.mrf.mxu0
  %v3473 = vadd.f32 0.0, %v3472
  %v3474 = vpop.f32.mrf.mxu0
  %v3475 = vadd.f32 0.0, %v3474
  %v3476 = vpop.f32.mrf.mxu0
  %v3477 = vadd.f32 0.0, %v3476
  %v3478 = vpop.f32.mrf.mxu0
  %v3479 = vadd.f32 0.0, %v3478
  %3480 = vmatprep.mubr.bf16.mxu0 %v3161
  %3481 = vmatmul.mubr.bf16.gmra.mxu0 %v3160
  %v3482 = vpop.f32.mrf.mxu0
  %v3483 = vadd.f32 0.0, %v3482
  %v3484 = vpop.f32.mrf.mxu0
  %v3485 = vadd.f32 0.0, %v3484
  %v3486 = vpop.f32.mrf.mxu0
  %v3487 = vadd.f32 0.0, %v3486
  %v3488 = vpop.f32.mrf.mxu0
  %v3489 = vadd.f32 0.0, %v3488
  %3490 = vmatprep.mubr.bf16.mxu0 %v3163
  %3491 = vmatmul.mubr.bf16.gmra.mxu0 %v3162
  %v3492 = vpop.f32.mrf.mxu0
  %v3493 = vadd.f32 0.0, %v3492
  %v3494 = vpop.f32.mrf.mxu0
  %v3495 = vadd.f32 0.0, %v3494
  %v3496 = vpop.f32.mrf.mxu0
  %v3497 = vadd.f32 0.0, %v3496
  %v3498 = vpop.f32.mrf.mxu0
  %v3499 = vadd.f32 0.0, %v3498
  %3500 = vmatprep.mubr.bf16.mxu0 %v3165
  %3501 = vmatmul.mubr.bf16.gmra.mxu0 %v3164
  %v3502 = vpop.f32.mrf.mxu0
  %v3503 = vadd.f32 0.0, %v3502
  %v3504 = vpop.f32.mrf.mxu0
  %v3505 = vadd.f32 0.0, %v3504
  %v3506 = vpop.f32.mrf.mxu0
  %v3507 = vadd.f32 0.0, %v3506
  %v3508 = vpop.f32.mrf.mxu0
  %v3509 = vadd.f32 0.0, %v3508
  %3510 = vmatprep.mubr.bf16.mxu0 %v3167
  %3511 = vmatmul.mubr.bf16.gmra.mxu0 %v3166
  %v3512 = vpop.f32.mrf.mxu0
  %v3513 = vadd.f32 0.0, %v3512
  %v3514 = vpop.f32.mrf.mxu0
  %v3515 = vadd.f32 0.0, %v3514
  %v3516 = vpop.f32.mrf.mxu0
  %v3517 = vadd.f32 0.0, %v3516
  %v3518 = vpop.f32.mrf.mxu0
  %v3519 = vadd.f32 0.0, %v3518
  %3520 = vmatprep.mubr.bf16.mxu0 %v3169
  %3521 = vmatmul.mubr.bf16.gmra.mxu0 %v3168
  %v3522 = vpop.f32.mrf.mxu0
  %v3523 = vadd.f32 0.0, %v3522
  %v3524 = vpop.f32.mrf.mxu0
  %v3525 = vadd.f32 0.0, %v3524
  %v3526 = vpop.f32.mrf.mxu0
  %v3527 = vadd.f32 0.0, %v3526
  %v3528 = vpop.f32.mrf.mxu0
  %v3529 = vadd.f32 0.0, %v3528
  %3530 = vmatprep.mubr.bf16.mxu0 %v3171
  %3531 = vmatmul.mubr.bf16.gmra.mxu0 %v3170
  %v3532 = vpop.f32.mrf.mxu0
  %v3533 = vadd.f32 0.0, %v3532
  %v3534 = vpop.f32.mrf.mxu0
  %v3535 = vadd.f32 0.0, %v3534
  %v3536 = vpop.f32.mrf.mxu0
  %v3537 = vadd.f32 0.0, %v3536
  %v3538 = vpop.f32.mrf.mxu0
  %v3539 = vadd.f32 0.0, %v3538
  %3540 = vmatprep.mubr.bf16.mxu0 %v3173
  %3541 = vmatmul.mubr.bf16.gmra.mxu0 %v3172
  %v3542 = vpop.f32.mrf.mxu0
  %v3543 = vadd.f32 0.0, %v3542
  %v3544 = vpop.f32.mrf.mxu0
  %v3545 = vadd.f32 0.0, %v3544
  %v3546 = vpop.f32.mrf.mxu0
  %v3547 = vadd.f32 0.0, %v3546
  %v3548 = vpop.f32.mrf.mxu0
  %v3549 = vadd.f32 0.0, %v3548
  %3550 = vmatprep.mubr.bf16.mxu0 %v3175
  %3551 = vmatmul.mubr.bf16.gmra.mxu0 %v3174
  %v3552 = vpop.f32.mrf.mxu0
  %v3553 = vadd.f32 0.0, %v3552
  %v3554 = vpop.f32.mrf.mxu0
  %v3555 = vadd.f32 0.0, %v3554
  %v3556 = vpop.f32.mrf.mxu0
  %v3557 = vadd.f32 0.0, %v3556
  %v3558 = vpop.f32.mrf.mxu0
  %v3559 = vadd.f32 0.0, %v3558
  %3560 = vmatprep.mubr.bf16.mxu0 %v3177
  %3561 = vmatmul.mubr.bf16.gmra.mxu0 %v3176
  %v3562 = vpop.f32.mrf.mxu0
  %v3563 = vadd.f32 0.0, %v3562
  %v3564 = vpop.f32.mrf.mxu0
  %v3565 = vadd.f32 0.0, %v3564
  %v3566 = vpop.f32.mrf.mxu0
  %v3567 = vadd.f32 0.0, %v3566
  %v3568 = vpop.f32.mrf.mxu0
  %v3569 = vadd.f32 0.0, %v3568
  %3570 = vmatprep.mubr.bf16.mxu0 %v3179
  %3571 = vmatmul.mubr.bf16.gmra.mxu0 %v3178
  %v3572 = vpop.f32.mrf.mxu0
  %v3573 = vadd.f32 0.0, %v3572
  %v3574 = vpop.f32.mrf.mxu0
  %v3575 = vadd.f32 0.0, %v3574
  %v3576 = vpop.f32.mrf.mxu0
  %v3577 = vadd.f32 0.0, %v3576
  %v3578 = vpop.f32.mrf.mxu0
  %v3579 = vadd.f32 0.0, %v3578
  %3580 = vmatprep.mubr.bf16.mxu0 %v3181
  %3581 = vmatmul.mubr.bf16.gmra.mxu0 %v3180
  %v3582 = vpop.f32.mrf.mxu0
  %v3583 = vadd.f32 0.0, %v3582
  %v3584 = vpop.f32.mrf.mxu0
  %v3585 = vadd.f32 0.0, %v3584
  %v3586 = vpop.f32.mrf.mxu0
  %v3587 = vadd.f32 0.0, %v3586
  %v3588 = vpop.f32.mrf.mxu0
  %v3589 = vadd.f32 0.0, %v3588
  %3590 = vmatprep.mubr.bf16.mxu0 %v3183
  %3591 = vmatmul.mubr.bf16.gmra.mxu0 %v3182
  %v3592 = vpop.f32.mrf.mxu0
  %v3593 = vadd.f32 0.0, %v3592
  %v3594 = vpop.f32.mrf.mxu0
  %v3595 = vadd.f32 0.0, %v3594
  %v3596 = vpop.f32.mrf.mxu0
  %v3597 = vadd.f32 0.0, %v3596
  %v3598 = vpop.f32.mrf.mxu0
  %v3599 = vadd.f32 0.0, %v3598
  %3600 = vmatprep.mubr.bf16.mxu0 %v3185
  %3601 = vmatmul.mubr.bf16.gmra.mxu0 %v3184
  %v3602 = vpop.f32.mrf.mxu0
  %v3603 = vadd.f32 0.0, %v3602
  %v3604 = vpop.f32.mrf.mxu0
  %v3605 = vadd.f32 0.0, %v3604
  %v3606 = vpop.f32.mrf.mxu0
  %v3607 = vadd.f32 0.0, %v3606
  %v3608 = vpop.f32.mrf.mxu0
  %v3609 = vadd.f32 0.0, %v3608
  %3610 = vmatprep.mubr.bf16.mxu0 %v3187
  %3611 = vmatmul.mubr.bf16.gmra.mxu0 %v3186
  %v3612 = vpop.f32.mrf.mxu0
  %v3613 = vadd.f32 0.0, %v3612
  %v3614 = vpop.f32.mrf.mxu0
  %v3615 = vadd.f32 0.0, %v3614
  %v3616 = vpop.f32.mrf.mxu0
  %v3617 = vadd.f32 0.0, %v3616
  %v3618 = vpop.f32.mrf.mxu0
  %v3619 = vadd.f32 0.0, %v3618
  %3620 = vmatprep.mubr.bf16.mxu0 %v3189
  %3621 = vmatmul.mubr.bf16.gmra.mxu0 %v3188
  %v3622 = vpop.f32.mrf.mxu0
  %v3623 = vadd.f32 0.0, %v3622
  %v3624 = vpop.f32.mrf.mxu0
  %v3625 = vadd.f32 0.0, %v3624
  %v3626 = vpop.f32.mrf.mxu0
  %v3627 = vadd.f32 0.0, %v3626
  %v3628 = vpop.f32.mrf.mxu0
  %v3629 = vadd.f32 0.0, %v3628
  %3630 = vmatprep.mubr.bf16.mxu0 %v3191
  %3631 = vmatmul.mubr.bf16.gmra.mxu0 %v3190
  %v3632 = vpop.f32.mrf.mxu0
  %v3633 = vadd.f32 0.0, %v3632
  %v3634 = vpop.f32.mrf.mxu0
  %v3635 = vadd.f32 0.0, %v3634
  %v3636 = vpop.f32.mrf.mxu0
  %v3637 = vadd.f32 0.0, %v3636
  %v3638 = vpop.f32.mrf.mxu0
  %v3639 = vadd.f32 0.0, %v3638
  %3640 = vmatprep.mubr.bf16.mxu0 %v3193
  %3641 = vmatmul.mubr.bf16.gmra.mxu0 %v3192
  %v3642 = vpop.f32.mrf.mxu0
  %v3643 = vadd.f32 0.0, %v3642
  %v3644 = vpop.f32.mrf.mxu0
  %v3645 = vadd.f32 0.0, %v3644
  %v3646 = vpop.f32.mrf.mxu0
  %v3647 = vadd.f32 0.0, %v3646
  %v3648 = vpop.f32.mrf.mxu0
  %v3649 = vadd.f32 0.0, %v3648
  %3650 = vmatprep.mubr.bf16.mxu0 %v3195
  %3651 = vmatmul.mubr.bf16.gmra.mxu0 %v3194
  %v3652 = vpop.f32.mrf.mxu0
  %v3653 = vadd.f32 0.0, %v3652
  %v3654 = vpop.f32.mrf.mxu0
  %v3655 = vadd.f32 0.0, %v3654
  %v3656 = vpop.f32.mrf.mxu0
  %v3657 = vadd.f32 0.0, %v3656
  %v3658 = vpop.f32.mrf.mxu0
  %v3659 = vadd.f32 0.0, %v3658
  %3660 = vmatprep.mubr.bf16.mxu0 %v3197
  %3661 = vmatmul.mubr.bf16.gmra.mxu0 %v3196
  %v3662 = vpop.f32.mrf.mxu0
  %v3663 = vadd.f32 0.0, %v3662
  %v3664 = vpop.f32.mrf.mxu0
  %v3665 = vadd.f32 0.0, %v3664
  %v3666 = vpop.f32.mrf.mxu0
  %v3667 = vadd.f32 0.0, %v3666
  %v3668 = vpop.f32.mrf.mxu0
  %v3669 = vadd.f32 0.0, %v3668
  %3670 = vmatprep.mubr.bf16.mxu0 %v3199
  %3671 = vmatmul.mubr.bf16.gmra.mxu0 %v3198
  %v3672 = vpop.f32.mrf.mxu0
  %v3673 = vadd.f32 0.0, %v3672
  %v3674 = vpop.f32.mrf.mxu0
  %v3675 = vadd.f32 0.0, %v3674
  %v3676 = vpop.f32.mrf.mxu0
  %v3677 = vadd.f32 0.0, %v3676
  %v3678 = vpop.f32.mrf.mxu0
  %v3679 = vadd.f32 0.0, %v3678
  %3680 = vmatprep.mubr.bf16.mxu0 %v3201
  %3681 = vmatmul.mubr.bf16.gmra.mxu0 %v3200
  %v3682 = vpop.f32.mrf.mxu0
  %v3683 = vadd.f32 0.0, %v3682
  %v3684 = vpop.f32.mrf.mxu0
  %v3685 = vadd.f32 0.0, %v3684
  %v3686 = vpop.f32.mrf.mxu0
  %v3687 = vadd.f32 0.0, %v3686
  %v3688 = vpop.f32.mrf.mxu0
  %v3689 = vadd.f32 0.0, %v3688
  %3690 = vmatprep.mubr.bf16.mxu0 %v3203
  %3691 = vmatmul.mubr.bf16.gmra.mxu0 %v3202
  %v3692 = vpop.f32.mrf.mxu0
  %v3693 = vadd.f32 0.0, %v3692
  %v3694 = vpop.f32.mrf.mxu0
  %v3695 = vadd.f32 0.0, %v3694
  %v3696 = vpop.f32.mrf.mxu0
  %v3697 = vadd.f32 0.0, %v3696
  %v3698 = vpop.f32.mrf.mxu0
  %v3699 = vadd.f32 0.0, %v3698
  %3700 = vmatprep.mubr.bf16.mxu0 %v3205
  %3701 = vmatmul.mubr.bf16.gmra.mxu0 %v3204
  %v3702 = vpop.f32.mrf.mxu0
  %v3703 = vadd.f32 0.0, %v3702
  %v3704 = vpop.f32.mrf.mxu0
  %v3705 = vadd.f32 0.0, %v3704
  %v3706 = vpop.f32.mrf.mxu0
  %v3707 = vadd.f32 0.0, %v3706
  %v3708 = vpop.f32.mrf.mxu0
  %v3709 = vadd.f32 0.0, %v3708
  %3710 = vmatprep.mubr.bf16.mxu0 %v3207
  %3711 = vmatmul.mubr.bf16.gmra.mxu0 %v3206
  %v3712 = vpop.f32.mrf.mxu0
  %v3713 = vadd.f32 0.0, %v3712
  %v3714 = vpop.f32.mrf.mxu0
  %v3715 = vadd.f32 0.0, %v3714
  %v3716 = vpop.f32.mrf.mxu0
  %v3717 = vadd.f32 0.0, %v3716
  %v3718 = vpop.f32.mrf.mxu0
  %v3719 = vadd.f32 0.0, %v3718
  %3720 = vmatprep.mubr.bf16.mxu0 %v3209
  %3721 = vmatmul.mubr.bf16.gmra.mxu0 %v3208
  %v3722 = vpop.f32.mrf.mxu0
  %v3723 = vadd.f32 0.0, %v3722
  %v3724 = vpop.f32.mrf.mxu0
  %v3725 = vadd.f32 0.0, %v3724
  %v3726 = vpop.f32.mrf.mxu0
  %v3727 = vadd.f32 0.0, %v3726
  %v3728 = vpop.f32.mrf.mxu0
  %v3729 = vadd.f32 0.0, %v3728
  %3730 = vmatprep.mubr.bf16.mxu0 %v3211
  %3731 = vmatmul.mubr.bf16.gmra.mxu0 %v3210
  %v3732 = vpop.f32.mrf.mxu0
  %v3733 = vadd.f32 0.0, %v3732
  %v3734 = vpop.f32.mrf.mxu0
  %v3735 = vadd.f32 0.0, %v3734
  %v3736 = vpop.f32.mrf.mxu0
  %v3737 = vadd.f32 0.0, %v3736
  %v3738 = vpop.f32.mrf.mxu0
  %v3739 = vadd.f32 0.0, %v3738
  %3740 = vmatprep.mubr.bf16.mxu0 %v3213
  %3741 = vmatmul.mubr.bf16.gmra.mxu0 %v3212
  %v3742 = vpop.f32.mrf.mxu0
  %v3743 = vadd.f32 0.0, %v3742
  %v3744 = vpop.f32.mrf.mxu0
  %v3745 = vadd.f32 0.0, %v3744
  %v3746 = vpop.f32.mrf.mxu0
  %v3747 = vadd.f32 0.0, %v3746
  %v3748 = vpop.f32.mrf.mxu0
  %v3749 = vadd.f32 0.0, %v3748
  %3750 = vmatprep.mubr.bf16.mxu0 %v3215
  %3751 = vmatmul.mubr.bf16.gmra.mxu0 %v3214
  %v3752 = vpop.f32.mrf.mxu0
  %v3753 = vadd.f32 0.0, %v3752
  %v3754 = vpop.f32.mrf.mxu0
  %v3755 = vadd.f32 0.0, %v3754
  %v3756 = vpop.f32.mrf.mxu0
  %v3757 = vadd.f32 0.0, %v3756
  %v3758 = vpop.f32.mrf.mxu0
  %v3759 = vadd.f32 0.0, %v3758
  %3760 = vdwg.mxu0
  %v3761 = vpack.c.bf16 %v3447, %v3443
  %v3762 = vpack.c.bf16 %v3449, %v3445
  %v3763 = vpack.c.bf16 %v3457, %v3453
  %v3764 = vpack.c.bf16 %v3459, %v3455
  %v3765 = vpack.c.bf16 %v3467, %v3463
  %v3766 = vpack.c.bf16 %v3469, %v3465
  %v3767 = vpack.c.bf16 %v3477, %v3473
  %v3768 = vpack.c.bf16 %v3479, %v3475
  %v3769 = vpack.c.bf16 %v3487, %v3483
  %v3770 = vpack.c.bf16 %v3489, %v3485
  %v3771 = vpack.c.bf16 %v3497, %v3493
  %v3772 = vpack.c.bf16 %v3499, %v3495
  %v3773 = vpack.c.bf16 %v3507, %v3503
  %v3774 = vpack.c.bf16 %v3509, %v3505
  %v3775 = vpack.c.bf16 %v3517, %v3513
  %v3776 = vpack.c.bf16 %v3519, %v3515
  %v3777 = vpack.c.bf16 %v3527, %v3523
  %v3778 = vpack.c.bf16 %v3529, %v3525
  %v3779 = vpack.c.bf16 %v3537, %v3533
  %v3780 = vpack.c.bf16 %v3539, %v3535
  %v3781 = vpack.c.bf16 %v3547, %v3543
  %v3782 = vpack.c.bf16 %v3549, %v3545
  %v3783 = vpack.c.bf16 %v3557, %v3553
  %v3784 = vpack.c.bf16 %v3559, %v3555
  %v3785 = vpack.c.bf16 %v3567, %v3563
  %v3786 = vpack.c.bf16 %v3569, %v3565
  %v3787 = vpack.c.bf16 %v3577, %v3573
  %v3788 = vpack.c.bf16 %v3579, %v3575
  %v3789 = vpack.c.bf16 %v3587, %v3583
  %v3790 = vpack.c.bf16 %v3589, %v3585
  %v3791 = vpack.c.bf16 %v3597, %v3593
  %v3792 = vpack.c.bf16 %v3599, %v3595
  %v3793 = vpack.c.bf16 %v3607, %v3603
  %v3794 = vpack.c.bf16 %v3609, %v3605
  %v3795 = vpack.c.bf16 %v3617, %v3613
  %v3796 = vpack.c.bf16 %v3619, %v3615
  %v3797 = vpack.c.bf16 %v3627, %v3623
  %v3798 = vpack.c.bf16 %v3629, %v3625
  %v3799 = vpack.c.bf16 %v3637, %v3633
  %v3800 = vpack.c.bf16 %v3639, %v3635
  %v3801 = vpack.c.bf16 %v3647, %v3643
  %v3802 = vpack.c.bf16 %v3649, %v3645
  %v3803 = vpack.c.bf16 %v3657, %v3653
  %v3804 = vpack.c.bf16 %v3659, %v3655
  %v3805 = vpack.c.bf16 %v3667, %v3663
  %v3806 = vpack.c.bf16 %v3669, %v3665
  %v3807 = vpack.c.bf16 %v3677, %v3673
  %v3808 = vpack.c.bf16 %v3679, %v3675
  %v3809 = vpack.c.bf16 %v3687, %v3683
  %v3810 = vpack.c.bf16 %v3689, %v3685
  %v3811 = vpack.c.bf16 %v3697, %v3693
  %v3812 = vpack.c.bf16 %v3699, %v3695
  %v3813 = vpack.c.bf16 %v3707, %v3703
  %v3814 = vpack.c.bf16 %v3709, %v3705
  %v3815 = vpack.c.bf16 %v3717, %v3713
  %v3816 = vpack.c.bf16 %v3719, %v3715
  %v3817 = vpack.c.bf16 %v3727, %v3723
  %v3818 = vpack.c.bf16 %v3729, %v3725
  %v3819 = vpack.c.bf16 %v3737, %v3733
  %v3820 = vpack.c.bf16 %v3739, %v3735
  %v3821 = vpack.c.bf16 %v3747, %v3743
  %v3822 = vpack.c.bf16 %v3749, %v3745
  %v3823 = vpack.c.bf16 %v3757, %v3753
  %v3824 = vpack.c.bf16 %v3759, %v3755
  %3825 = vmatprep.subr.bf16.mxu0 %v3776
  %3826 = vmatpush1.bf16.msra.mxu0 %v3775
  %3827 = vmatprep.subr.bf16.mxu0 %v3774
  %3828 = vmatpush1.bf16.msra.mxu0 %v3773
  %3829 = vmatprep.subr.bf16.mxu0 %v3772
  %3830 = vmatpush1.bf16.msra.mxu0 %v3771
  %3831 = vmatprep.subr.bf16.mxu0 %v3770
  %3832 = vmatpush1.bf16.msra.mxu0 %v3769
  %3833 = vmatprep.subr.bf16.mxu0 %v3768
  %3834 = vmatpush1.bf16.msra.mxu0 %v3767
  %3835 = vmatprep.subr.bf16.mxu0 %v3766
  %3836 = vmatpush1.bf16.msra.mxu0 %v3765
  %3837 = vmatprep.subr.bf16.mxu0 %v3764
  %3838 = vmatpush1.bf16.msra.mxu0 %v3763
  %3839 = vmatprep.subr.bf16.mxu0 %v3762
  %3840 = vmatpush1.bf16.msra.mxu0 %v3761
  %3841 = vmatprep.subr.bf16.mxu0 %v3792
  %3842 = vmatpush2.bf16.msra.mxu0 %v3791
  %3843 = vmatprep.subr.bf16.mxu0 %v3790
  %3844 = vmatpush2.bf16.msra.mxu0 %v3789
  %3845 = vmatprep.subr.bf16.mxu0 %v3788
  %3846 = vmatpush2.bf16.msra.mxu0 %v3787
  %3847 = vmatprep.subr.bf16.mxu0 %v3786
  %3848 = vmatpush2.bf16.msra.mxu0 %v3785
  %3849 = vmatprep.subr.bf16.mxu0 %v3784
  %3850 = vmatpush2.bf16.msra.mxu0 %v3783
  %3851 = vmatprep.subr.bf16.mxu0 %v3782
  %3852 = vmatpush2.bf16.msra.mxu0 %v3781
  %3853 = vmatprep.subr.bf16.mxu0 %v3780
  %3854 = vmatpush2.bf16.msra.mxu0 %v3779
  %3855 = vmatprep.subr.bf16.mxu0 %v3778
  %3856 = vmatpush2.bf16.msra.mxu0 %v3777
  %3857 = vmatprep.mubr.bf16.mxu0 %v686
  %3858 = vmatmul.mubr.bf16.gmra.mxu0 %v685
  %v3859 = vpop.f32.mrf.mxu0
  %v3860 = vadd.f32 0.0, %v3859
  %v3861 = vpop.f32.mrf.mxu0
  %v3862 = vadd.f32 0.0, %v3861
  %v3863 = vpop.f32.mrf.mxu0
  %v3864 = vadd.f32 0.0, %v3863
  %v3865 = vpop.f32.mrf.mxu0
  %v3866 = vadd.f32 0.0, %v3865
  %3867 = vmatprep.mubr.bf16.mxu0 %v690
  %3868 = vmatmul.mubr.bf16.gmra.mxu0 %v689
  %v3869 = vpop.f32.mrf.mxu0
  %v3870 = vadd.f32 0.0, %v3869
  %v3871 = vpop.f32.mrf.mxu0
  %v3872 = vadd.f32 0.0, %v3871
  %v3873 = vpop.f32.mrf.mxu0
  %v3874 = vadd.f32 0.0, %v3873
  %v3875 = vpop.f32.mrf.mxu0
  %v3876 = vadd.f32 0.0, %v3875
  %3877 = vmatprep.mubr.bf16.mxu0 %v694
  %3878 = vmatmul.mubr.bf16.gmra.mxu0 %v693
  %v3879 = vpop.f32.mrf.mxu0
  %v3880 = vadd.f32 0.0, %v3879
  %v3881 = vpop.f32.mrf.mxu0
  %v3882 = vadd.f32 0.0, %v3881
  %v3883 = vpop.f32.mrf.mxu0
  %v3884 = vadd.f32 0.0, %v3883
  %v3885 = vpop.f32.mrf.mxu0
  %v3886 = vadd.f32 0.0, %v3885
  %3887 = vmatprep.mubr.bf16.mxu0 %v698
  %3888 = vmatmul.mubr.bf16.gmra.mxu0 %v697
  %v3889 = vpop.f32.mrf.mxu0
  %v3890 = vadd.f32 0.0, %v3889
  %v3891 = vpop.f32.mrf.mxu0
  %v3892 = vadd.f32 0.0, %v3891
  %v3893 = vpop.f32.mrf.mxu0
  %v3894 = vadd.f32 0.0, %v3893
  %v3895 = vpop.f32.mrf.mxu0
  %v3896 = vadd.f32 0.0, %v3895
  %3897 = vmatprep.mubr.bf16.mxu0 %v702
  %3898 = vmatmul.mubr.bf16.gmra.mxu0 %v701
  %v3899 = vpop.f32.mrf.mxu0
  %v3900 = vadd.f32 0.0, %v3899
  %v3901 = vpop.f32.mrf.mxu0
  %v3902 = vadd.f32 0.0, %v3901
  %v3903 = vpop.f32.mrf.mxu0
  %v3904 = vadd.f32 0.0, %v3903
  %v3905 = vpop.f32.mrf.mxu0
  %v3906 = vadd.f32 0.0, %v3905
  %3907 = vmatprep.mubr.bf16.mxu0 %v706
  %3908 = vmatmul.mubr.bf16.gmra.mxu0 %v705
  %v3909 = vpop.f32.mrf.mxu0
  %v3910 = vadd.f32 0.0, %v3909
  %v3911 = vpop.f32.mrf.mxu0
  %v3912 = vadd.f32 0.0, %v3911
  %v3913 = vpop.f32.mrf.mxu0
  %v3914 = vadd.f32 0.0, %v3913
  %v3915 = vpop.f32.mrf.mxu0
  %v3916 = vadd.f32 0.0, %v3915
  %3917 = vmatprep.mubr.bf16.mxu0 %v710
  %3918 = vmatmul.mubr.bf16.gmra.mxu0 %v709
  %v3919 = vpop.f32.mrf.mxu0
  %v3920 = vadd.f32 0.0, %v3919
  %v3921 = vpop.f32.mrf.mxu0
  %v3922 = vadd.f32 0.0, %v3921
  %v3923 = vpop.f32.mrf.mxu0
  %v3924 = vadd.f32 0.0, %v3923
  %v3925 = vpop.f32.mrf.mxu0
  %v3926 = vadd.f32 0.0, %v3925
  %3927 = vmatprep.mubr.bf16.mxu0 %v714
  %3928 = vmatmul.mubr.bf16.gmra.mxu0 %v713
  %v3929 = vpop.f32.mrf.mxu0
  %v3930 = vadd.f32 0.0, %v3929
  %v3931 = vpop.f32.mrf.mxu0
  %v3932 = vadd.f32 0.0, %v3931
  %v3933 = vpop.f32.mrf.mxu0
  %v3934 = vadd.f32 0.0, %v3933
  %v3935 = vpop.f32.mrf.mxu0
  %v3936 = vadd.f32 0.0, %v3935
  %3937 = vmatprep.mubr.bf16.mxu0 %v718
  %3938 = vmatmul.mubr.bf16.gmra.mxu0 %v717
  %v3939 = vpop.f32.mrf.mxu0
  %v3940 = vadd.f32 0.0, %v3939
  %v3941 = vpop.f32.mrf.mxu0
  %v3942 = vadd.f32 0.0, %v3941
  %v3943 = vpop.f32.mrf.mxu0
  %v3944 = vadd.f32 0.0, %v3943
  %v3945 = vpop.f32.mrf.mxu0
  %v3946 = vadd.f32 0.0, %v3945
  %3947 = vmatprep.mubr.bf16.mxu0 %v722
  %3948 = vmatmul.mubr.bf16.gmra.mxu0 %v721
  %v3949 = vpop.f32.mrf.mxu0
  %v3950 = vadd.f32 0.0, %v3949
  %v3951 = vpop.f32.mrf.mxu0
  %v3952 = vadd.f32 0.0, %v3951
  %v3953 = vpop.f32.mrf.mxu0
  %v3954 = vadd.f32 0.0, %v3953
  %v3955 = vpop.f32.mrf.mxu0
  %v3956 = vadd.f32 0.0, %v3955
  %3957 = vmatprep.mubr.bf16.mxu0 %v726
  %3958 = vmatmul.mubr.bf16.gmra.mxu0 %v725
  %v3959 = vpop.f32.mrf.mxu0
  %v3960 = vadd.f32 0.0, %v3959
  %v3961 = vpop.f32.mrf.mxu0
  %v3962 = vadd.f32 0.0, %v3961
  %v3963 = vpop.f32.mrf.mxu0
  %v3964 = vadd.f32 0.0, %v3963
  %v3965 = vpop.f32.mrf.mxu0
  %v3966 = vadd.f32 0.0, %v3965
  %3967 = vmatprep.mubr.bf16.mxu0 %v730
  %3968 = vmatmul.mubr.bf16.gmra.mxu0 %v729
  %v3969 = vpop.f32.mrf.mxu0
  %v3970 = vadd.f32 0.0, %v3969
  %v3971 = vpop.f32.mrf.mxu0
  %v3972 = vadd.f32 0.0, %v3971
  %v3973 = vpop.f32.mrf.mxu0
  %v3974 = vadd.f32 0.0, %v3973
  %v3975 = vpop.f32.mrf.mxu0
  %v3976 = vadd.f32 0.0, %v3975
  %3977 = vmatprep.mubr.bf16.mxu0 %v734
  %3978 = vmatmul.mubr.bf16.gmra.mxu0 %v733
  %v3979 = vpop.f32.mrf.mxu0
  %v3980 = vadd.f32 0.0, %v3979
  %v3981 = vpop.f32.mrf.mxu0
  %v3982 = vadd.f32 0.0, %v3981
  %v3983 = vpop.f32.mrf.mxu0
  %v3984 = vadd.f32 0.0, %v3983
  %v3985 = vpop.f32.mrf.mxu0
  %v3986 = vadd.f32 0.0, %v3985
  %3987 = vmatprep.mubr.bf16.mxu0 %v738
  %3988 = vmatmul.mubr.bf16.gmra.mxu0 %v737
  %v3989 = vpop.f32.mrf.mxu0
  %v3990 = vadd.f32 0.0, %v3989
  %v3991 = vpop.f32.mrf.mxu0
  %v3992 = vadd.f32 0.0, %v3991
  %v3993 = vpop.f32.mrf.mxu0
  %v3994 = vadd.f32 0.0, %v3993
  %v3995 = vpop.f32.mrf.mxu0
  %v3996 = vadd.f32 0.0, %v3995
  %3997 = vmatprep.mubr.bf16.mxu0 %v742
  %3998 = vmatmul.mubr.bf16.gmra.mxu0 %v741
  %v3999 = vpop.f32.mrf.mxu0
  %v4000 = vadd.f32 0.0, %v3999
  %v4001 = vpop.f32.mrf.mxu0
  %v4002 = vadd.f32 0.0, %v4001
  %v4003 = vpop.f32.mrf.mxu0
  %v4004 = vadd.f32 0.0, %v4003
  %v4005 = vpop.f32.mrf.mxu0
  %v4006 = vadd.f32 0.0, %v4005
  %4007 = vmatprep.mubr.bf16.mxu0 %v746
  %4008 = vmatmul.mubr.bf16.gmra.mxu0 %v745
  %v4009 = vpop.f32.mrf.mxu0
  %v4010 = vadd.f32 0.0, %v4009
  %v4011 = vpop.f32.mrf.mxu0
  %v4012 = vadd.f32 0.0, %v4011
  %v4013 = vpop.f32.mrf.mxu0
  %v4014 = vadd.f32 0.0, %v4013
  %v4015 = vpop.f32.mrf.mxu0
  %v4016 = vadd.f32 0.0, %v4015
  %4017 = vmatprep.mubr.bf16.mxu0 %v750
  %4018 = vmatmul.mubr.bf16.gmra.mxu0 %v749
  %v4019 = vpop.f32.mrf.mxu0
  %v4020 = vadd.f32 0.0, %v4019
  %v4021 = vpop.f32.mrf.mxu0
  %v4022 = vadd.f32 0.0, %v4021
  %v4023 = vpop.f32.mrf.mxu0
  %v4024 = vadd.f32 0.0, %v4023
  %v4025 = vpop.f32.mrf.mxu0
  %v4026 = vadd.f32 0.0, %v4025
  %4027 = vmatprep.mubr.bf16.mxu0 %v754
  %4028 = vmatmul.mubr.bf16.gmra.mxu0 %v753
  %v4029 = vpop.f32.mrf.mxu0
  %v4030 = vadd.f32 0.0, %v4029
  %v4031 = vpop.f32.mrf.mxu0
  %v4032 = vadd.f32 0.0, %v4031
  %v4033 = vpop.f32.mrf.mxu0
  %v4034 = vadd.f32 0.0, %v4033
  %v4035 = vpop.f32.mrf.mxu0
  %v4036 = vadd.f32 0.0, %v4035
  %4037 = vmatprep.mubr.bf16.mxu0 %v758
  %4038 = vmatmul.mubr.bf16.gmra.mxu0 %v757
  %v4039 = vpop.f32.mrf.mxu0
  %v4040 = vadd.f32 0.0, %v4039
  %v4041 = vpop.f32.mrf.mxu0
  %v4042 = vadd.f32 0.0, %v4041
  %v4043 = vpop.f32.mrf.mxu0
  %v4044 = vadd.f32 0.0, %v4043
  %v4045 = vpop.f32.mrf.mxu0
  %v4046 = vadd.f32 0.0, %v4045
  %4047 = vmatprep.mubr.bf16.mxu0 %v762
  %4048 = vmatmul.mubr.bf16.gmra.mxu0 %v761
  %v4049 = vpop.f32.mrf.mxu0
  %v4050 = vadd.f32 0.0, %v4049
  %v4051 = vpop.f32.mrf.mxu0
  %v4052 = vadd.f32 0.0, %v4051
  %v4053 = vpop.f32.mrf.mxu0
  %v4054 = vadd.f32 0.0, %v4053
  %v4055 = vpop.f32.mrf.mxu0
  %v4056 = vadd.f32 0.0, %v4055
  %4057 = vmatprep.mubr.bf16.mxu0 %v766
  %4058 = vmatmul.mubr.bf16.gmra.mxu0 %v765
  %v4059 = vpop.f32.mrf.mxu0
  %v4060 = vadd.f32 0.0, %v4059
  %v4061 = vpop.f32.mrf.mxu0
  %v4062 = vadd.f32 0.0, %v4061
  %v4063 = vpop.f32.mrf.mxu0
  %v4064 = vadd.f32 0.0, %v4063
  %v4065 = vpop.f32.mrf.mxu0
  %v4066 = vadd.f32 0.0, %v4065
  %4067 = vmatprep.mubr.bf16.mxu0 %v770
  %4068 = vmatmul.mubr.bf16.gmra.mxu0 %v769
  %v4069 = vpop.f32.mrf.mxu0
  %v4070 = vadd.f32 0.0, %v4069
  %v4071 = vpop.f32.mrf.mxu0
  %v4072 = vadd.f32 0.0, %v4071
  %v4073 = vpop.f32.mrf.mxu0
  %v4074 = vadd.f32 0.0, %v4073
  %v4075 = vpop.f32.mrf.mxu0
  %v4076 = vadd.f32 0.0, %v4075
  %4077 = vmatprep.mubr.bf16.mxu0 %v774
  %4078 = vmatmul.mubr.bf16.gmra.mxu0 %v773
  %v4079 = vpop.f32.mrf.mxu0
  %v4080 = vadd.f32 0.0, %v4079
  %v4081 = vpop.f32.mrf.mxu0
  %v4082 = vadd.f32 0.0, %v4081
  %v4083 = vpop.f32.mrf.mxu0
  %v4084 = vadd.f32 0.0, %v4083
  %v4085 = vpop.f32.mrf.mxu0
  %v4086 = vadd.f32 0.0, %v4085
  %4087 = vmatprep.mubr.bf16.mxu0 %v778
  %4088 = vmatmul.mubr.bf16.gmra.mxu0 %v777
  %v4089 = vpop.f32.mrf.mxu0
  %v4090 = vadd.f32 0.0, %v4089
  %v4091 = vpop.f32.mrf.mxu0
  %v4092 = vadd.f32 0.0, %v4091
  %v4093 = vpop.f32.mrf.mxu0
  %v4094 = vadd.f32 0.0, %v4093
  %v4095 = vpop.f32.mrf.mxu0
  %v4096 = vadd.f32 0.0, %v4095
  %4097 = vmatprep.mubr.bf16.mxu0 %v782
  %4098 = vmatmul.mubr.bf16.gmra.mxu0 %v781
  %v4099 = vpop.f32.mrf.mxu0
  %v4100 = vadd.f32 0.0, %v4099
  %v4101 = vpop.f32.mrf.mxu0
  %v4102 = vadd.f32 0.0, %v4101
  %v4103 = vpop.f32.mrf.mxu0
  %v4104 = vadd.f32 0.0, %v4103
  %v4105 = vpop.f32.mrf.mxu0
  %v4106 = vadd.f32 0.0, %v4105
  %4107 = vmatprep.mubr.bf16.mxu0 %v786
  %4108 = vmatmul.mubr.bf16.gmra.mxu0 %v785
  %v4109 = vpop.f32.mrf.mxu0
  %v4110 = vadd.f32 0.0, %v4109
  %v4111 = vpop.f32.mrf.mxu0
  %v4112 = vadd.f32 0.0, %v4111
  %v4113 = vpop.f32.mrf.mxu0
  %v4114 = vadd.f32 0.0, %v4113
  %v4115 = vpop.f32.mrf.mxu0
  %v4116 = vadd.f32 0.0, %v4115
  %4117 = vmatprep.mubr.bf16.mxu0 %v790
  %4118 = vmatmul.mubr.bf16.gmra.mxu0 %v789
  %v4119 = vpop.f32.mrf.mxu0
  %v4120 = vadd.f32 0.0, %v4119
  %v4121 = vpop.f32.mrf.mxu0
  %v4122 = vadd.f32 0.0, %v4121
  %v4123 = vpop.f32.mrf.mxu0
  %v4124 = vadd.f32 0.0, %v4123
  %v4125 = vpop.f32.mrf.mxu0
  %v4126 = vadd.f32 0.0, %v4125
  %4127 = vmatprep.mubr.bf16.mxu0 %v794
  %4128 = vmatmul.mubr.bf16.gmra.mxu0 %v793
  %v4129 = vpop.f32.mrf.mxu0
  %v4130 = vadd.f32 0.0, %v4129
  %v4131 = vpop.f32.mrf.mxu0
  %v4132 = vadd.f32 0.0, %v4131
  %v4133 = vpop.f32.mrf.mxu0
  %v4134 = vadd.f32 0.0, %v4133
  %v4135 = vpop.f32.mrf.mxu0
  %v4136 = vadd.f32 0.0, %v4135
  %4137 = vmatprep.mubr.bf16.mxu0 %v798
  %4138 = vmatmul.mubr.bf16.gmra.mxu0 %v797
  %v4139 = vpop.f32.mrf.mxu0
  %v4140 = vadd.f32 0.0, %v4139
  %v4141 = vpop.f32.mrf.mxu0
  %v4142 = vadd.f32 0.0, %v4141
  %v4143 = vpop.f32.mrf.mxu0
  %v4144 = vadd.f32 0.0, %v4143
  %v4145 = vpop.f32.mrf.mxu0
  %v4146 = vadd.f32 0.0, %v4145
  %4147 = vmatprep.mubr.bf16.mxu0 %v802
  %4148 = vmatmul.mubr.bf16.gmra.mxu0 %v801
  %v4149 = vpop.f32.mrf.mxu0
  %v4150 = vadd.f32 0.0, %v4149
  %v4151 = vpop.f32.mrf.mxu0
  %v4152 = vadd.f32 0.0, %v4151
  %v4153 = vpop.f32.mrf.mxu0
  %v4154 = vadd.f32 0.0, %v4153
  %v4155 = vpop.f32.mrf.mxu0
  %v4156 = vadd.f32 0.0, %v4155
  %4157 = vmatprep.mubr.bf16.mxu0 %v806
  %4158 = vmatmul.mubr.bf16.gmra.mxu0 %v805
  %v4159 = vpop.f32.mrf.mxu0
  %v4160 = vadd.f32 0.0, %v4159
  %v4161 = vpop.f32.mrf.mxu0
  %v4162 = vadd.f32 0.0, %v4161
  %v4163 = vpop.f32.mrf.mxu0
  %v4164 = vadd.f32 0.0, %v4163
  %v4165 = vpop.f32.mrf.mxu0
  %v4166 = vadd.f32 0.0, %v4165
  %4167 = vmatprep.mubr.bf16.mxu0 %v810
  %4168 = vmatmul.mubr.bf16.gmra.mxu0 %v809
  %v4169 = vpop.f32.mrf.mxu0
  %v4170 = vadd.f32 0.0, %v4169
  %v4171 = vpop.f32.mrf.mxu0
  %v4172 = vadd.f32 0.0, %v4171
  %v4173 = vpop.f32.mrf.mxu0
  %v4174 = vadd.f32 0.0, %v4173
  %v4175 = vpop.f32.mrf.mxu0
  %v4176 = vadd.f32 0.0, %v4175
  %4177 = vdwg.mxu0
  %4178 = vmatprep.subr.bf16.mxu0 %v3808
  %4179 = vmatpush1.bf16.msra.mxu0 %v3807
  %4180 = vmatprep.subr.bf16.mxu0 %v3806
  %4181 = vmatpush1.bf16.msra.mxu0 %v3805
  %4182 = vmatprep.subr.bf16.mxu0 %v3804
  %4183 = vmatpush1.bf16.msra.mxu0 %v3803
  %4184 = vmatprep.subr.bf16.mxu0 %v3802
  %4185 = vmatpush1.bf16.msra.mxu0 %v3801
  %4186 = vmatprep.subr.bf16.mxu0 %v3800
  %4187 = vmatpush1.bf16.msra.mxu0 %v3799
  %4188 = vmatprep.subr.bf16.mxu0 %v3798
  %4189 = vmatpush1.bf16.msra.mxu0 %v3797
  %4190 = vmatprep.subr.bf16.mxu0 %v3796
  %4191 = vmatpush1.bf16.msra.mxu0 %v3795
  %4192 = vmatprep.subr.bf16.mxu0 %v3794
  %4193 = vmatpush1.bf16.msra.mxu0 %v3793
  %4194 = vmatprep.subr.bf16.mxu0 %v3824
  %4195 = vmatpush2.bf16.msra.mxu0 %v3823
  %4196 = vmatprep.subr.bf16.mxu0 %v3822
  %4197 = vmatpush2.bf16.msra.mxu0 %v3821
  %4198 = vmatprep.subr.bf16.mxu0 %v3820
  %4199 = vmatpush2.bf16.msra.mxu0 %v3819
  %4200 = vmatprep.subr.bf16.mxu0 %v3818
  %4201 = vmatpush2.bf16.msra.mxu0 %v3817
  %4202 = vmatprep.subr.bf16.mxu0 %v3816
  %4203 = vmatpush2.bf16.msra.mxu0 %v3815
  %4204 = vmatprep.subr.bf16.mxu0 %v3814
  %4205 = vmatpush2.bf16.msra.mxu0 %v3813
  %4206 = vmatprep.subr.bf16.mxu0 %v3812
  %4207 = vmatpush2.bf16.msra.mxu0 %v3811
  %4208 = vmatprep.subr.bf16.mxu0 %v3810
  %4209 = vmatpush2.bf16.msra.mxu0 %v3809
  %4210 = vmatprep.mubr.bf16.mxu0 %v688
  %4211 = vmatmul.mubr.bf16.gmra.mxu0 %v687
  %v4212 = vpop.f32.mrf.mxu0
  %v4213 = vadd.f32 %v3860, %v4212
  %v4214 = vpop.f32.mrf.mxu0
  %v4215 = vadd.f32 %v3862, %v4214
  %v4216 = vpop.f32.mrf.mxu0
  %v4217 = vadd.f32 %v3864, %v4216
  %v4218 = vpop.f32.mrf.mxu0
  %v4219 = vadd.f32 %v3866, %v4218
  %4220 = vmatprep.mubr.bf16.mxu0 %v692
  %4221 = vmatmul.mubr.bf16.gmra.mxu0 %v691
  %v4222 = vpop.f32.mrf.mxu0
  %v4223 = vadd.f32 %v3870, %v4222
  %v4224 = vpop.f32.mrf.mxu0
  %v4225 = vadd.f32 %v3872, %v4224
  %v4226 = vpop.f32.mrf.mxu0
  %v4227 = vadd.f32 %v3874, %v4226
  %v4228 = vpop.f32.mrf.mxu0
  %v4229 = vadd.f32 %v3876, %v4228
  %4230 = vmatprep.mubr.bf16.mxu0 %v696
  %4231 = vmatmul.mubr.bf16.gmra.mxu0 %v695
  %v4232 = vpop.f32.mrf.mxu0
  %v4233 = vadd.f32 %v3880, %v4232
  %v4234 = vpop.f32.mrf.mxu0
  %v4235 = vadd.f32 %v3882, %v4234
  %v4236 = vpop.f32.mrf.mxu0
  %v4237 = vadd.f32 %v3884, %v4236
  %v4238 = vpop.f32.mrf.mxu0
  %v4239 = vadd.f32 %v3886, %v4238
  %4240 = vmatprep.mubr.bf16.mxu0 %v700
  %4241 = vmatmul.mubr.bf16.gmra.mxu0 %v699
  %v4242 = vpop.f32.mrf.mxu0
  %v4243 = vadd.f32 %v3890, %v4242
  %v4244 = vpop.f32.mrf.mxu0
  %v4245 = vadd.f32 %v3892, %v4244
  %v4246 = vpop.f32.mrf.mxu0
  %v4247 = vadd.f32 %v3894, %v4246
  %v4248 = vpop.f32.mrf.mxu0
  %v4249 = vadd.f32 %v3896, %v4248
  %4250 = vmatprep.mubr.bf16.mxu0 %v704
  %4251 = vmatmul.mubr.bf16.gmra.mxu0 %v703
  %v4252 = vpop.f32.mrf.mxu0
  %v4253 = vadd.f32 %v3900, %v4252
  %v4254 = vpop.f32.mrf.mxu0
  %v4255 = vadd.f32 %v3902, %v4254
  %v4256 = vpop.f32.mrf.mxu0
  %v4257 = vadd.f32 %v3904, %v4256
  %v4258 = vpop.f32.mrf.mxu0
  %v4259 = vadd.f32 %v3906, %v4258
  %4260 = vmatprep.mubr.bf16.mxu0 %v708
  %4261 = vmatmul.mubr.bf16.gmra.mxu0 %v707
  %v4262 = vpop.f32.mrf.mxu0
  %v4263 = vadd.f32 %v3910, %v4262
  %v4264 = vpop.f32.mrf.mxu0
  %v4265 = vadd.f32 %v3912, %v4264
  %v4266 = vpop.f32.mrf.mxu0
  %v4267 = vadd.f32 %v3914, %v4266
  %v4268 = vpop.f32.mrf.mxu0
  %v4269 = vadd.f32 %v3916, %v4268
  %4270 = vmatprep.mubr.bf16.mxu0 %v712
  %4271 = vmatmul.mubr.bf16.gmra.mxu0 %v711
  %v4272 = vpop.f32.mrf.mxu0
  %v4273 = vadd.f32 %v3920, %v4272
  %v4274 = vpop.f32.mrf.mxu0
  %v4275 = vadd.f32 %v3922, %v4274
  %v4276 = vpop.f32.mrf.mxu0
  %v4277 = vadd.f32 %v3924, %v4276
  %v4278 = vpop.f32.mrf.mxu0
  %v4279 = vadd.f32 %v3926, %v4278
  %4280 = vmatprep.mubr.bf16.mxu0 %v716
  %4281 = vmatmul.mubr.bf16.gmra.mxu0 %v715
  %v4282 = vpop.f32.mrf.mxu0
  %v4283 = vadd.f32 %v3930, %v4282
  %v4284 = vpop.f32.mrf.mxu0
  %v4285 = vadd.f32 %v3932, %v4284
  %v4286 = vpop.f32.mrf.mxu0
  %v4287 = vadd.f32 %v3934, %v4286
  %v4288 = vpop.f32.mrf.mxu0
  %v4289 = vadd.f32 %v3936, %v4288
  %4290 = vmatprep.mubr.bf16.mxu0 %v720
  %4291 = vmatmul.mubr.bf16.gmra.mxu0 %v719
  %v4292 = vpop.f32.mrf.mxu0
  %v4293 = vadd.f32 %v3940, %v4292
  %v4294 = vpop.f32.mrf.mxu0
  %v4295 = vadd.f32 %v3942, %v4294
  %v4296 = vpop.f32.mrf.mxu0
  %v4297 = vadd.f32 %v3944, %v4296
  %v4298 = vpop.f32.mrf.mxu0
  %v4299 = vadd.f32 %v3946, %v4298
  %4300 = vmatprep.mubr.bf16.mxu0 %v724
  %4301 = vmatmul.mubr.bf16.gmra.mxu0 %v723
  %v4302 = vpop.f32.mrf.mxu0
  %v4303 = vadd.f32 %v3950, %v4302
  %v4304 = vpop.f32.mrf.mxu0
  %v4305 = vadd.f32 %v3952, %v4304
  %v4306 = vpop.f32.mrf.mxu0
  %v4307 = vadd.f32 %v3954, %v4306
  %v4308 = vpop.f32.mrf.mxu0
  %v4309 = vadd.f32 %v3956, %v4308
  %4310 = vmatprep.mubr.bf16.mxu0 %v728
  %4311 = vmatmul.mubr.bf16.gmra.mxu0 %v727
  %v4312 = vpop.f32.mrf.mxu0
  %v4313 = vadd.f32 %v3960, %v4312
  %v4314 = vpop.f32.mrf.mxu0
  %v4315 = vadd.f32 %v3962, %v4314
  %v4316 = vpop.f32.mrf.mxu0
  %v4317 = vadd.f32 %v3964, %v4316
  %v4318 = vpop.f32.mrf.mxu0
  %v4319 = vadd.f32 %v3966, %v4318
  %4320 = vmatprep.mubr.bf16.mxu0 %v732
  %4321 = vmatmul.mubr.bf16.gmra.mxu0 %v731
  %v4322 = vpop.f32.mrf.mxu0
  %v4323 = vadd.f32 %v3970, %v4322
  %v4324 = vpop.f32.mrf.mxu0
  %v4325 = vadd.f32 %v3972, %v4324
  %v4326 = vpop.f32.mrf.mxu0
  %v4327 = vadd.f32 %v3974, %v4326
  %v4328 = vpop.f32.mrf.mxu0
  %v4329 = vadd.f32 %v3976, %v4328
  %4330 = vmatprep.mubr.bf16.mxu0 %v736
  %4331 = vmatmul.mubr.bf16.gmra.mxu0 %v735
  %v4332 = vpop.f32.mrf.mxu0
  %v4333 = vadd.f32 %v3980, %v4332
  %v4334 = vpop.f32.mrf.mxu0
  %v4335 = vadd.f32 %v3982, %v4334
  %v4336 = vpop.f32.mrf.mxu0
  %v4337 = vadd.f32 %v3984, %v4336
  %v4338 = vpop.f32.mrf.mxu0
  %v4339 = vadd.f32 %v3986, %v4338
  %4340 = vmatprep.mubr.bf16.mxu0 %v740
  %4341 = vmatmul.mubr.bf16.gmra.mxu0 %v739
  %v4342 = vpop.f32.mrf.mxu0
  %v4343 = vadd.f32 %v3990, %v4342
  %v4344 = vpop.f32.mrf.mxu0
  %v4345 = vadd.f32 %v3992, %v4344
  %v4346 = vpop.f32.mrf.mxu0
  %v4347 = vadd.f32 %v3994, %v4346
  %v4348 = vpop.f32.mrf.mxu0
  %v4349 = vadd.f32 %v3996, %v4348
  %4350 = vmatprep.mubr.bf16.mxu0 %v744
  %4351 = vmatmul.mubr.bf16.gmra.mxu0 %v743
  %v4352 = vpop.f32.mrf.mxu0
  %v4353 = vadd.f32 %v4000, %v4352
  %v4354 = vpop.f32.mrf.mxu0
  %v4355 = vadd.f32 %v4002, %v4354
  %v4356 = vpop.f32.mrf.mxu0
  %v4357 = vadd.f32 %v4004, %v4356
  %v4358 = vpop.f32.mrf.mxu0
  %v4359 = vadd.f32 %v4006, %v4358
  %4360 = vmatprep.mubr.bf16.mxu0 %v748
  %4361 = vmatmul.mubr.bf16.gmra.mxu0 %v747
  %v4362 = vpop.f32.mrf.mxu0
  %v4363 = vadd.f32 %v4010, %v4362
  %v4364 = vpop.f32.mrf.mxu0
  %v4365 = vadd.f32 %v4012, %v4364
  %v4366 = vpop.f32.mrf.mxu0
  %v4367 = vadd.f32 %v4014, %v4366
  %v4368 = vpop.f32.mrf.mxu0
  %v4369 = vadd.f32 %v4016, %v4368
  %4370 = vmatprep.mubr.bf16.mxu0 %v752
  %4371 = vmatmul.mubr.bf16.gmra.mxu0 %v751
  %v4372 = vpop.f32.mrf.mxu0
  %v4373 = vadd.f32 %v4020, %v4372
  %v4374 = vpop.f32.mrf.mxu0
  %v4375 = vadd.f32 %v4022, %v4374
  %v4376 = vpop.f32.mrf.mxu0
  %v4377 = vadd.f32 %v4024, %v4376
  %v4378 = vpop.f32.mrf.mxu0
  %v4379 = vadd.f32 %v4026, %v4378
  %4380 = vmatprep.mubr.bf16.mxu0 %v756
  %4381 = vmatmul.mubr.bf16.gmra.mxu0 %v755
  %v4382 = vpop.f32.mrf.mxu0
  %v4383 = vadd.f32 %v4030, %v4382
  %v4384 = vpop.f32.mrf.mxu0
  %v4385 = vadd.f32 %v4032, %v4384
  %v4386 = vpop.f32.mrf.mxu0
  %v4387 = vadd.f32 %v4034, %v4386
  %v4388 = vpop.f32.mrf.mxu0
  %v4389 = vadd.f32 %v4036, %v4388
  %4390 = vmatprep.mubr.bf16.mxu0 %v760
  %4391 = vmatmul.mubr.bf16.gmra.mxu0 %v759
  %v4392 = vpop.f32.mrf.mxu0
  %v4393 = vadd.f32 %v4040, %v4392
  %v4394 = vpop.f32.mrf.mxu0
  %v4395 = vadd.f32 %v4042, %v4394
  %v4396 = vpop.f32.mrf.mxu0
  %v4397 = vadd.f32 %v4044, %v4396
  %v4398 = vpop.f32.mrf.mxu0
  %v4399 = vadd.f32 %v4046, %v4398
  %4400 = vmatprep.mubr.bf16.mxu0 %v764
  %4401 = vmatmul.mubr.bf16.gmra.mxu0 %v763
  %v4402 = vpop.f32.mrf.mxu0
  %v4403 = vadd.f32 %v4050, %v4402
  %v4404 = vpop.f32.mrf.mxu0
  %v4405 = vadd.f32 %v4052, %v4404
  %v4406 = vpop.f32.mrf.mxu0
  %v4407 = vadd.f32 %v4054, %v4406
  %v4408 = vpop.f32.mrf.mxu0
  %v4409 = vadd.f32 %v4056, %v4408
  %4410 = vmatprep.mubr.bf16.mxu0 %v768
  %4411 = vmatmul.mubr.bf16.gmra.mxu0 %v767
  %v4412 = vpop.f32.mrf.mxu0
  %v4413 = vadd.f32 %v4060, %v4412
  %v4414 = vpop.f32.mrf.mxu0
  %v4415 = vadd.f32 %v4062, %v4414
  %v4416 = vpop.f32.mrf.mxu0
  %v4417 = vadd.f32 %v4064, %v4416
  %v4418 = vpop.f32.mrf.mxu0
  %v4419 = vadd.f32 %v4066, %v4418
  %4420 = vmatprep.mubr.bf16.mxu0 %v772
  %4421 = vmatmul.mubr.bf16.gmra.mxu0 %v771
  %v4422 = vpop.f32.mrf.mxu0
  %v4423 = vadd.f32 %v4070, %v4422
  %v4424 = vpop.f32.mrf.mxu0
  %v4425 = vadd.f32 %v4072, %v4424
  %v4426 = vpop.f32.mrf.mxu0
  %v4427 = vadd.f32 %v4074, %v4426
  %v4428 = vpop.f32.mrf.mxu0
  %v4429 = vadd.f32 %v4076, %v4428
  %4430 = vmatprep.mubr.bf16.mxu0 %v776
  %4431 = vmatmul.mubr.bf16.gmra.mxu0 %v775
  %v4432 = vpop.f32.mrf.mxu0
  %v4433 = vadd.f32 %v4080, %v4432
  %v4434 = vpop.f32.mrf.mxu0
  %v4435 = vadd.f32 %v4082, %v4434
  %v4436 = vpop.f32.mrf.mxu0
  %v4437 = vadd.f32 %v4084, %v4436
  %v4438 = vpop.f32.mrf.mxu0
  %v4439 = vadd.f32 %v4086, %v4438
  %4440 = vmatprep.mubr.bf16.mxu0 %v780
  %4441 = vmatmul.mubr.bf16.gmra.mxu0 %v779
  %v4442 = vpop.f32.mrf.mxu0
  %v4443 = vadd.f32 %v4090, %v4442
  %v4444 = vpop.f32.mrf.mxu0
  %v4445 = vadd.f32 %v4092, %v4444
  %v4446 = vpop.f32.mrf.mxu0
  %v4447 = vadd.f32 %v4094, %v4446
  %v4448 = vpop.f32.mrf.mxu0
  %v4449 = vadd.f32 %v4096, %v4448
  %4450 = vmatprep.mubr.bf16.mxu0 %v784
  %4451 = vmatmul.mubr.bf16.gmra.mxu0 %v783
  %v4452 = vpop.f32.mrf.mxu0
  %v4453 = vadd.f32 %v4100, %v4452
  %v4454 = vpop.f32.mrf.mxu0
  %v4455 = vadd.f32 %v4102, %v4454
  %v4456 = vpop.f32.mrf.mxu0
  %v4457 = vadd.f32 %v4104, %v4456
  %v4458 = vpop.f32.mrf.mxu0
  %v4459 = vadd.f32 %v4106, %v4458
  %4460 = vmatprep.mubr.bf16.mxu0 %v788
  %4461 = vmatmul.mubr.bf16.gmra.mxu0 %v787
  %v4462 = vpop.f32.mrf.mxu0
  %v4463 = vadd.f32 %v4110, %v4462
  %v4464 = vpop.f32.mrf.mxu0
  %v4465 = vadd.f32 %v4112, %v4464
  %v4466 = vpop.f32.mrf.mxu0
  %v4467 = vadd.f32 %v4114, %v4466
  %v4468 = vpop.f32.mrf.mxu0
  %v4469 = vadd.f32 %v4116, %v4468
  %4470 = vmatprep.mubr.bf16.mxu0 %v792
  %4471 = vmatmul.mubr.bf16.gmra.mxu0 %v791
  %v4472 = vpop.f32.mrf.mxu0
  %v4473 = vadd.f32 %v4120, %v4472
  %v4474 = vpop.f32.mrf.mxu0
  %v4475 = vadd.f32 %v4122, %v4474
  %v4476 = vpop.f32.mrf.mxu0
  %v4477 = vadd.f32 %v4124, %v4476
  %v4478 = vpop.f32.mrf.mxu0
  %v4479 = vadd.f32 %v4126, %v4478
  %4480 = vmatprep.mubr.bf16.mxu0 %v796
  %4481 = vmatmul.mubr.bf16.gmra.mxu0 %v795
  %v4482 = vpop.f32.mrf.mxu0
  %v4483 = vadd.f32 %v4130, %v4482
  %v4484 = vpop.f32.mrf.mxu0
  %v4485 = vadd.f32 %v4132, %v4484
  %v4486 = vpop.f32.mrf.mxu0
  %v4487 = vadd.f32 %v4134, %v4486
  %v4488 = vpop.f32.mrf.mxu0
  %v4489 = vadd.f32 %v4136, %v4488
  %4490 = vmatprep.mubr.bf16.mxu0 %v800
  %4491 = vmatmul.mubr.bf16.gmra.mxu0 %v799
  %v4492 = vpop.f32.mrf.mxu0
  %v4493 = vadd.f32 %v4140, %v4492
  %v4494 = vpop.f32.mrf.mxu0
  %v4495 = vadd.f32 %v4142, %v4494
  %v4496 = vpop.f32.mrf.mxu0
  %v4497 = vadd.f32 %v4144, %v4496
  %v4498 = vpop.f32.mrf.mxu0
  %v4499 = vadd.f32 %v4146, %v4498
  %4500 = vmatprep.mubr.bf16.mxu0 %v804
  %4501 = vmatmul.mubr.bf16.gmra.mxu0 %v803
  %v4502 = vpop.f32.mrf.mxu0
  %v4503 = vadd.f32 %v4150, %v4502
  %v4504 = vpop.f32.mrf.mxu0
  %v4505 = vadd.f32 %v4152, %v4504
  %v4506 = vpop.f32.mrf.mxu0
  %v4507 = vadd.f32 %v4154, %v4506
  %v4508 = vpop.f32.mrf.mxu0
  %v4509 = vadd.f32 %v4156, %v4508
  %4510 = vmatprep.mubr.bf16.mxu0 %v808
  %4511 = vmatmul.mubr.bf16.gmra.mxu0 %v807
  %v4512 = vpop.f32.mrf.mxu0
  %v4513 = vadd.f32 %v4160, %v4512
  %v4514 = vpop.f32.mrf.mxu0
  %v4515 = vadd.f32 %v4162, %v4514
  %v4516 = vpop.f32.mrf.mxu0
  %v4517 = vadd.f32 %v4164, %v4516
  %v4518 = vpop.f32.mrf.mxu0
  %v4519 = vadd.f32 %v4166, %v4518
  %4520 = vmatprep.mubr.bf16.mxu0 %v812
  %4521 = vmatmul.mubr.bf16.gmra.mxu0 %v811
  %v4522 = vpop.f32.mrf.mxu0
  %v4523 = vadd.f32 %v4170, %v4522
  %v4524 = vpop.f32.mrf.mxu0
  %v4525 = vadd.f32 %v4172, %v4524
  %v4526 = vpop.f32.mrf.mxu0
  %v4527 = vadd.f32 %v4174, %v4526
  %v4528 = vpop.f32.mrf.mxu0
  %v4529 = vadd.f32 %v4176, %v4528
  %4530 = vdwg.mxu0
  %v4531 = vmul.f32 %v2579, %v4213
  %v4532 = vmul.f32 %v2579, %v4215
  %v4533 = vmul.f32 %v2584, %v4217
  %v4534 = vmul.f32 %v2584, %v4219
  %v4535 = vmul.f32 %v2589, %v4223
  %v4536 = vmul.f32 %v2589, %v4225
  %v4537 = vmul.f32 %v2594, %v4227
  %v4538 = vmul.f32 %v2594, %v4229
  %v4539 = vmul.f32 %v2599, %v4233
  %v4540 = vmul.f32 %v2599, %v4235
  %v4541 = vmul.f32 %v2604, %v4237
  %v4542 = vmul.f32 %v2604, %v4239
  %v4543 = vmul.f32 %v2609, %v4243
  %v4544 = vmul.f32 %v2609, %v4245
  %v4545 = vmul.f32 %v2614, %v4247
  %v4546 = vmul.f32 %v2614, %v4249
  %v4547 = vmul.f32 %v2619, %v4253
  %v4548 = vmul.f32 %v2619, %v4255
  %v4549 = vmul.f32 %v2624, %v4257
  %v4550 = vmul.f32 %v2624, %v4259
  %v4551 = vmul.f32 %v2629, %v4263
  %v4552 = vmul.f32 %v2629, %v4265
  %v4553 = vmul.f32 %v2634, %v4267
  %v4554 = vmul.f32 %v2634, %v4269
  %v4555 = vmul.f32 %v2639, %v4273
  %v4556 = vmul.f32 %v2639, %v4275
  %v4557 = vmul.f32 %v2644, %v4277
  %v4558 = vmul.f32 %v2644, %v4279
  %v4559 = vmul.f32 %v2649, %v4283
  %v4560 = vmul.f32 %v2649, %v4285
  %v4561 = vmul.f32 %v2654, %v4287
  %v4562 = vmul.f32 %v2654, %v4289
  %v4563 = vmul.f32 %v2659, %v4293
  %v4564 = vmul.f32 %v2659, %v4295
  %v4565 = vmul.f32 %v2664, %v4297
  %v4566 = vmul.f32 %v2664, %v4299
  %v4567 = vmul.f32 %v2669, %v4303
  %v4568 = vmul.f32 %v2669, %v4305
  %v4569 = vmul.f32 %v2674, %v4307
  %v4570 = vmul.f32 %v2674, %v4309
  %v4571 = vmul.f32 %v2679, %v4313
  %v4572 = vmul.f32 %v2679, %v4315
  %v4573 = vmul.f32 %v2684, %v4317
  %v4574 = vmul.f32 %v2684, %v4319
  %v4575 = vmul.f32 %v2689, %v4323
  %v4576 = vmul.f32 %v2689, %v4325
  %v4577 = vmul.f32 %v2694, %v4327
  %v4578 = vmul.f32 %v2694, %v4329
  %v4579 = vmul.f32 %v2699, %v4333
  %v4580 = vmul.f32 %v2699, %v4335
  %v4581 = vmul.f32 %v2704, %v4337
  %v4582 = vmul.f32 %v2704, %v4339
  %v4583 = vmul.f32 %v2709, %v4343
  %v4584 = vmul.f32 %v2709, %v4345
  %v4585 = vmul.f32 %v2714, %v4347
  %v4586 = vmul.f32 %v2714, %v4349
  %v4587 = vmul.f32 %v2719, %v4353
  %v4588 = vmul.f32 %v2719, %v4355
  %v4589 = vmul.f32 %v2724, %v4357
  %v4590 = vmul.f32 %v2724, %v4359
  %v4591 = vmul.f32 %v2729, %v4363
  %v4592 = vmul.f32 %v2729, %v4365
  %v4593 = vmul.f32 %v2734, %v4367
  %v4594 = vmul.f32 %v2734, %v4369
  %v4595 = vmul.f32 %v2739, %v4373
  %v4596 = vmul.f32 %v2739, %v4375
  %v4597 = vmul.f32 %v2744, %v4377
  %v4598 = vmul.f32 %v2744, %v4379
  %v4599 = vmul.f32 %v2749, %v4383
  %v4600 = vmul.f32 %v2749, %v4385
  %v4601 = vmul.f32 %v2754, %v4387
  %v4602 = vmul.f32 %v2754, %v4389
  %v4603 = vmul.f32 %v2759, %v4393
  %v4604 = vmul.f32 %v2759, %v4395
  %v4605 = vmul.f32 %v2764, %v4397
  %v4606 = vmul.f32 %v2764, %v4399
  %v4607 = vmul.f32 %v2769, %v4403
  %v4608 = vmul.f32 %v2769, %v4405
  %v4609 = vmul.f32 %v2774, %v4407
  %v4610 = vmul.f32 %v2774, %v4409
  %v4611 = vmul.f32 %v2779, %v4413
  %v4612 = vmul.f32 %v2779, %v4415
  %v4613 = vmul.f32 %v2784, %v4417
  %v4614 = vmul.f32 %v2784, %v4419
  %v4615 = vmul.f32 %v2789, %v4423
  %v4616 = vmul.f32 %v2789, %v4425
  %v4617 = vmul.f32 %v2794, %v4427
  %v4618 = vmul.f32 %v2794, %v4429
  %v4619 = vmul.f32 %v2799, %v4433
  %v4620 = vmul.f32 %v2799, %v4435
  %v4621 = vmul.f32 %v2804, %v4437
  %v4622 = vmul.f32 %v2804, %v4439
  %v4623 = vmul.f32 %v2809, %v4443
  %v4624 = vmul.f32 %v2809, %v4445
  %v4625 = vmul.f32 %v2814, %v4447
  %v4626 = vmul.f32 %v2814, %v4449
  %v4627 = vmul.f32 %v2819, %v4453
  %v4628 = vmul.f32 %v2819, %v4455
  %v4629 = vmul.f32 %v2824, %v4457
  %v4630 = vmul.f32 %v2824, %v4459
  %v4631 = vmul.f32 %v2829, %v4463
  %v4632 = vmul.f32 %v2829, %v4465
  %v4633 = vmul.f32 %v2834, %v4467
  %v4634 = vmul.f32 %v2834, %v4469
  %v4635 = vmul.f32 %v2839, %v4473
  %v4636 = vmul.f32 %v2839, %v4475
  %v4637 = vmul.f32 %v2844, %v4477
  %v4638 = vmul.f32 %v2844, %v4479
  %v4639 = vmul.f32 %v2849, %v4483
  %v4640 = vmul.f32 %v2849, %v4485
  %v4641 = vmul.f32 %v2854, %v4487
  %v4642 = vmul.f32 %v2854, %v4489
  %v4643 = vmul.f32 %v2859, %v4493
  %v4644 = vmul.f32 %v2859, %v4495
  %v4645 = vmul.f32 %v2864, %v4497
  %v4646 = vmul.f32 %v2864, %v4499
  %v4647 = vmul.f32 %v2869, %v4503
  %v4648 = vmul.f32 %v2869, %v4505
  %v4649 = vmul.f32 %v2874, %v4507
  %v4650 = vmul.f32 %v2874, %v4509
  %v4651 = vmul.f32 %v2879, %v4513
  %v4652 = vmul.f32 %v2879, %v4515
  %v4653 = vmul.f32 %v2884, %v4517
  %v4654 = vmul.f32 %v2884, %v4519
  %v4655 = vmul.f32 %v2889, %v4523
  %v4656 = vmul.f32 %v2889, %v4525
  %v4657 = vmul.f32 %v2894, %v4527
  %v4658 = vmul.f32 %v2894, %v4529
  %4659 = vst [vmem:[%s6] sm:$0xff] %v4531
  %4660 = vst [vmem:[%s6 + $0x8] sm:$0xff] %v4532
  %4661 = vst [vmem:[%s6 + $0x10] sm:$0xff] %v4533
  %4662 = vst [vmem:[%s6 + $0x18] sm:$0xff] %v4534
  %4663 = vst [vmem:[%s6 + $0x20] sm:$0xff] %v4535
  %4664 = vst [vmem:[%s6 + $0x28] sm:$0xff] %v4536
  %4665 = vst [vmem:[%s6 + $0x30] sm:$0xff] %v4537
  %4666 = vst [vmem:[%s6 + $0x38] sm:$0xff] %v4538
  %4667 = vst [vmem:[%s6 + $0x40] sm:$0xff] %v4539
  %4668 = vst [vmem:[%s6 + $0x48] sm:$0xff] %v4540
  %4669 = vst [vmem:[%s6 + $0x50] sm:$0xff] %v4541
  %4670 = vst [vmem:[%s6 + $0x58] sm:$0xff] %v4542
  %4671 = vst [vmem:[%s6 + $0x60] sm:$0xff] %v4543
  %4672 = vst [vmem:[%s6 + $0x68] sm:$0xff] %v4544
  %4673 = vst [vmem:[%s6 + $0x70] sm:$0xff] %v4545
  %4674 = vst [vmem:[%s6 + $0x78] sm:$0xff] %v4546
  %4675 = vst [vmem:[%s6 + $0x80] sm:$0xff] %v4547
  %4676 = vst [vmem:[%s6 + $0x88] sm:$0xff] %v4548
  %4677 = vst [vmem:[%s6 + $0x90] sm:$0xff] %v4549
  %4678 = vst [vmem:[%s6 + $0x98] sm:$0xff] %v4550
  %4679 = vst [vmem:[%s6 + $0xa0] sm:$0xff] %v4551
  %4680 = vst [vmem:[%s6 + $0xa8] sm:$0xff] %v4552
  %4681 = vst [vmem:[%s6 + $0xb0] sm:$0xff] %v4553
  %4682 = vst [vmem:[%s6 + $0xb8] sm:$0xff] %v4554
  %4683 = vst [vmem:[%s6 + $0xc0] sm:$0xff] %v4555
  %4684 = vst [vmem:[%s6 + $0xc8] sm:$0xff] %v4556
  %4685 = vst [vmem:[%s6 + $0xd0] sm:$0xff] %v4557
  %4686 = vst [vmem:[%s6 + $0xd8] sm:$0xff] %v4558
  %4687 = vst [vmem:[%s6 + $0xe0] sm:$0xff] %v4559
  %4688 = vst [vmem:[%s6 + $0xe8] sm:$0xff] %v4560
  %4689 = vst [vmem:[%s6 + $0xf0] sm:$0xff] %v4561
  %4690 = vst [vmem:[%s6 + $0xf8] sm:$0xff] %v4562
  %4691 = vst [vmem:[%s6 + $0x100] sm:$0xff] %v4563
  %4692 = vst [vmem:[%s6 + $0x108] sm:$0xff] %v4564
  %4693 = vst [vmem:[%s6 + $0x110] sm:$0xff] %v4565
  %4694 = vst [vmem:[%s6 + $0x118] sm:$0xff] %v4566
  %4695 = vst [vmem:[%s6 + $0x120] sm:$0xff] %v4567
  %4696 = vst [vmem:[%s6 + $0x128] sm:$0xff] %v4568
  %4697 = vst [vmem:[%s6 + $0x130] sm:$0xff] %v4569
  %4698 = vst [vmem:[%s6 + $0x138] sm:$0xff] %v4570
  %4699 = vst [vmem:[%s6 + $0x140] sm:$0xff] %v4571
  %4700 = vst [vmem:[%s6 + $0x148] sm:$0xff] %v4572
  %4701 = vst [vmem:[%s6 + $0x150] sm:$0xff] %v4573
  %4702 = vst [vmem:[%s6 + $0x158] sm:$0xff] %v4574
  %4703 = vst [vmem:[%s6 + $0x160] sm:$0xff] %v4575
  %4704 = vst [vmem:[%s6 + $0x168] sm:$0xff] %v4576
  %4705 = vst [vmem:[%s6 + $0x170] sm:$0xff] %v4577
  %4706 = vst [vmem:[%s6 + $0x178] sm:$0xff] %v4578
  %4707 = vst [vmem:[%s6 + $0x180] sm:$0xff] %v4579
  %4708 = vst [vmem:[%s6 + $0x188] sm:$0xff] %v4580
  %4709 = vst [vmem:[%s6 + $0x190] sm:$0xff] %v4581
  %4710 = vst [vmem:[%s6 + $0x198] sm:$0xff] %v4582
  %4711 = vst [vmem:[%s6 + $0x1a0] sm:$0xff] %v4583
  %4712 = vst [vmem:[%s6 + $0x1a8] sm:$0xff] %v4584
  %4713 = vst [vmem:[%s6 + $0x1b0] sm:$0xff] %v4585
  %4714 = vst [vmem:[%s6 + $0x1b8] sm:$0xff] %v4586
  %4715 = vst [vmem:[%s6 + $0x1c0] sm:$0xff] %v4587
  %4716 = vst [vmem:[%s6 + $0x1c8] sm:$0xff] %v4588
  %4717 = vst [vmem:[%s6 + $0x1d0] sm:$0xff] %v4589
  %4718 = vst [vmem:[%s6 + $0x1d8] sm:$0xff] %v4590
  %4719 = vst [vmem:[%s6 + $0x1e0] sm:$0xff] %v4591
  %4720 = vst [vmem:[%s6 + $0x1e8] sm:$0xff] %v4592
  %4721 = vst [vmem:[%s6 + $0x1f0] sm:$0xff] %v4593
  %4722 = vst [vmem:[%s6 + $0x1f8] sm:$0xff] %v4594
  %4723 = vst [vmem:[%s6 + $0x200] sm:$0xff] %v4595
  %4724 = vst [vmem:[%s6 + $0x208] sm:$0xff] %v4596
  %4725 = vst [vmem:[%s6 + $0x210] sm:$0xff] %v4597
  %4726 = vst [vmem:[%s6 + $0x218] sm:$0xff] %v4598
  %4727 = vst [vmem:[%s6 + $0x220] sm:$0xff] %v4599
  %4728 = vst [vmem:[%s6 + $0x228] sm:$0xff] %v4600
  %4729 = vst [vmem:[%s6 + $0x230] sm:$0xff] %v4601
  %4730 = vst [vmem:[%s6 + $0x238] sm:$0xff] %v4602
  %4731 = vst [vmem:[%s6 + $0x240] sm:$0xff] %v4603
  %4732 = vst [vmem:[%s6 + $0x248] sm:$0xff] %v4604
  %4733 = vst [vmem:[%s6 + $0x250] sm:$0xff] %v4605
  %4734 = vst [vmem:[%s6 + $0x258] sm:$0xff] %v4606
  %4735 = vst [vmem:[%s6 + $0x260] sm:$0xff] %v4607
  %4736 = vst [vmem:[%s6 + $0x268] sm:$0xff] %v4608
  %4737 = vst [vmem:[%s6 + $0x270] sm:$0xff] %v4609
  %4738 = vst [vmem:[%s6 + $0x278] sm:$0xff] %v4610
  %4739 = vst [vmem:[%s6 + $0x280] sm:$0xff] %v4611
  %4740 = vst [vmem:[%s6 + $0x288] sm:$0xff] %v4612
  %4741 = vst [vmem:[%s6 + $0x290] sm:$0xff] %v4613
  %4742 = vst [vmem:[%s6 + $0x298] sm:$0xff] %v4614
  %4743 = vst [vmem:[%s6 + $0x2a0] sm:$0xff] %v4615
  %4744 = vst [vmem:[%s6 + $0x2a8] sm:$0xff] %v4616
  %4745 = vst [vmem:[%s6 + $0x2b0] sm:$0xff] %v4617
  %4746 = vst [vmem:[%s6 + $0x2b8] sm:$0xff] %v4618
  %4747 = vst [vmem:[%s6 + $0x2c0] sm:$0xff] %v4619
  %4748 = vst [vmem:[%s6 + $0x2c8] sm:$0xff] %v4620
  %4749 = vst [vmem:[%s6 + $0x2d0] sm:$0xff] %v4621
  %4750 = vst [vmem:[%s6 + $0x2d8] sm:$0xff] %v4622
  %4751 = vst [vmem:[%s6 + $0x2e0] sm:$0xff] %v4623
  %4752 = vst [vmem:[%s6 + $0x2e8] sm:$0xff] %v4624
  %4753 = vst [vmem:[%s6 + $0x2f0] sm:$0xff] %v4625
  %4754 = vst [vmem:[%s6 + $0x2f8] sm:$0xff] %v4626
  %4755 = vst [vmem:[%s6 + $0x300] sm:$0xff] %v4627
  %4756 = vst [vmem:[%s6 + $0x308] sm:$0xff] %v4628
  %4757 = vst [vmem:[%s6 + $0x310] sm:$0xff] %v4629
  %4758 = vst [vmem:[%s6 + $0x318] sm:$0xff] %v4630
  %4759 = vst [vmem:[%s6 + $0x320] sm:$0xff] %v4631
  %4760 = vst [vmem:[%s6 + $0x328] sm:$0xff] %v4632
  %4761 = vst [vmem:[%s6 + $0x330] sm:$0xff] %v4633
  %4762 = vst [vmem:[%s6 + $0x338] sm:$0xff] %v4634
  %4763 = vst [vmem:[%s6 + $0x340] sm:$0xff] %v4635
  %4764 = vst [vmem:[%s6 + $0x348] sm:$0xff] %v4636
  %4765 = vst [vmem:[%s6 + $0x350] sm:$0xff] %v4637
  %4766 = vst [vmem:[%s6 + $0x358] sm:$0xff] %v4638
  %4767 = vst [vmem:[%s6 + $0x360] sm:$0xff] %v4639
  %4768 = vst [vmem:[%s6 + $0x368] sm:$0xff] %v4640
  %4769 = vst [vmem:[%s6 + $0x370] sm:$0xff] %v4641
  %4770 = vst [vmem:[%s6 + $0x378] sm:$0xff] %v4642
  %4771 = vst [vmem:[%s6 + $0x380] sm:$0xff] %v4643
  %4772 = vst [vmem:[%s6 + $0x388] sm:$0xff] %v4644
  %4773 = vst [vmem:[%s6 + $0x390] sm:$0xff] %v4645
  %4774 = vst [vmem:[%s6 + $0x398] sm:$0xff] %v4646
  %4775 = vst [vmem:[%s6 + $0x3a0] sm:$0xff] %v4647
  %4776 = vst [vmem:[%s6 + $0x3a8] sm:$0xff] %v4648
  %4777 = vst [vmem:[%s6 + $0x3b0] sm:$0xff] %v4649
  %4778 = vst [vmem:[%s6 + $0x3b8] sm:$0xff] %v4650
  %4779 = vst [vmem:[%s6 + $0x3c0] sm:$0xff] %v4651
  %4780 = vst [vmem:[%s6 + $0x3c8] sm:$0xff] %v4652
  %4781 = vst [vmem:[%s6 + $0x3d0] sm:$0xff] %v4653
  %4782 = vst [vmem:[%s6 + $0x3d8] sm:$0xff] %v4654
  %4783 = vst [vmem:[%s6 + $0x3e0] sm:$0xff] %v4655
  %4784 = vst [vmem:[%s6 + $0x3e8] sm:$0xff] %v4656
  %4785 = vst [vmem:[%s6 + $0x3f0] sm:$0xff] %v4657
  %4786 = vst [vmem:[%s6 + $0x3f8] sm:$0xff] %v4658
  // Predicated region
  $region26: #{gcn_encoder.1} parent=0 // pred_check
    _
  $region27: #{gcn_encoder.1} parent=0 // pred_check_branch
    %4788 = sbr.rel (0) target = $region29
  $region28: #{gcn_encoder.1} parent=0 // pred_region
    _
  $region29: #{gcn_encoder.1} parent=0 // pred_fallthru
    _
  // Predicated region
  $region30: #{gcn_encoder.1} parent=0 // pred_check
    _
  $region31: #{gcn_encoder.1} parent=0 // pred_check_branch
    %4790 = sbr.rel (0) target = $region33
  $region32: #{gcn_encoder.1} parent=0 // pred_region
    _
  $region33: #{gcn_encoder.1} parent=0 // pred_fallthru
    _

</llo_original>
